<compile_context>
chip_gen: v6e
topology: v6e:2x2x1
jax: 0.10.0
libtpu: 0.0.40
codegen_flags: <defaults>
</compile_context>

<pallas_src>
import jax
import jax.numpy as jnp
from jax.experimental import pallas as pl
from jax.experimental.pallas import tpu as pltpu


OUT_PAD = 128   # lane-dense padded output width (real head output is 5)
HEAD_OUT = 5    # 3 reward logits + 2 end logits


def _round_up(x, m):
    return (x + m - 1) // m * m


def _vmem_budget():
    """~70% of per-core physical VMEM (v5e/v6e 128 MiB, v7x 64 MiB)."""
    try:
        phys = pltpu.get_tpu_info().vmem_capacity_bytes
    except Exception:
        phys = 64 << 20          # conservative fallback (v7x per-core VMEM)
    return int(0.70 * phys)


# ----------------------------- Pallas kernels ------------------------------ #
def _head_kernel_resident(x_ref, w1_ref, b1_ref, w2_ref, o_ref):
    """Single-pass  SiLU(x @ W1 + b1) @ W2_pad  with W1 fully VMEM-resident.

    Grid = (M tiles ["parallel"],). x arrives f32 and is cast to bf16 on the
    VPU (hides under DMA/MXU); accumulation and SiLU stay f32; the padded
    (lane-dense) second matmul writes unmasked stores.
    """
    x = x_ref[...].astype(jnp.bfloat16)
    h = jnp.dot(x, w1_ref[...], preferred_element_type=jnp.float32) + b1_ref[...]
    # SiLU = h * sigmoid(h); single exp (EUP) + approx reciprocal (EUP slot).
    h = h * pl.reciprocal(1.0 + jnp.exp(-h), approx=True)
    o_ref[...] = jnp.dot(
        h.astype(w2_ref.dtype), w2_ref[...], preferred_element_type=jnp.float32
    ).astype(o_ref.dtype)


def _head_kernel_reduce(x_ref, w1_ref, b1_ref, w2_ref, o_ref, acc_ref):
    """Fallback for D too large to hold W1 resident: K-reduction over D.

    Grid = (M tiles ["parallel"], K tiles ["arbitrary"]). The bias is folded
    into the accumulator init; SiLU + the lane-dense second matmul run on the
    last K step.
    """
    k = pl.program_id(1)

    @pl.when(k == 0)
    def _():
        acc_ref[...] = jnp.broadcast_to(b1_ref[...], acc_ref.shape)

    acc_ref[...] += jnp.dot(
        x_ref[...].astype(jnp.bfloat16), w1_ref[...],
        preferred_element_type=jnp.float32,
    )

    @pl.when(k == pl.num_programs(1) - 1)
    def _():
        h = acc_ref[...]
        h = h * pl.reciprocal(1.0 + jnp.exp(-h), approx=True)
        o_ref[...] = jnp.dot(
            h.astype(w2_ref.dtype), w2_ref[...], preferred_element_type=jnp.float32
        ).astype(o_ref.dtype)


# ------------------------------- wrapper ----------------------------------- #
def head_forward(x2d, w1, b1, w2_pad, *, tm_target=512, tk_target=512):
    """x2d: (M, D) f32, w1: (D, D) bf16, b1: (1, D) f32, w2_pad: (D, OUT_PAD) bf16
    -> padded logits (M, OUT_PAD) f32."""
    M, D = x2d.shape
    out_pad = w2_pad.shape[1]
    budget = _vmem_budget()

    tm = min(tm_target, _round_up(M, 8))     # x is f32 -> sublane multiple of 8

    # ---- resident-W1 plan (preferred): single grid axis over M ------------
    # Pallas allocates 2 buffers per input even for constant index_maps.
    fixed_res = 2 * D * D * 2 + 2 * D * 4 + 2 * D * out_pad * 2
    per_row_res = (2 * D * 4             # x tile f32, double-buffered
                   + 2 * out_pad * 4     # out tile f32, double-buffered
                   + D * (2 + 4 + 2))    # epilogue temps: x bf16 + h f32 + h bf16
    use_resident = fixed_res + 8 * per_row_res <= budget

    if use_resident:
        max_rows = (budget - fixed_res) // per_row_res
        tm = max(8, min(tm, (max_rows // 8) * 8))
        m_pad = _round_up(M, tm)
        if m_pad != M:
            x2d = jnp.pad(x2d, ((0, m_pad - M), (0, 0)))
        grid = (m_pad // tm,)

        cost = pl.CostEstimate(
            flops=2 * m_pad * D * D + 2 * m_pad * D * out_pad,
            transcendentals=m_pad * D,
            bytes_accessed=(m_pad * D * 4 + D * D * 2 + D * 4
                            + D * out_pad * 2 + m_pad * out_pad * 4),
        )
        # TODO(synk): on v7x, a second "parallel" grid axis splitting W1's
        # output columns across the two TensorCores would keep TC1 busy at
        # small M; omitted to keep a single lane-dense output store.
        out = pl.pallas_call(
            _head_kernel_resident,
            out_shape=jax.ShapeDtypeStruct((m_pad, out_pad), jnp.float32),
            grid_spec=pltpu.PrefetchScalarGridSpec(
                num_scalar_prefetch=0,
                grid=grid,
                in_specs=[
                    pl.BlockSpec((tm, D), lambda i: (i, 0)),         # x (f32)
                    pl.BlockSpec((D, D), lambda i: (0, 0)),          # W1 (resident)
                    pl.BlockSpec((1, D), lambda i: (0, 0)),          # b1
                    pl.BlockSpec((D, out_pad), lambda i: (0, 0)),    # W2 (padded)
                ],
                out_specs=pl.BlockSpec((tm, out_pad), lambda i: (i, 0)),
                scratch_shapes=[],
            ),
            compiler_params=pltpu.CompilerParams(
                dimension_semantics=("parallel",),
                vmem_limit_bytes=budget,
            ),
            cost_estimate=cost,
        )(x2d, w1, b1, w2_pad)
        return out[:M]

    # ---- fallback: K-reduction over D (W1 too large to hold resident) ------
    # tk = largest multiple of 128 that divides D and is <= tk_target
    tk = None
    cand = (min(tk_target, D) // 128) * 128
    while cand >= 128:
        if D % cand == 0:
            tk = cand
            break
        cand -= 128
    if tk is None:
        tk = D   # D not a multiple of 128 (not expected for C * S**2 layouts)

    fixed_red = 2 * tk * D * 2 + 2 * D * 4 + 2 * D * out_pad * 2
    per_row_red = (2 * tk * 4            # x tile f32, double-buffered
                   + D * 4               # f32 accumulator scratch
                   + 2 * out_pad * 4     # out tile f32, double-buffered
                   + tk * 2 + D * 6)     # temps: x bf16, h f32 + h bf16
    max_rows = max(8, (budget - fixed_red) // max(per_row_red, 1))
    tm = max(8, min(tm, (max_rows // 8) * 8))
    m_pad = _round_up(M, tm)
    if m_pad != M:
        x2d = jnp.pad(x2d, ((0, m_pad - M), (0, 0)))
    grid = (m_pad // tm, D // tk)

    cost = pl.CostEstimate(
        flops=2 * m_pad * D * D + 2 * m_pad * D * out_pad,
        transcendentals=m_pad * D,
        bytes_accessed=(m_pad * D * 4 + (m_pad // tm) * D * D * 2 + D * 4
                        + D * out_pad * 2 + m_pad * out_pad * 4),
    )
    out = pl.pallas_call(
        _head_kernel_reduce,
        out_shape=jax.ShapeDtypeStruct((m_pad, out_pad), jnp.float32),
        grid_spec=pltpu.PrefetchScalarGridSpec(
            num_scalar_prefetch=0,
            grid=grid,
            in_specs=[
                pl.BlockSpec((tm, tk), lambda i, k: (i, k)),         # x (f32)
                pl.BlockSpec((tk, D), lambda i, k: (k, 0)),          # W1 slab
                pl.BlockSpec((1, D), lambda i, k: (0, 0)),           # b1
                pl.BlockSpec((D, out_pad), lambda i, k: (0, 0)),     # W2 (padded)
            ],
            out_specs=pl.BlockSpec((tm, out_pad), lambda i, k: (i, 0)),
            scratch_shapes=[pltpu.VMEM((tm, D), jnp.float32)],
        ),
        compiler_params=pltpu.CompilerParams(
            dimension_semantics=("parallel", "arbitrary"),
            vmem_limit_bytes=budget,
        ),
        cost_estimate=cost,
    )(x2d, w1, b1, w2_pad)
    return out[:M]


# --------------------------- WorldModel (JAX) ------------------------------ #
class WorldModelPallas:
    """JAX/Pallas re-implementation of the WorldModel.forward head path.

    head_emb = latent_image_channels * latent_image_size ** 2
    head = Linear(D, D) -> SiLU -> Linear(D, 5, bias=False)
    """

    def __init__(self, latent_image_channels, latent_image_size, key):
        self.head_emb = latent_image_channels * latent_image_size ** 2
        D = self.head_emb
        k1, k2, k3 = jax.random.split(key, 3)
        scale = 0.02
        w1 = scale * jax.random.normal(k1, (D, D), jnp.float32)
        b1 = scale * jax.random.normal(k2, (D,), jnp.float32)
        w2 = scale * jax.random.normal(k3, (D, HEAD_OUT), jnp.float32)

        # bf16 weights for the MXU (accumulation stays f32 in-kernel).
        # TODO(synk): fp8 (v7x) / int8 (v5e/v6e) weight storage would ~2x the
        # bandwidth-bound case; kept bf16 here for a single validated path.
        self.w1 = w1.astype(jnp.bfloat16)
        self.b1 = b1.reshape(1, D)                      # f32
        # zero-pad the 5-wide output projection to 128 lanes (lane-dense stores)
        self.w2_pad = (
            jnp.zeros((D, OUT_PAD), jnp.float32).at[:, :HEAD_OUT].set(w2)
        ).astype(jnp.bfloat16)

    def consistency_model(self, sequence, actions):
        # TODO(synk): real ConsistencyModel is undefined in the given source;
        # stubbed as identity so the head path is exercised end to end.
        return {"next_outputs": sequence}

    def forward(self, sequence, actions):
        # sequence: (B, T, E, H, W)
        consistency_outputs = self.consistency_model(sequence, actions)
        outputs_for_head = consistency_outputs["next_outputs"]
        b, t, e, h, w = outputs_for_head.shape
        # 'b t e h w -> b t (e h w)', flattened to (B*T, D); stays f32 here,
        # the bf16 cast happens inside the kernel (no extra HBM pass).
        x2d = outputs_for_head.reshape(b * t, e * h * w)
        logits2d = head_forward(x2d, self.w1, self.b1, self.w2_pad)   # (M, 128)
        logits = logits2d[:, :HEAD_OUT].reshape(b, t, HEAD_OUT)       # (B, T, 5)
        logits_rewards = logits[:, :, :-2]                            # (B, T, 3)
        logits_ends = logits[:, :, -2:]                               # (B, T, 2)
        return consistency_outputs, logits_rewards, logits_ends

    # pure-JAX reference of the head (same bf16 operands, f32 accumulation)
    def _ref_forward(self, sequence):
        b, t, e, h, w = sequence.shape
        x = sequence.reshape(b, t, e * h * w).astype(jnp.bfloat16)
        hpre = jnp.dot(x, self.w1, preferred_element_type=jnp.float32) + self.b1[0]
        hact = hpre * jax.nn.sigmoid(hpre)
        logits = jnp.dot(hact.astype(jnp.bfloat16), self.w2_pad,
                         preferred_element_type=jnp.float32)[:, :, :HEAD_OUT]
        return logits[:, :, :-2], logits[:, :, -2:]


# --------------------------------- main ------------------------------------ #
if __name__ == "__main__":
    key = jax.random.PRNGKey(0)
    k_param, k_seq, k_act = jax.random.split(key, 3)

    # small shapes consistent with the module
    B, T = 2, 8
    LATENT_IMAGE_CHANNELS = 4
    LATENT_IMAGE_SIZE = 16        # head_emb = 4 * 16**2 = 1024 -> W1 resident

    model = WorldModelPallas(LATENT_IMAGE_CHANNELS, LATENT_IMAGE_SIZE, k_param)

    sequence = jax.random.normal(
        k_seq, (B, T, LATENT_IMAGE_CHANNELS, LATENT_IMAGE_SIZE, LATENT_IMAGE_SIZE),
        jnp.float32)
    actions = jax.random.randint(k_act, (B, T, 1), 0, 4)

    consistency_outputs, logits_rewards, logits_ends = model.forward(sequence, actions)
    logits_rewards = jax.block_until_ready(logits_rewards)
    logits_ends = jax.block_until_ready(logits_ends)

    # correctness check against the pure-JAX reference
    ref_rewards, ref_ends = model._ref_forward(sequence)
    assert logits_rewards.shape == (B, T, 3)
    assert logits_ends.shape == (B, T, 2)
    assert jnp.allclose(logits_rewards, ref_rewards, atol=3e-3, rtol=3e-3)
    assert jnp.allclose(logits_ends, ref_ends, atol=3e-3, rtol=3e-3)

    print("KERNEL_OK")
</pallas_src>

<mosaic_0001>
module attributes {stable_mosaic.version = 11 : i64} {
  func.func @_head_kernel_resident(%arg0: i32, %arg1: memref<16x1024xf32, #tpu.memory_space<vmem>>, %arg2: memref<1024x1024xbf16, #tpu.memory_space<vmem>>, %arg3: memref<1x1024xf32, #tpu.memory_space<vmem>>, %arg4: memref<1024x128xbf16, #tpu.memory_space<vmem>>, %arg5: memref<16x128xf32, #tpu.memory_space<vmem>>) attributes {dimension_semantics = [#tpu.dimension_semantics<parallel>], iteration_bounds = array<i64: 1>, scalar_prefetch = 0 : i64, scratch_operands = 0 : i64, tpu.core_type = #tpu.core_type<tc>, window_params = [{transform_indices = @transform_0, window_bounds = array<i64: 16, 1024>}, {pipeline_mode = #tpu.pipeline_mode<synchronous>, transform_indices = @transform_1, window_bounds = array<i64: 1024, 1024>}, {pipeline_mode = #tpu.pipeline_mode<synchronous>, transform_indices = @transform_2, window_bounds = array<i64: 1, 1024>}, {pipeline_mode = #tpu.pipeline_mode<synchronous>, transform_indices = @transform_3, window_bounds = array<i64: 1024, 128>}, {transform_indices = @transform_4, window_bounds = array<i64: 16, 128>}]} {
    %c0 = arith.constant 0 : index
    %c0_0 = arith.constant 0 : index
    %0 = vector.load %arg1[%c0, %c0_0] : memref<16x1024xf32, #tpu.memory_space<vmem>>, vector<16x1024xf32>
    %1 = arith.truncf %0 : vector<16x1024xf32> to vector<16x1024xbf16>
    %c0_1 = arith.constant 0 : index
    %c0_2 = arith.constant 0 : index
    %2 = vector.load %arg2[%c0_1, %c0_2] : memref<1024x1024xbf16, #tpu.memory_space<vmem>>, vector<1024x1024xbf16>
    %cst = arith.constant dense<0.000000e+00> : vector<16x1024xf32>
    %3 = tpu.matmul %1, %2, %cst {dimension_numbers = #tpu.dot_dimension_numbers<[1], [0], [0], [1], [0, 0, 1, 1], [], []>} : vector<16x1024xbf16>, vector<1024x1024xbf16>, vector<16x1024xf32> -> vector<16x1024xf32>
    %c0_3 = arith.constant 0 : index
    %c0_4 = arith.constant 0 : index
    %4 = vector.load %arg3[%c0_3, %c0_4] : memref<1x1024xf32, #tpu.memory_space<vmem>>, vector<1x1024xf32>
    %5 = vector.broadcast %4 : vector<1x1024xf32> to vector<16x1024xf32>
    %6 = arith.addf %3, %5 : vector<16x1024xf32>
    %cst_5 = arith.constant 0.000000e+00 : f32
    %7 = vector.broadcast %cst_5 : f32 to vector<16x1024xf32>
    %8 = arith.subf %7, %6 : vector<16x1024xf32>
    %9 = math.exp %8 : vector<16x1024xf32>
    %cst_6 = arith.constant 1.000000e+00 : f32
    %10 = vector.broadcast %cst_6 : f32 to vector<16x1024xf32>
    %11 = arith.addf %10, %9 : vector<16x1024xf32>
    %12 = tpu.reciprocal %11 {approx = true} : vector<16x1024xf32> -> vector<16x1024xf32>
    %13 = arith.mulf %6, %12 : vector<16x1024xf32>
    %14 = arith.truncf %13 : vector<16x1024xf32> to vector<16x1024xbf16>
    %c0_7 = arith.constant 0 : index
    %c0_8 = arith.constant 0 : index
    %15 = vector.load %arg4[%c0_7, %c0_8] : memref<1024x128xbf16, #tpu.memory_space<vmem>>, vector<1024x128xbf16>
    %cst_9 = arith.constant dense<0.000000e+00> : vector<16x128xf32>
    %16 = tpu.matmul %14, %15, %cst_9 {dimension_numbers = #tpu.dot_dimension_numbers<[1], [0], [0], [1], [0, 0, 1, 1], [], []>} : vector<16x1024xbf16>, vector<1024x128xbf16>, vector<16x128xf32> -> vector<16x128xf32>
    %c0_10 = arith.constant 0 : index
    %c0_11 = arith.constant 0 : index
    %17 = vector.load %arg5[%c0_10, %c0_11] : memref<16x128xf32, #tpu.memory_space<vmem>>, vector<16x128xf32>
    tpu.vector_store %arg5[%c0_10, %c0_11], %16 {strides = array<i32>} : memref<16x128xf32, #tpu.memory_space<vmem>>, vector<16x128xf32>,
    return
  }
  func.func @transform_0(%arg0: i32) -> (i32, i32) {
    %c0_i32 = arith.constant 0 : i32
    %c0_i32_0 = arith.constant 0 : i32
    return %arg0, %c0_i32 : i32, i32
  }
  func.func @transform_1(%arg0: i32) -> (i32, i32) {
    %c0_i32 = arith.constant 0 : i32
    %c0_i32_0 = arith.constant 0 : i32
    %c0_i32_1 = arith.constant 0 : i32
    return %c0_i32, %c0_i32_0 : i32, i32
  }
  func.func @transform_2(%arg0: i32) -> (i32, i32) {
    %c0_i32 = arith.constant 0 : i32
    %c0_i32_0 = arith.constant 0 : i32
    %c0_i32_1 = arith.constant 0 : i32
    return %c0_i32, %c0_i32_0 : i32, i32
  }
  func.func @transform_3(%arg0: i32) -> (i32, i32) {
    %c0_i32 = arith.constant 0 : i32
    %c0_i32_0 = arith.constant 0 : i32
    %c0_i32_1 = arith.constant 0 : i32
    return %c0_i32, %c0_i32_0 : i32, i32
  }
  func.func @transform_4(%arg0: i32) -> (i32, i32) {
    %c0_i32 = arith.constant 0 : i32
    %c0_i32_0 = arith.constant 0 : i32
    return %arg0, %c0_i32 : i32, i32
  }
}

</mosaic_0001>

<llo_original>
// kernel: tpu_custom_call.1
$region0: #{tpu_custom_call.1}
  #allocation0 [shape = 'u32[]', space=smem, size = 0x4, offset = 0x4, fixed_abs, tag = 'smem constant byte address 0x4 - core index']
  #allocation1 [shape = 'u32[144,128]{1,0:T(1,128)}', space=vmem, size = 0x12000, scoped, tag = 'internal scratch']
  %s0 = inlined_call_operand.hbm [shape: f32[16,1024], index: 0, kind: input, shape index: {}]
  %s1 = inlined_call_operand.hbm [shape: bf16[1024,1024], index: 1, kind: input, shape index: {}]
  %s2 = inlined_call_operand.hbm [shape: f32[1,1024], index: 2, kind: input, shape index: {}]
  %s3 = inlined_call_operand.hbm [shape: bf16[1024,128], index: 3, kind: input, shape index: {}]
  %s4 = inlined_call_operand.hbm [shape: f32[16,128], index: 4, kind: output, shape index: {}]
  %s5 = sld [smem:[#allocation0]]
  $region42: #{tpu_custom_call.1} parent=0
    _
  %s7 = ssub.s32 1, %s5
  %s8 = scalar_select 0, %s7, %s5
  $region1: #{tpu_custom_call.1} parent=0
    #allocation2 [shape = 'u8[65536]{0}', space=vmem, size = 0x10000, scoped, tag = 'input window, operand 0, single buffered']
    #allocation3 [shape = 's32[1]{0}', space=sflag, size = 0x4, scoped, tag = 'scoped memory for tpu_custom_call.1']
    #allocation4 [shape = 's32[1]{0}', space=sflag, size = 0x4, scoped, tag = 'scoped memory for tpu_custom_call.1']
    #allocation5 [shape = 'u8[2097152]{0}', space=vmem, size = 0x200000, scoped, tag = 'input window, operand 1, single buffered']
    #allocation6 [shape = 's32[1]{0}', space=sflag, size = 0x4, scoped, tag = 'scoped memory for tpu_custom_call.1']
    #allocation7 [shape = 'u8[4096]{0}', space=vmem, size = 0x1000, scoped, tag = 'input window, operand 2, single buffered']
    #allocation8 [shape = 'u8[262144]{0}', space=vmem, size = 0x40000, scoped, tag = 'input window, operand 3, single buffered']
    #allocation9 [shape = 's32[1]{0}', space=sflag, size = 0x4, scoped, tag = 'scoped memory for tpu_custom_call.1']
    #allocation10 [shape = 'u8[8192]{0}', space=vmem, size = 0x2000, scoped, tag = 'output window, operand 0, single buffered']
    %9 = vsyncpa [#allocation3], 0
    %10 = vsyncpa [#allocation6], 0
    %11 = vsyncpa [#allocation9], 0
    %12 = vsyncpa [#allocation4], 0
    // Predicated region
    $region2: #{tpu_custom_call.1} parent=1 // pred_check
      _
    $region3: #{tpu_custom_call.1} parent=1 // pred_check_branch
      %14 = sbr.rel (0) target = $region5
    $region4: #{tpu_custom_call.1} parent=1 // pred_region
      %s16 = ssub.s32 2048, 2048
      %17 = vsyncadd [#allocation3], %s16
      %s18 = sshll.u32 [#allocation2], 4
      %s19 = int_to_ptr.vmem [resolvable:$true] %s18
      %24 = dma.hbm_to_vmem [thread:$0]  %s0, 2048, %s19, [#allocation3], 1024, 1024, 64
    $region5: #{tpu_custom_call.1} parent=1 // pred_fallthru
      _
    // Predicated region
    $region6: #{tpu_custom_call.1} parent=1 // pred_check
      _
    $region7: #{tpu_custom_call.1} parent=1 // pred_check_branch
      %26 = sbr.rel (0) target = $region9
    $region8: #{tpu_custom_call.1} parent=1 // pred_region
      %s28 = ssub.s32 65536, 65536
      %29 = vsyncadd [#allocation6], %s28
      %s30 = sshll.u32 [#allocation5], 4
      %s31 = int_to_ptr.vmem [resolvable:$true] %s30
      %36 = dma.hbm_to_vmem [thread:$0]  %s1, 65536, %s31, [#allocation6], 512, 512, 32
    $region9: #{tpu_custom_call.1} parent=1 // pred_fallthru
      _
    // Predicated region
    $region10: #{tpu_custom_call.1} parent=1 // pred_check
      _
    $region11: #{tpu_custom_call.1} parent=1 // pred_check_branch
      %38 = sbr.rel (0) target = $region13
    $region12: #{tpu_custom_call.1} parent=1 // pred_region
      %s40 = ssub.s32 128, 128
      %41 = vsyncadd [#allocation6], %s40
      %s43 = sshll.u32 [#allocation7], 4
      %s44 = int_to_ptr.vmem [resolvable:$true] %s43
      %46 = dma.hbm_to_vmem [thread:$0]  %s2, 128, %s44, [#allocation6]
    $region13: #{tpu_custom_call.1} parent=1 // pred_fallthru
      _
    // Predicated region
    $region14: #{tpu_custom_call.1} parent=1 // pred_check
      _
    $region15: #{tpu_custom_call.1} parent=1 // pred_check_branch
      %48 = sbr.rel (0) target = $region17
    $region16: #{tpu_custom_call.1} parent=1 // pred_region
      %s50 = ssub.s32 8192, 8192
      %51 = vsyncadd [#allocation9], %s50
      %s52 = sshll.u32 [#allocation8], 4
      %s53 = int_to_ptr.vmem [resolvable:$true] %s52
      %58 = dma.hbm_to_vmem [thread:$0]  %s3, 8192, %s53, [#allocation9], 64, 64, 4
    $region17: #{tpu_custom_call.1} parent=1 // pred_fallthru
      _
    // Predicated region
    $region18: #{tpu_custom_call.1} parent=1 // pred_check
      _
    $region19: #{tpu_custom_call.1} parent=1 // pred_check_branch
      %60 = sbr.rel (0) target = $region21
    $region20: #{tpu_custom_call.1} parent=1 // pred_region
      %61 = dma.done [#allocation3], 2048
    $region21: #{tpu_custom_call.1} parent=1 // pred_fallthru
      _
    // Predicated region
    $region22: #{tpu_custom_call.1} parent=1 // pred_check
      _
    $region23: #{tpu_custom_call.1} parent=1 // pred_check_branch
      %63 = sbr.rel (0) target = $region25
    $region24: #{tpu_custom_call.1} parent=1 // pred_region
      %64 = dma.done [#allocation6], 65536
    $region25: #{tpu_custom_call.1} parent=1 // pred_fallthru
      _
    // Predicated region
    $region26: #{tpu_custom_call.1} parent=1 // pred_check
      _
    $region27: #{tpu_custom_call.1} parent=1 // pred_check_branch
      %66 = sbr.rel (0) target = $region29
    $region28: #{tpu_custom_call.1} parent=1 // pred_region
      %67 = dma.done [#allocation6], 128
    $region29: #{tpu_custom_call.1} parent=1 // pred_fallthru
      _
    // Predicated region
    $region30: #{tpu_custom_call.1} parent=1 // pred_check
      _
    $region31: #{tpu_custom_call.1} parent=1 // pred_check_branch
      %69 = sbr.rel (0) target = $region33
    $region32: #{tpu_custom_call.1} parent=1 // pred_region
      %70 = dma.done [#allocation9], 8192
    $region33: #{tpu_custom_call.1} parent=1 // pred_fallthru
      _
    %v72 = vld [vmem:[#allocation2] sm:$0xff]
    %v73 = vld [vmem:[#allocation2 + $0x8] sm:$0xff]
    %v74 = vld [vmem:[#allocation2 + $0x10] sm:$0xff]
    %v75 = vld [vmem:[#allocation2 + $0x18] sm:$0xff]
    %v76 = vld [vmem:[#allocation2 + $0x20] sm:$0xff]
    %v77 = vld [vmem:[#allocation2 + $0x28] sm:$0xff]
    %v78 = vld [vmem:[#allocation2 + $0x30] sm:$0xff]
    %v79 = vld [vmem:[#allocation2 + $0x38] sm:$0xff]
    %v80 = vld [vmem:[#allocation2 + $0x40] sm:$0xff]
    %v81 = vld [vmem:[#allocation2 + $0x48] sm:$0xff]
    %v82 = vld [vmem:[#allocation2 + $0x50] sm:$0xff]
    %v83 = vld [vmem:[#allocation2 + $0x58] sm:$0xff]
    %v84 = vld [vmem:[#allocation2 + $0x60] sm:$0xff]
    %v85 = vld [vmem:[#allocation2 + $0x68] sm:$0xff]
    %v86 = vld [vmem:[#allocation2 + $0x70] sm:$0xff]
    %v87 = vld [vmem:[#allocation2 + $0x78] sm:$0xff]
    %v88 = vpack.c.bf16 %v80, %v72
    %v89 = vpack.c.bf16 %v81, %v73
    %v90 = vpack.c.bf16 %v82, %v74
    %v91 = vpack.c.bf16 %v83, %v75
    %v92 = vpack.c.bf16 %v84, %v76
    %v93 = vpack.c.bf16 %v85, %v77
    %v94 = vpack.c.bf16 %v86, %v78
    %v95 = vpack.c.bf16 %v87, %v79
    %v96 = vld [vmem:[#allocation5] sm:$0xff]
    %v97 = vld [vmem:[#allocation5 + $0x8] sm:$0xff]
    %v98 = vld [vmem:[#allocation5 + $0x10] sm:$0xff]
    %v99 = vld [vmem:[#allocation5 + $0x18] sm:$0xff]
    %v100 = vld [vmem:[#allocation5 + $0x20] sm:$0xff]
    %v101 = vld [vmem:[#allocation5 + $0x28] sm:$0xff]
    %v102 = vld [vmem:[#allocation5 + $0x30] sm:$0xff]
    %v103 = vld [vmem:[#allocation5 + $0x38] sm:$0xff]
    %v104 = vld [vmem:[#allocation5 + $0x40] sm:$0xff]
    %v105 = vld [vmem:[#allocation5 + $0x48] sm:$0xff]
    %v106 = vld [vmem:[#allocation5 + $0x50] sm:$0xff]
    %v107 = vld [vmem:[#allocation5 + $0x58] sm:$0xff]
    %v108 = vld [vmem:[#allocation5 + $0x60] sm:$0xff]
    %v109 = vld [vmem:[#allocation5 + $0x68] sm:$0xff]
    %v110 = vld [vmem:[#allocation5 + $0x70] sm:$0xff]
    %v111 = vld [vmem:[#allocation5 + $0x78] sm:$0xff]
    %v112 = vld [vmem:[#allocation5 + $0x80] sm:$0xff]
    %v113 = vld [vmem:[#allocation5 + $0x88] sm:$0xff]
    %v114 = vld [vmem:[#allocation5 + $0x90] sm:$0xff]
    %v115 = vld [vmem:[#allocation5 + $0x98] sm:$0xff]
    %v116 = vld [vmem:[#allocation5 + $0xa0] sm:$0xff]
    %v117 = vld [vmem:[#allocation5 + $0xa8] sm:$0xff]
    %v118 = vld [vmem:[#allocation5 + $0xb0] sm:$0xff]
    %v119 = vld [vmem:[#allocation5 + $0xb8] sm:$0xff]
    %v120 = vld [vmem:[#allocation5 + $0xc0] sm:$0xff]
    %v121 = vld [vmem:[#allocation5 + $0xc8] sm:$0xff]
    %v122 = vld [vmem:[#allocation5 + $0xd0] sm:$0xff]
    %v123 = vld [vmem:[#allocation5 + $0xd8] sm:$0xff]
    %v124 = vld [vmem:[#allocation5 + $0xe0] sm:$0xff]
    %v125 = vld [vmem:[#allocation5 + $0xe8] sm:$0xff]
    %v126 = vld [vmem:[#allocation5 + $0xf0] sm:$0xff]
    %v127 = vld [vmem:[#allocation5 + $0xf8] sm:$0xff]
    %v128 = vld [vmem:[#allocation5 + $0x100] sm:$0xff]
    %v129 = vld [vmem:[#allocation5 + $0x108] sm:$0xff]
    %v130 = vld [vmem:[#allocation5 + $0x110] sm:$0xff]
    %v131 = vld [vmem:[#allocation5 + $0x118] sm:$0xff]
    %v132 = vld [vmem:[#allocation5 + $0x120] sm:$0xff]
    %v133 = vld [vmem:[#allocation5 + $0x128] sm:$0xff]
    %v134 = vld [vmem:[#allocation5 + $0x130] sm:$0xff]
    %v135 = vld [vmem:[#allocation5 + $0x138] sm:$0xff]
    %v136 = vld [vmem:[#allocation5 + $0x140] sm:$0xff]
    %v137 = vld [vmem:[#allocation5 + $0x148] sm:$0xff]
    %v138 = vld [vmem:[#allocation5 + $0x150] sm:$0xff]
    %v139 = vld [vmem:[#allocation5 + $0x158] sm:$0xff]
    %v140 = vld [vmem:[#allocation5 + $0x160] sm:$0xff]
    %v141 = vld [vmem:[#allocation5 + $0x168] sm:$0xff]
    %v142 = vld [vmem:[#allocation5 + $0x170] sm:$0xff]
    %v143 = vld [vmem:[#allocation5 + $0x178] sm:$0xff]
    %v144 = vld [vmem:[#allocation5 + $0x180] sm:$0xff]
    %v145 = vld [vmem:[#allocation5 + $0x188] sm:$0xff]
    %v146 = vld [vmem:[#allocation5 + $0x190] sm:$0xff]
    %v147 = vld [vmem:[#allocation5 + $0x198] sm:$0xff]
    %v148 = vld [vmem:[#allocation5 + $0x1a0] sm:$0xff]
    %v149 = vld [vmem:[#allocation5 + $0x1a8] sm:$0xff]
    %v150 = vld [vmem:[#allocation5 + $0x1b0] sm:$0xff]
    %v151 = vld [vmem:[#allocation5 + $0x1b8] sm:$0xff]
    %v152 = vld [vmem:[#allocation5 + $0x1c0] sm:$0xff]
    %v153 = vld [vmem:[#allocation5 + $0x1c8] sm:$0xff]
    %v154 = vld [vmem:[#allocation5 + $0x1d0] sm:$0xff]
    %v155 = vld [vmem:[#allocation5 + $0x1d8] sm:$0xff]
    %v156 = vld [vmem:[#allocation5 + $0x1e0] sm:$0xff]
    %v157 = vld [vmem:[#allocation5 + $0x1e8] sm:$0xff]
    %v158 = vld [vmem:[#allocation5 + $0x1f0] sm:$0xff]
    %v159 = vld [vmem:[#allocation5 + $0x1f8] sm:$0xff]
    %v160 = vld [vmem:[#allocation5 + $0x200] sm:$0xff]
    %v161 = vld [vmem:[#allocation5 + $0x208] sm:$0xff]
    %v162 = vld [vmem:[#allocation5 + $0x210] sm:$0xff]
    %v163 = vld [vmem:[#allocation5 + $0x218] sm:$0xff]
    %v164 = vld [vmem:[#allocation5 + $0x220] sm:$0xff]
    %v165 = vld [vmem:[#allocation5 + $0x228] sm:$0xff]
    %v166 = vld [vmem:[#allocation5 + $0x230] sm:$0xff]
    %v167 = vld [vmem:[#allocation5 + $0x238] sm:$0xff]
    %v168 = vld [vmem:[#allocation5 + $0x240] sm:$0xff]
    %v169 = vld [vmem:[#allocation5 + $0x248] sm:$0xff]
    %v170 = vld [vmem:[#allocation5 + $0x250] sm:$0xff]
    %v171 = vld [vmem:[#allocation5 + $0x258] sm:$0xff]
    %v172 = vld [vmem:[#allocation5 + $0x260] sm:$0xff]
    %v173 = vld [vmem:[#allocation5 + $0x268] sm:$0xff]
    %v174 = vld [vmem:[#allocation5 + $0x270] sm:$0xff]
    %v175 = vld [vmem:[#allocation5 + $0x278] sm:$0xff]
    %v176 = vld [vmem:[#allocation5 + $0x280] sm:$0xff]
    %v177 = vld [vmem:[#allocation5 + $0x288] sm:$0xff]
    %v178 = vld [vmem:[#allocation5 + $0x290] sm:$0xff]
    %v179 = vld [vmem:[#allocation5 + $0x298] sm:$0xff]
    %v180 = vld [vmem:[#allocation5 + $0x2a0] sm:$0xff]
    %v181 = vld [vmem:[#allocation5 + $0x2a8] sm:$0xff]
    %v182 = vld [vmem:[#allocation5 + $0x2b0] sm:$0xff]
    %v183 = vld [vmem:[#allocation5 + $0x2b8] sm:$0xff]
    %v184 = vld [vmem:[#allocation5 + $0x2c0] sm:$0xff]
    %v185 = vld [vmem:[#allocation5 + $0x2c8] sm:$0xff]
    %v186 = vld [vmem:[#allocation5 + $0x2d0] sm:$0xff]
    %v187 = vld [vmem:[#allocation5 + $0x2d8] sm:$0xff]
    %v188 = vld [vmem:[#allocation5 + $0x2e0] sm:$0xff]
    %v189 = vld [vmem:[#allocation5 + $0x2e8] sm:$0xff]
    %v190 = vld [vmem:[#allocation5 + $0x2f0] sm:$0xff]
    %v191 = vld [vmem:[#allocation5 + $0x2f8] sm:$0xff]
    %v192 = vld [vmem:[#allocation5 + $0x300] sm:$0xff]
    %v193 = vld [vmem:[#allocation5 + $0x308] sm:$0xff]
    %v194 = vld [vmem:[#allocation5 + $0x310] sm:$0xff]
    %v195 = vld [vmem:[#allocation5 + $0x318] sm:$0xff]
    %v196 = vld [vmem:[#allocation5 + $0x320] sm:$0xff]
    %v197 = vld [vmem:[#allocation5 + $0x328] sm:$0xff]
    %v198 = vld [vmem:[#allocation5 + $0x330] sm:$0xff]
    %v199 = vld [vmem:[#allocation5 + $0x338] sm:$0xff]
    %v200 = vld [vmem:[#allocation5 + $0x340] sm:$0xff]
    %v201 = vld [vmem:[#allocation5 + $0x348] sm:$0xff]
    %v202 = vld [vmem:[#allocation5 + $0x350] sm:$0xff]
    %v203 = vld [vmem:[#allocation5 + $0x358] sm:$0xff]
    %v204 = vld [vmem:[#allocation5 + $0x360] sm:$0xff]
    %v205 = vld [vmem:[#allocation5 + $0x368] sm:$0xff]
    %v206 = vld [vmem:[#allocation5 + $0x370] sm:$0xff]
    %v207 = vld [vmem:[#allocation5 + $0x378] sm:$0xff]
    %v208 = vld [vmem:[#allocation5 + $0x380] sm:$0xff]
    %v209 = vld [vmem:[#allocation5 + $0x388] sm:$0xff]
    %v210 = vld [vmem:[#allocation5 + $0x390] sm:$0xff]
    %v211 = vld [vmem:[#allocation5 + $0x398] sm:$0xff]
    %v212 = vld [vmem:[#allocation5 + $0x3a0] sm:$0xff]
    %v213 = vld [vmem:[#allocation5 + $0x3a8] sm:$0xff]
    %v214 = vld [vmem:[#allocation5 + $0x3b0] sm:$0xff]
    %v215 = vld [vmem:[#allocation5 + $0x3b8] sm:$0xff]
    %v216 = vld [vmem:[#allocation5 + $0x3c0] sm:$0xff]
    %v217 = vld [vmem:[#allocation5 + $0x3c8] sm:$0xff]
    %v218 = vld [vmem:[#allocation5 + $0x3d0] sm:$0xff]
    %v219 = vld [vmem:[#allocation5 + $0x3d8] sm:$0xff]
    %v220 = vld [vmem:[#allocation5 + $0x3e0] sm:$0xff]
    %v221 = vld [vmem:[#allocation5 + $0x3e8] sm:$0xff]
    %v222 = vld [vmem:[#allocation5 + $0x3f0] sm:$0xff]
    %v223 = vld [vmem:[#allocation5 + $0x3f8] sm:$0xff]
    %v224 = vld [vmem:[#allocation5 + $0x400] sm:$0xff]
    %v225 = vld [vmem:[#allocation5 + $0x408] sm:$0xff]
    %v226 = vld [vmem:[#allocation5 + $0x410] sm:$0xff]
    %v227 = vld [vmem:[#allocation5 + $0x418] sm:$0xff]
    %v228 = vld [vmem:[#allocation5 + $0x420] sm:$0xff]
    %v229 = vld [vmem:[#allocation5 + $0x428] sm:$0xff]
    %v230 = vld [vmem:[#allocation5 + $0x430] sm:$0xff]
    %v231 = vld [vmem:[#allocation5 + $0x438] sm:$0xff]
    %v232 = vld [vmem:[#allocation5 + $0x440] sm:$0xff]
    %v233 = vld [vmem:[#allocation5 + $0x448] sm:$0xff]
    %v234 = vld [vmem:[#allocation5 + $0x450] sm:$0xff]
    %v235 = vld [vmem:[#allocation5 + $0x458] sm:$0xff]
    %v236 = vld [vmem:[#allocation5 + $0x460] sm:$0xff]
    %v237 = vld [vmem:[#allocation5 + $0x468] sm:$0xff]
    %v238 = vld [vmem:[#allocation5 + $0x470] sm:$0xff]
    %v239 = vld [vmem:[#allocation5 + $0x478] sm:$0xff]
    %v240 = vld [vmem:[#allocation5 + $0x480] sm:$0xff]
    %v241 = vld [vmem:[#allocation5 + $0x488] sm:$0xff]
    %v242 = vld [vmem:[#allocation5 + $0x490] sm:$0xff]
    %v243 = vld [vmem:[#allocation5 + $0x498] sm:$0xff]
    %v244 = vld [vmem:[#allocation5 + $0x4a0] sm:$0xff]
    %v245 = vld [vmem:[#allocation5 + $0x4a8] sm:$0xff]
    %v246 = vld [vmem:[#allocation5 + $0x4b0] sm:$0xff]
    %v247 = vld [vmem:[#allocation5 + $0x4b8] sm:$0xff]
    %v248 = vld [vmem:[#allocation5 + $0x4c0] sm:$0xff]
    %v249 = vld [vmem:[#allocation5 + $0x4c8] sm:$0xff]
    %v250 = vld [vmem:[#allocation5 + $0x4d0] sm:$0xff]
    %v251 = vld [vmem:[#allocation5 + $0x4d8] sm:$0xff]
    %v252 = vld [vmem:[#allocation5 + $0x4e0] sm:$0xff]
    %v253 = vld [vmem:[#allocation5 + $0x4e8] sm:$0xff]
    %v254 = vld [vmem:[#allocation5 + $0x4f0] sm:$0xff]
    %v255 = vld [vmem:[#allocation5 + $0x4f8] sm:$0xff]
    %v256 = vld [vmem:[#allocation5 + $0x500] sm:$0xff]
    %v257 = vld [vmem:[#allocation5 + $0x508] sm:$0xff]
    %v258 = vld [vmem:[#allocation5 + $0x510] sm:$0xff]
    %v259 = vld [vmem:[#allocation5 + $0x518] sm:$0xff]
    %v260 = vld [vmem:[#allocation5 + $0x520] sm:$0xff]
    %v261 = vld [vmem:[#allocation5 + $0x528] sm:$0xff]
    %v262 = vld [vmem:[#allocation5 + $0x530] sm:$0xff]
    %v263 = vld [vmem:[#allocation5 + $0x538] sm:$0xff]
    %v264 = vld [vmem:[#allocation5 + $0x540] sm:$0xff]
    %v265 = vld [vmem:[#allocation5 + $0x548] sm:$0xff]
    %v266 = vld [vmem:[#allocation5 + $0x550] sm:$0xff]
    %v267 = vld [vmem:[#allocation5 + $0x558] sm:$0xff]
    %v268 = vld [vmem:[#allocation5 + $0x560] sm:$0xff]
    %v269 = vld [vmem:[#allocation5 + $0x568] sm:$0xff]
    %v270 = vld [vmem:[#allocation5 + $0x570] sm:$0xff]
    %v271 = vld [vmem:[#allocation5 + $0x578] sm:$0xff]
    %v272 = vld [vmem:[#allocation5 + $0x580] sm:$0xff]
    %v273 = vld [vmem:[#allocation5 + $0x588] sm:$0xff]
    %v274 = vld [vmem:[#allocation5 + $0x590] sm:$0xff]
    %v275 = vld [vmem:[#allocation5 + $0x598] sm:$0xff]
    %v276 = vld [vmem:[#allocation5 + $0x5a0] sm:$0xff]
    %v277 = vld [vmem:[#allocation5 + $0x5a8] sm:$0xff]
    %v278 = vld [vmem:[#allocation5 + $0x5b0] sm:$0xff]
    %v279 = vld [vmem:[#allocation5 + $0x5b8] sm:$0xff]
    %v280 = vld [vmem:[#allocation5 + $0x5c0] sm:$0xff]
    %v281 = vld [vmem:[#allocation5 + $0x5c8] sm:$0xff]
    %v282 = vld [vmem:[#allocation5 + $0x5d0] sm:$0xff]
    %v283 = vld [vmem:[#allocation5 + $0x5d8] sm:$0xff]
    %v284 = vld [vmem:[#allocation5 + $0x5e0] sm:$0xff]
    %v285 = vld [vmem:[#allocation5 + $0x5e8] sm:$0xff]
    %v286 = vld [vmem:[#allocation5 + $0x5f0] sm:$0xff]
    %v287 = vld [vmem:[#allocation5 + $0x5f8] sm:$0xff]
    %v288 = vld [vmem:[#allocation5 + $0x600] sm:$0xff]
    %v289 = vld [vmem:[#allocation5 + $0x608] sm:$0xff]
    %v290 = vld [vmem:[#allocation5 + $0x610] sm:$0xff]
    %v291 = vld [vmem:[#allocation5 + $0x618] sm:$0xff]
    %v292 = vld [vmem:[#allocation5 + $0x620] sm:$0xff]
    %v293 = vld [vmem:[#allocation5 + $0x628] sm:$0xff]
    %v294 = vld [vmem:[#allocation5 + $0x630] sm:$0xff]
    %v295 = vld [vmem:[#allocation5 + $0x638] sm:$0xff]
    %v296 = vld [vmem:[#allocation5 + $0x640] sm:$0xff]
    %v297 = vld [vmem:[#allocation5 + $0x648] sm:$0xff]
    %v298 = vld [vmem:[#allocation5 + $0x650] sm:$0xff]
    %v299 = vld [vmem:[#allocation5 + $0x658] sm:$0xff]
    %v300 = vld [vmem:[#allocation5 + $0x660] sm:$0xff]
    %v301 = vld [vmem:[#allocation5 + $0x668] sm:$0xff]
    %v302 = vld [vmem:[#allocation5 + $0x670] sm:$0xff]
    %v303 = vld [vmem:[#allocation5 + $0x678] sm:$0xff]
    %v304 = vld [vmem:[#allocation5 + $0x680] sm:$0xff]
    %v305 = vld [vmem:[#allocation5 + $0x688] sm:$0xff]
    %v306 = vld [vmem:[#allocation5 + $0x690] sm:$0xff]
    %v307 = vld [vmem:[#allocation5 + $0x698] sm:$0xff]
    %v308 = vld [vmem:[#allocation5 + $0x6a0] sm:$0xff]
    %v309 = vld [vmem:[#allocation5 + $0x6a8] sm:$0xff]
    %v310 = vld [vmem:[#allocation5 + $0x6b0] sm:$0xff]
    %v311 = vld [vmem:[#allocation5 + $0x6b8] sm:$0xff]
    %v312 = vld [vmem:[#allocation5 + $0x6c0] sm:$0xff]
    %v313 = vld [vmem:[#allocation5 + $0x6c8] sm:$0xff]
    %v314 = vld [vmem:[#allocation5 + $0x6d0] sm:$0xff]
    %v315 = vld [vmem:[#allocation5 + $0x6d8] sm:$0xff]
    %v316 = vld [vmem:[#allocation5 + $0x6e0] sm:$0xff]
    %v317 = vld [vmem:[#allocation5 + $0x6e8] sm:$0xff]
    %v318 = vld [vmem:[#allocation5 + $0x6f0] sm:$0xff]
    %v319 = vld [vmem:[#allocation5 + $0x6f8] sm:$0xff]
    %v320 = vld [vmem:[#allocation5 + $0x700] sm:$0xff]
    %v321 = vld [vmem:[#allocation5 + $0x708] sm:$0xff]
    %v322 = vld [vmem:[#allocation5 + $0x710] sm:$0xff]
    %v323 = vld [vmem:[#allocation5 + $0x718] sm:$0xff]
    %v324 = vld [vmem:[#allocation5 + $0x720] sm:$0xff]
    %v325 = vld [vmem:[#allocation5 + $0x728] sm:$0xff]
    %v326 = vld [vmem:[#allocation5 + $0x730] sm:$0xff]
    %v327 = vld [vmem:[#allocation5 + $0x738] sm:$0xff]
    %v328 = vld [vmem:[#allocation5 + $0x740] sm:$0xff]
    %v329 = vld [vmem:[#allocation5 + $0x748] sm:$0xff]
    %v330 = vld [vmem:[#allocation5 + $0x750] sm:$0xff]
    %v331 = vld [vmem:[#allocation5 + $0x758] sm:$0xff]
    %v332 = vld [vmem:[#allocation5 + $0x760] sm:$0xff]
    %v333 = vld [vmem:[#allocation5 + $0x768] sm:$0xff]
    %v334 = vld [vmem:[#allocation5 + $0x770] sm:$0xff]
    %v335 = vld [vmem:[#allocation5 + $0x778] sm:$0xff]
    %v336 = vld [vmem:[#allocation5 + $0x780] sm:$0xff]
    %v337 = vld [vmem:[#allocation5 + $0x788] sm:$0xff]
    %v338 = vld [vmem:[#allocation5 + $0x790] sm:$0xff]
    %v339 = vld [vmem:[#allocation5 + $0x798] sm:$0xff]
    %v340 = vld [vmem:[#allocation5 + $0x7a0] sm:$0xff]
    %v341 = vld [vmem:[#allocation5 + $0x7a8] sm:$0xff]
    %v342 = vld [vmem:[#allocation5 + $0x7b0] sm:$0xff]
    %v343 = vld [vmem:[#allocation5 + $0x7b8] sm:$0xff]
    %v344 = vld [vmem:[#allocation5 + $0x7c0] sm:$0xff]
    %v345 = vld [vmem:[#allocation5 + $0x7c8] sm:$0xff]
    %v346 = vld [vmem:[#allocation5 + $0x7d0] sm:$0xff]
    %v347 = vld [vmem:[#allocation5 + $0x7d8] sm:$0xff]
    %v348 = vld [vmem:[#allocation5 + $0x7e0] sm:$0xff]
    %v349 = vld [vmem:[#allocation5 + $0x7e8] sm:$0xff]
    %v350 = vld [vmem:[#allocation5 + $0x7f0] sm:$0xff]
    %v351 = vld [vmem:[#allocation5 + $0x7f8] sm:$0xff]
    %v352 = vld [vmem:[#allocation5 + $0x800] sm:$0xff]
    %v353 = vld [vmem:[#allocation5 + $0x808] sm:$0xff]
    %v354 = vld [vmem:[#allocation5 + $0x810] sm:$0xff]
    %v355 = vld [vmem:[#allocation5 + $0x818] sm:$0xff]
    %v356 = vld [vmem:[#allocation5 + $0x820] sm:$0xff]
    %v357 = vld [vmem:[#allocation5 + $0x828] sm:$0xff]
    %v358 = vld [vmem:[#allocation5 + $0x830] sm:$0xff]
    %v359 = vld [vmem:[#allocation5 + $0x838] sm:$0xff]
    %v360 = vld [vmem:[#allocation5 + $0x840] sm:$0xff]
    %v361 = vld [vmem:[#allocation5 + $0x848] sm:$0xff]
    %v362 = vld [vmem:[#allocation5 + $0x850] sm:$0xff]
    %v363 = vld [vmem:[#allocation5 + $0x858] sm:$0xff]
    %v364 = vld [vmem:[#allocation5 + $0x860] sm:$0xff]
    %v365 = vld [vmem:[#allocation5 + $0x868] sm:$0xff]
    %v366 = vld [vmem:[#allocation5 + $0x870] sm:$0xff]
    %v367 = vld [vmem:[#allocation5 + $0x878] sm:$0xff]
    %v368 = vld [vmem:[#allocation5 + $0x880] sm:$0xff]
    %v369 = vld [vmem:[#allocation5 + $0x888] sm:$0xff]
    %v370 = vld [vmem:[#allocation5 + $0x890] sm:$0xff]
    %v371 = vld [vmem:[#allocation5 + $0x898] sm:$0xff]
    %v372 = vld [vmem:[#allocation5 + $0x8a0] sm:$0xff]
    %v373 = vld [vmem:[#allocation5 + $0x8a8] sm:$0xff]
    %v374 = vld [vmem:[#allocation5 + $0x8b0] sm:$0xff]
    %v375 = vld [vmem:[#allocation5 + $0x8b8] sm:$0xff]
    %v376 = vld [vmem:[#allocation5 + $0x8c0] sm:$0xff]
    %v377 = vld [vmem:[#allocation5 + $0x8c8] sm:$0xff]
    %v378 = vld [vmem:[#allocation5 + $0x8d0] sm:$0xff]
    %v379 = vld [vmem:[#allocation5 + $0x8d8] sm:$0xff]
    %v380 = vld [vmem:[#allocation5 + $0x8e0] sm:$0xff]
    %v381 = vld [vmem:[#allocation5 + $0x8e8] sm:$0xff]
    %v382 = vld [vmem:[#allocation5 + $0x8f0] sm:$0xff]
    %v383 = vld [vmem:[#allocation5 + $0x8f8] sm:$0xff]
    %v384 = vld [vmem:[#allocation5 + $0x900] sm:$0xff]
    %v385 = vld [vmem:[#allocation5 + $0x908] sm:$0xff]
    %v386 = vld [vmem:[#allocation5 + $0x910] sm:$0xff]
    %v387 = vld [vmem:[#allocation5 + $0x918] sm:$0xff]
    %v388 = vld [vmem:[#allocation5 + $0x920] sm:$0xff]
    %v389 = vld [vmem:[#allocation5 + $0x928] sm:$0xff]
    %v390 = vld [vmem:[#allocation5 + $0x930] sm:$0xff]
    %v391 = vld [vmem:[#allocation5 + $0x938] sm:$0xff]
    %v392 = vld [vmem:[#allocation5 + $0x940] sm:$0xff]
    %v393 = vld [vmem:[#allocation5 + $0x948] sm:$0xff]
    %v394 = vld [vmem:[#allocation5 + $0x950] sm:$0xff]
    %v395 = vld [vmem:[#allocation5 + $0x958] sm:$0xff]
    %v396 = vld [vmem:[#allocation5 + $0x960] sm:$0xff]
    %v397 = vld [vmem:[#allocation5 + $0x968] sm:$0xff]
    %v398 = vld [vmem:[#allocation5 + $0x970] sm:$0xff]
    %v399 = vld [vmem:[#allocation5 + $0x978] sm:$0xff]
    %v400 = vld [vmem:[#allocation5 + $0x980] sm:$0xff]
    %v401 = vld [vmem:[#allocation5 + $0x988] sm:$0xff]
    %v402 = vld [vmem:[#allocation5 + $0x990] sm:$0xff]
    %v403 = vld [vmem:[#allocation5 + $0x998] sm:$0xff]
    %v404 = vld [vmem:[#allocation5 + $0x9a0] sm:$0xff]
    %v405 = vld [vmem:[#allocation5 + $0x9a8] sm:$0xff]
    %v406 = vld [vmem:[#allocation5 + $0x9b0] sm:$0xff]
    %v407 = vld [vmem:[#allocation5 + $0x9b8] sm:$0xff]
    %v408 = vld [vmem:[#allocation5 + $0x9c0] sm:$0xff]
    %v409 = vld [vmem:[#allocation5 + $0x9c8] sm:$0xff]
    %v410 = vld [vmem:[#allocation5 + $0x9d0] sm:$0xff]
    %v411 = vld [vmem:[#allocation5 + $0x9d8] sm:$0xff]
    %v412 = vld [vmem:[#allocation5 + $0x9e0] sm:$0xff]
    %v413 = vld [vmem:[#allocation5 + $0x9e8] sm:$0xff]
    %v414 = vld [vmem:[#allocation5 + $0x9f0] sm:$0xff]
    %v415 = vld [vmem:[#allocation5 + $0x9f8] sm:$0xff]
    %v416 = vld [vmem:[#allocation5 + $0xa00] sm:$0xff]
    %v417 = vld [vmem:[#allocation5 + $0xa08] sm:$0xff]
    %v418 = vld [vmem:[#allocation5 + $0xa10] sm:$0xff]
    %v419 = vld [vmem:[#allocation5 + $0xa18] sm:$0xff]
    %v420 = vld [vmem:[#allocation5 + $0xa20] sm:$0xff]
    %v421 = vld [vmem:[#allocation5 + $0xa28] sm:$0xff]
    %v422 = vld [vmem:[#allocation5 + $0xa30] sm:$0xff]
    %v423 = vld [vmem:[#allocation5 + $0xa38] sm:$0xff]
    %v424 = vld [vmem:[#allocation5 + $0xa40] sm:$0xff]
    %v425 = vld [vmem:[#allocation5 + $0xa48] sm:$0xff]
    %v426 = vld [vmem:[#allocation5 + $0xa50] sm:$0xff]
    %v427 = vld [vmem:[#allocation5 + $0xa58] sm:$0xff]
    %v428 = vld [vmem:[#allocation5 + $0xa60] sm:$0xff]
    %v429 = vld [vmem:[#allocation5 + $0xa68] sm:$0xff]
    %v430 = vld [vmem:[#allocation5 + $0xa70] sm:$0xff]
    %v431 = vld [vmem:[#allocation5 + $0xa78] sm:$0xff]
    %v432 = vld [vmem:[#allocation5 + $0xa80] sm:$0xff]
    %v433 = vld [vmem:[#allocation5 + $0xa88] sm:$0xff]
    %v434 = vld [vmem:[#allocation5 + $0xa90] sm:$0xff]
    %v435 = vld [vmem:[#allocation5 + $0xa98] sm:$0xff]
    %v436 = vld [vmem:[#allocation5 + $0xaa0] sm:$0xff]
    %v437 = vld [vmem:[#allocation5 + $0xaa8] sm:$0xff]
    %v438 = vld [vmem:[#allocation5 + $0xab0] sm:$0xff]
    %v439 = vld [vmem:[#allocation5 + $0xab8] sm:$0xff]
    %v440 = vld [vmem:[#allocation5 + $0xac0] sm:$0xff]
    %v441 = vld [vmem:[#allocation5 + $0xac8] sm:$0xff]
    %v442 = vld [vmem:[#allocation5 + $0xad0] sm:$0xff]
    %v443 = vld [vmem:[#allocation5 + $0xad8] sm:$0xff]
    %v444 = vld [vmem:[#allocation5 + $0xae0] sm:$0xff]
    %v445 = vld [vmem:[#allocation5 + $0xae8] sm:$0xff]
    %v446 = vld [vmem:[#allocation5 + $0xaf0] sm:$0xff]
    %v447 = vld [vmem:[#allocation5 + $0xaf8] sm:$0xff]
    %v448 = vld [vmem:[#allocation5 + $0xb00] sm:$0xff]
    %v449 = vld [vmem:[#allocation5 + $0xb08] sm:$0xff]
    %v450 = vld [vmem:[#allocation5 + $0xb10] sm:$0xff]
    %v451 = vld [vmem:[#allocation5 + $0xb18] sm:$0xff]
    %v452 = vld [vmem:[#allocation5 + $0xb20] sm:$0xff]
    %v453 = vld [vmem:[#allocation5 + $0xb28] sm:$0xff]
    %v454 = vld [vmem:[#allocation5 + $0xb30] sm:$0xff]
    %v455 = vld [vmem:[#allocation5 + $0xb38] sm:$0xff]
    %v456 = vld [vmem:[#allocation5 + $0xb40] sm:$0xff]
    %v457 = vld [vmem:[#allocation5 + $0xb48] sm:$0xff]
    %v458 = vld [vmem:[#allocation5 + $0xb50] sm:$0xff]
    %v459 = vld [vmem:[#allocation5 + $0xb58] sm:$0xff]
    %v460 = vld [vmem:[#allocation5 + $0xb60] sm:$0xff]
    %v461 = vld [vmem:[#allocation5 + $0xb68] sm:$0xff]
    %v462 = vld [vmem:[#allocation5 + $0xb70] sm:$0xff]
    %v463 = vld [vmem:[#allocation5 + $0xb78] sm:$0xff]
    %v464 = vld [vmem:[#allocation5 + $0xb80] sm:$0xff]
    %v465 = vld [vmem:[#allocation5 + $0xb88] sm:$0xff]
    %v466 = vld [vmem:[#allocation5 + $0xb90] sm:$0xff]
    %v467 = vld [vmem:[#allocation5 + $0xb98] sm:$0xff]
    %v468 = vld [vmem:[#allocation5 + $0xba0] sm:$0xff]
    %v469 = vld [vmem:[#allocation5 + $0xba8] sm:$0xff]
    %v470 = vld [vmem:[#allocation5 + $0xbb0] sm:$0xff]
    %v471 = vld [vmem:[#allocation5 + $0xbb8] sm:$0xff]
    %v472 = vld [vmem:[#allocation5 + $0xbc0] sm:$0xff]
    %v473 = vld [vmem:[#allocation5 + $0xbc8] sm:$0xff]
    %v474 = vld [vmem:[#allocation5 + $0xbd0] sm:$0xff]
    %v475 = vld [vmem:[#allocation5 + $0xbd8] sm:$0xff]
    %v476 = vld [vmem:[#allocation5 + $0xbe0] sm:$0xff]
    %v477 = vld [vmem:[#allocation5 + $0xbe8] sm:$0xff]
    %v478 = vld [vmem:[#allocation5 + $0xbf0] sm:$0xff]
    %v479 = vld [vmem:[#allocation5 + $0xbf8] sm:$0xff]
    %v480 = vld [vmem:[#allocation5 + $0xc00] sm:$0xff]
    %v481 = vld [vmem:[#allocation5 + $0xc08] sm:$0xff]
    %v482 = vld [vmem:[#allocation5 + $0xc10] sm:$0xff]
    %v483 = vld [vmem:[#allocation5 + $0xc18] sm:$0xff]
    %v484 = vld [vmem:[#allocation5 + $0xc20] sm:$0xff]
    %v485 = vld [vmem:[#allocation5 + $0xc28] sm:$0xff]
    %v486 = vld [vmem:[#allocation5 + $0xc30] sm:$0xff]
    %v487 = vld [vmem:[#allocation5 + $0xc38] sm:$0xff]
    %v488 = vld [vmem:[#allocation5 + $0xc40] sm:$0xff]
    %v489 = vld [vmem:[#allocation5 + $0xc48] sm:$0xff]
    %v490 = vld [vmem:[#allocation5 + $0xc50] sm:$0xff]
    %v491 = vld [vmem:[#allocation5 + $0xc58] sm:$0xff]
    %v492 = vld [vmem:[#allocation5 + $0xc60] sm:$0xff]
    %v493 = vld [vmem:[#allocation5 + $0xc68] sm:$0xff]
    %v494 = vld [vmem:[#allocation5 + $0xc70] sm:$0xff]
    %v495 = vld [vmem:[#allocation5 + $0xc78] sm:$0xff]
    %v496 = vld [vmem:[#allocation5 + $0xc80] sm:$0xff]
    %v497 = vld [vmem:[#allocation5 + $0xc88] sm:$0xff]
    %v498 = vld [vmem:[#allocation5 + $0xc90] sm:$0xff]
    %v499 = vld [vmem:[#allocation5 + $0xc98] sm:$0xff]
    %v500 = vld [vmem:[#allocation5 + $0xca0] sm:$0xff]
    %v501 = vld [vmem:[#allocation5 + $0xca8] sm:$0xff]
    %v502 = vld [vmem:[#allocation5 + $0xcb0] sm:$0xff]
    %v503 = vld [vmem:[#allocation5 + $0xcb8] sm:$0xff]
    %v504 = vld [vmem:[#allocation5 + $0xcc0] sm:$0xff]
    %v505 = vld [vmem:[#allocation5 + $0xcc8] sm:$0xff]
    %v506 = vld [vmem:[#allocation5 + $0xcd0] sm:$0xff]
    %v507 = vld [vmem:[#allocation5 + $0xcd8] sm:$0xff]
    %v508 = vld [vmem:[#allocation5 + $0xce0] sm:$0xff]
    %v509 = vld [vmem:[#allocation5 + $0xce8] sm:$0xff]
    %v510 = vld [vmem:[#allocation5 + $0xcf0] sm:$0xff]
    %v511 = vld [vmem:[#allocation5 + $0xcf8] sm:$0xff]
    %v512 = vld [vmem:[#allocation5 + $0xd00] sm:$0xff]
    %v513 = vld [vmem:[#allocation5 + $0xd08] sm:$0xff]
    %v514 = vld [vmem:[#allocation5 + $0xd10] sm:$0xff]
    %v515 = vld [vmem:[#allocation5 + $0xd18] sm:$0xff]
    %v516 = vld [vmem:[#allocation5 + $0xd20] sm:$0xff]
    %v517 = vld [vmem:[#allocation5 + $0xd28] sm:$0xff]
    %v518 = vld [vmem:[#allocation5 + $0xd30] sm:$0xff]
    %v519 = vld [vmem:[#allocation5 + $0xd38] sm:$0xff]
    %v520 = vld [vmem:[#allocation5 + $0xd40] sm:$0xff]
    %v521 = vld [vmem:[#allocation5 + $0xd48] sm:$0xff]
    %v522 = vld [vmem:[#allocation5 + $0xd50] sm:$0xff]
    %v523 = vld [vmem:[#allocation5 + $0xd58] sm:$0xff]
    %v524 = vld [vmem:[#allocation5 + $0xd60] sm:$0xff]
    %v525 = vld [vmem:[#allocation5 + $0xd68] sm:$0xff]
    %v526 = vld [vmem:[#allocation5 + $0xd70] sm:$0xff]
    %v527 = vld [vmem:[#allocation5 + $0xd78] sm:$0xff]
    %v528 = vld [vmem:[#allocation5 + $0xd80] sm:$0xff]
    %v529 = vld [vmem:[#allocation5 + $0xd88] sm:$0xff]
    %v530 = vld [vmem:[#allocation5 + $0xd90] sm:$0xff]
    %v531 = vld [vmem:[#allocation5 + $0xd98] sm:$0xff]
    %v532 = vld [vmem:[#allocation5 + $0xda0] sm:$0xff]
    %v533 = vld [vmem:[#allocation5 + $0xda8] sm:$0xff]
    %v534 = vld [vmem:[#allocation5 + $0xdb0] sm:$0xff]
    %v535 = vld [vmem:[#allocation5 + $0xdb8] sm:$0xff]
    %v536 = vld [vmem:[#allocation5 + $0xdc0] sm:$0xff]
    %v537 = vld [vmem:[#allocation5 + $0xdc8] sm:$0xff]
    %v538 = vld [vmem:[#allocation5 + $0xdd0] sm:$0xff]
    %v539 = vld [vmem:[#allocation5 + $0xdd8] sm:$0xff]
    %v540 = vld [vmem:[#allocation5 + $0xde0] sm:$0xff]
    %v541 = vld [vmem:[#allocation5 + $0xde8] sm:$0xff]
    %v542 = vld [vmem:[#allocation5 + $0xdf0] sm:$0xff]
    %v543 = vld [vmem:[#allocation5 + $0xdf8] sm:$0xff]
    %v544 = vld [vmem:[#allocation5 + $0xe00] sm:$0xff]
    %v545 = vld [vmem:[#allocation5 + $0xe08] sm:$0xff]
    %v546 = vld [vmem:[#allocation5 + $0xe10] sm:$0xff]
    %v547 = vld [vmem:[#allocation5 + $0xe18] sm:$0xff]
    %v548 = vld [vmem:[#allocation5 + $0xe20] sm:$0xff]
    %v549 = vld [vmem:[#allocation5 + $0xe28] sm:$0xff]
    %v550 = vld [vmem:[#allocation5 + $0xe30] sm:$0xff]
    %v551 = vld [vmem:[#allocation5 + $0xe38] sm:$0xff]
    %v552 = vld [vmem:[#allocation5 + $0xe40] sm:$0xff]
    %v553 = vld [vmem:[#allocation5 + $0xe48] sm:$0xff]
    %v554 = vld [vmem:[#allocation5 + $0xe50] sm:$0xff]
    %v555 = vld [vmem:[#allocation5 + $0xe58] sm:$0xff]
    %v556 = vld [vmem:[#allocation5 + $0xe60] sm:$0xff]
    %v557 = vld [vmem:[#allocation5 + $0xe68] sm:$0xff]
    %v558 = vld [vmem:[#allocation5 + $0xe70] sm:$0xff]
    %v559 = vld [vmem:[#allocation5 + $0xe78] sm:$0xff]
    %v560 = vld [vmem:[#allocation5 + $0xe80] sm:$0xff]
    %v561 = vld [vmem:[#allocation5 + $0xe88] sm:$0xff]
    %v562 = vld [vmem:[#allocation5 + $0xe90] sm:$0xff]
    %v563 = vld [vmem:[#allocation5 + $0xe98] sm:$0xff]
    %v564 = vld [vmem:[#allocation5 + $0xea0] sm:$0xff]
    %v565 = vld [vmem:[#allocation5 + $0xea8] sm:$0xff]
    %v566 = vld [vmem:[#allocation5 + $0xeb0] sm:$0xff]
    %v567 = vld [vmem:[#allocation5 + $0xeb8] sm:$0xff]
    %v568 = vld [vmem:[#allocation5 + $0xec0] sm:$0xff]
    %v569 = vld [vmem:[#allocation5 + $0xec8] sm:$0xff]
    %v570 = vld [vmem:[#allocation5 + $0xed0] sm:$0xff]
    %v571 = vld [vmem:[#allocation5 + $0xed8] sm:$0xff]
    %v572 = vld [vmem:[#allocation5 + $0xee0] sm:$0xff]
    %v573 = vld [vmem:[#allocation5 + $0xee8] sm:$0xff]
    %v574 = vld [vmem:[#allocation5 + $0xef0] sm:$0xff]
    %v575 = vld [vmem:[#allocation5 + $0xef8] sm:$0xff]
    %v576 = vld [vmem:[#allocation5 + $0xf00] sm:$0xff]
    %v577 = vld [vmem:[#allocation5 + $0xf08] sm:$0xff]
    %v578 = vld [vmem:[#allocation5 + $0xf10] sm:$0xff]
    %v579 = vld [vmem:[#allocation5 + $0xf18] sm:$0xff]
    %v580 = vld [vmem:[#allocation5 + $0xf20] sm:$0xff]
    %v581 = vld [vmem:[#allocation5 + $0xf28] sm:$0xff]
    %v582 = vld [vmem:[#allocation5 + $0xf30] sm:$0xff]
    %v583 = vld [vmem:[#allocation5 + $0xf38] sm:$0xff]
    %v584 = vld [vmem:[#allocation5 + $0xf40] sm:$0xff]
    %v585 = vld [vmem:[#allocation5 + $0xf48] sm:$0xff]
    %v586 = vld [vmem:[#allocation5 + $0xf50] sm:$0xff]
    %v587 = vld [vmem:[#allocation5 + $0xf58] sm:$0xff]
    %v588 = vld [vmem:[#allocation5 + $0xf60] sm:$0xff]
    %v589 = vld [vmem:[#allocation5 + $0xf68] sm:$0xff]
    %v590 = vld [vmem:[#allocation5 + $0xf70] sm:$0xff]
    %v591 = vld [vmem:[#allocation5 + $0xf78] sm:$0xff]
    %v592 = vld [vmem:[#allocation5 + $0xf80] sm:$0xff]
    %v593 = vld [vmem:[#allocation5 + $0xf88] sm:$0xff]
    %v594 = vld [vmem:[#allocation5 + $0xf90] sm:$0xff]
    %v595 = vld [vmem:[#allocation5 + $0xf98] sm:$0xff]
    %v596 = vld [vmem:[#allocation5 + $0xfa0] sm:$0xff]
    %v597 = vld [vmem:[#allocation5 + $0xfa8] sm:$0xff]
    %v598 = vld [vmem:[#allocation5 + $0xfb0] sm:$0xff]
    %v599 = vld [vmem:[#allocation5 + $0xfb8] sm:$0xff]
    %v600 = vld [vmem:[#allocation5 + $0xfc0] sm:$0xff]
    %v601 = vld [vmem:[#allocation5 + $0xfc8] sm:$0xff]
    %v602 = vld [vmem:[#allocation5 + $0xfd0] sm:$0xff]
    %v603 = vld [vmem:[#allocation5 + $0xfd8] sm:$0xff]
    %v604 = vld [vmem:[#allocation5 + $0xfe0] sm:$0xff]
    %v605 = vld [vmem:[#allocation5 + $0xfe8] sm:$0xff]
    %v606 = vld [vmem:[#allocation5 + $0xff0] sm:$0xff]
    %v607 = vld [vmem:[#allocation5 + $0xff8] sm:$0xff]
    %v608 = vld [vmem:[#allocation7] sm:$0xff]
    %v610 = vlaneseq
    %v611 = vshrl.u32 %v610, 7
    %v612 = vsub.s32 0, %v611
    %v613 = vrot.slane %v608, %v612
    %v614 = vlaneseq
    %v615 = vshrl.u32 %v614, 7
    %v616 = vsub.s32 1, %v615
    %v617 = vrot.slane %v608, %v616
    %v618 = vlaneseq
    %v619 = vshrl.u32 %v618, 7
    %v620 = vsub.s32 2, %v619
    %v621 = vrot.slane %v608, %v620
    %v622 = vlaneseq
    %v623 = vshrl.u32 %v622, 7
    %v624 = vsub.s32 3, %v623
    %v625 = vrot.slane %v608, %v624
    %v626 = vlaneseq
    %v627 = vshrl.u32 %v626, 7
    %v628 = vsub.s32 4, %v627
    %v629 = vrot.slane %v608, %v628
    %v630 = vlaneseq
    %v631 = vshrl.u32 %v630, 7
    %v632 = vsub.s32 5, %v631
    %v633 = vrot.slane %v608, %v632
    %v634 = vlaneseq
    %v635 = vshrl.u32 %v634, 7
    %v636 = vsub.s32 6, %v635
    %v637 = vrot.slane %v608, %v636
    %v638 = vlaneseq
    %v639 = vshrl.u32 %v638, 7
    %v640 = vsub.s32 7, %v639
    %v641 = vrot.slane %v608, %v640
    %v1162 = vunpack.c.l.b16 %v96
    %v1163 = vunpack.c.h.b16 %v96
    %v1164 = vunpack.c.l.b16 %v97
    %v1165 = vunpack.c.h.b16 %v97
    %v1166 = vunpack.c.l.b16 %v98
    %v1167 = vunpack.c.h.b16 %v98
    %v1168 = vunpack.c.l.b16 %v99
    %v1169 = vunpack.c.h.b16 %v99
    %v1170 = vunpack.c.l.b16 %v100
    %v1171 = vunpack.c.h.b16 %v100
    %v1172 = vunpack.c.l.b16 %v101
    %v1173 = vunpack.c.h.b16 %v101
    %v1174 = vunpack.c.l.b16 %v102
    %v1175 = vunpack.c.h.b16 %v102
    %v1176 = vunpack.c.l.b16 %v103
    %v1177 = vunpack.c.h.b16 %v103
    %v1178 = vunpack.c.l.b16 %v104
    %v1179 = vunpack.c.h.b16 %v104
    %v1180 = vunpack.c.l.b16 %v105
    %v1181 = vunpack.c.h.b16 %v105
    %v1182 = vunpack.c.l.b16 %v106
    %v1183 = vunpack.c.h.b16 %v106
    %v1184 = vunpack.c.l.b16 %v107
    %v1185 = vunpack.c.h.b16 %v107
    %v1186 = vunpack.c.l.b16 %v108
    %v1187 = vunpack.c.h.b16 %v108
    %v1188 = vunpack.c.l.b16 %v109
    %v1189 = vunpack.c.h.b16 %v109
    %v1190 = vunpack.c.l.b16 %v110
    %v1191 = vunpack.c.h.b16 %v110
    %v1192 = vunpack.c.l.b16 %v111
    %v1193 = vunpack.c.h.b16 %v111
    %v1194 = vunpack.c.l.b16 %v112
    %v1195 = vunpack.c.h.b16 %v112
    %v1196 = vunpack.c.l.b16 %v113
    %v1197 = vunpack.c.h.b16 %v113
    %v1198 = vunpack.c.l.b16 %v114
    %v1199 = vunpack.c.h.b16 %v114
    %v1200 = vunpack.c.l.b16 %v115
    %v1201 = vunpack.c.h.b16 %v115
    %v1202 = vunpack.c.l.b16 %v116
    %v1203 = vunpack.c.h.b16 %v116
    %v1204 = vunpack.c.l.b16 %v117
    %v1205 = vunpack.c.h.b16 %v117
    %v1206 = vunpack.c.l.b16 %v118
    %v1207 = vunpack.c.h.b16 %v118
    %v1208 = vunpack.c.l.b16 %v119
    %v1209 = vunpack.c.h.b16 %v119
    %v1210 = vunpack.c.l.b16 %v120
    %v1211 = vunpack.c.h.b16 %v120
    %v1212 = vunpack.c.l.b16 %v121
    %v1213 = vunpack.c.h.b16 %v121
    %v1214 = vunpack.c.l.b16 %v122
    %v1215 = vunpack.c.h.b16 %v122
    %v1216 = vunpack.c.l.b16 %v123
    %v1217 = vunpack.c.h.b16 %v123
    %v1218 = vunpack.c.l.b16 %v124
    %v1219 = vunpack.c.h.b16 %v124
    %v1220 = vunpack.c.l.b16 %v125
    %v1221 = vunpack.c.h.b16 %v125
    %v1222 = vunpack.c.l.b16 %v126
    %v1223 = vunpack.c.h.b16 %v126
    %v1224 = vunpack.c.l.b16 %v127
    %v1225 = vunpack.c.h.b16 %v127
    %v1226 = vunpack.c.l.b16 %v128
    %v1227 = vunpack.c.h.b16 %v128
    %v1228 = vunpack.c.l.b16 %v129
    %v1229 = vunpack.c.h.b16 %v129
    %v1230 = vunpack.c.l.b16 %v130
    %v1231 = vunpack.c.h.b16 %v130
    %v1232 = vunpack.c.l.b16 %v131
    %v1233 = vunpack.c.h.b16 %v131
    %v1234 = vunpack.c.l.b16 %v132
    %v1235 = vunpack.c.h.b16 %v132
    %v1236 = vunpack.c.l.b16 %v133
    %v1237 = vunpack.c.h.b16 %v133
    %v1238 = vunpack.c.l.b16 %v134
    %v1239 = vunpack.c.h.b16 %v134
    %v1240 = vunpack.c.l.b16 %v135
    %v1241 = vunpack.c.h.b16 %v135
    %v1242 = vunpack.c.l.b16 %v136
    %v1243 = vunpack.c.h.b16 %v136
    %v1244 = vunpack.c.l.b16 %v137
    %v1245 = vunpack.c.h.b16 %v137
    %v1246 = vunpack.c.l.b16 %v138
    %v1247 = vunpack.c.h.b16 %v138
    %v1248 = vunpack.c.l.b16 %v139
    %v1249 = vunpack.c.h.b16 %v139
    %v1250 = vunpack.c.l.b16 %v140
    %v1251 = vunpack.c.h.b16 %v140
    %v1252 = vunpack.c.l.b16 %v141
    %v1253 = vunpack.c.h.b16 %v141
    %v1254 = vunpack.c.l.b16 %v142
    %v1255 = vunpack.c.h.b16 %v142
    %v1256 = vunpack.c.l.b16 %v143
    %v1257 = vunpack.c.h.b16 %v143
    %v1258 = vunpack.c.l.b16 %v144
    %v1259 = vunpack.c.h.b16 %v144
    %v1260 = vunpack.c.l.b16 %v145
    %v1261 = vunpack.c.h.b16 %v145
    %v1262 = vunpack.c.l.b16 %v146
    %v1263 = vunpack.c.h.b16 %v146
    %v1264 = vunpack.c.l.b16 %v147
    %v1265 = vunpack.c.h.b16 %v147
    %v1266 = vunpack.c.l.b16 %v148
    %v1267 = vunpack.c.h.b16 %v148
    %v1268 = vunpack.c.l.b16 %v149
    %v1269 = vunpack.c.h.b16 %v149
    %v1270 = vunpack.c.l.b16 %v150
    %v1271 = vunpack.c.h.b16 %v150
    %v1272 = vunpack.c.l.b16 %v151
    %v1273 = vunpack.c.h.b16 %v151
    %v1274 = vunpack.c.l.b16 %v152
    %v1275 = vunpack.c.h.b16 %v152
    %v1276 = vunpack.c.l.b16 %v153
    %v1277 = vunpack.c.h.b16 %v153
    %v1278 = vunpack.c.l.b16 %v154
    %v1279 = vunpack.c.h.b16 %v154
    %v1280 = vunpack.c.l.b16 %v155
    %v1281 = vunpack.c.h.b16 %v155
    %v1282 = vunpack.c.l.b16 %v156
    %v1283 = vunpack.c.h.b16 %v156
    %v1284 = vunpack.c.l.b16 %v157
    %v1285 = vunpack.c.h.b16 %v157
    %v1286 = vunpack.c.l.b16 %v158
    %v1287 = vunpack.c.h.b16 %v158
    %v1288 = vunpack.c.l.b16 %v159
    %v1289 = vunpack.c.h.b16 %v159
    %v1290 = vunpack.c.l.b16 %v160
    %v1291 = vunpack.c.h.b16 %v160
    %v1292 = vunpack.c.l.b16 %v161
    %v1293 = vunpack.c.h.b16 %v161
    %v1294 = vunpack.c.l.b16 %v162
    %v1295 = vunpack.c.h.b16 %v162
    %v1296 = vunpack.c.l.b16 %v163
    %v1297 = vunpack.c.h.b16 %v163
    %v1298 = vunpack.c.l.b16 %v164
    %v1299 = vunpack.c.h.b16 %v164
    %v1300 = vunpack.c.l.b16 %v165
    %v1301 = vunpack.c.h.b16 %v165
    %v1302 = vunpack.c.l.b16 %v166
    %v1303 = vunpack.c.h.b16 %v166
    %v1304 = vunpack.c.l.b16 %v167
    %v1305 = vunpack.c.h.b16 %v167
    %v1306 = vunpack.c.l.b16 %v168
    %v1307 = vunpack.c.h.b16 %v168
    %v1308 = vunpack.c.l.b16 %v169
    %v1309 = vunpack.c.h.b16 %v169
    %v1310 = vunpack.c.l.b16 %v170
    %v1311 = vunpack.c.h.b16 %v170
    %v1312 = vunpack.c.l.b16 %v171
    %v1313 = vunpack.c.h.b16 %v171
    %v1314 = vunpack.c.l.b16 %v172
    %v1315 = vunpack.c.h.b16 %v172
    %v1316 = vunpack.c.l.b16 %v173
    %v1317 = vunpack.c.h.b16 %v173
    %v1318 = vunpack.c.l.b16 %v174
    %v1319 = vunpack.c.h.b16 %v174
    %v1320 = vunpack.c.l.b16 %v175
    %v1321 = vunpack.c.h.b16 %v175
    %v1322 = vunpack.c.l.b16 %v176
    %v1323 = vunpack.c.h.b16 %v176
    %v1324 = vunpack.c.l.b16 %v177
    %v1325 = vunpack.c.h.b16 %v177
    %v1326 = vunpack.c.l.b16 %v178
    %v1327 = vunpack.c.h.b16 %v178
    %v1328 = vunpack.c.l.b16 %v179
    %v1329 = vunpack.c.h.b16 %v179
    %v1330 = vunpack.c.l.b16 %v180
    %v1331 = vunpack.c.h.b16 %v180
    %v1332 = vunpack.c.l.b16 %v181
    %v1333 = vunpack.c.h.b16 %v181
    %v1334 = vunpack.c.l.b16 %v182
    %v1335 = vunpack.c.h.b16 %v182
    %v1336 = vunpack.c.l.b16 %v183
    %v1337 = vunpack.c.h.b16 %v183
    %v1338 = vunpack.c.l.b16 %v184
    %v1339 = vunpack.c.h.b16 %v184
    %v1340 = vunpack.c.l.b16 %v185
    %v1341 = vunpack.c.h.b16 %v185
    %v1342 = vunpack.c.l.b16 %v186
    %v1343 = vunpack.c.h.b16 %v186
    %v1344 = vunpack.c.l.b16 %v187
    %v1345 = vunpack.c.h.b16 %v187
    %v1346 = vunpack.c.l.b16 %v188
    %v1347 = vunpack.c.h.b16 %v188
    %v1348 = vunpack.c.l.b16 %v189
    %v1349 = vunpack.c.h.b16 %v189
    %v1350 = vunpack.c.l.b16 %v190
    %v1351 = vunpack.c.h.b16 %v190
    %v1352 = vunpack.c.l.b16 %v191
    %v1353 = vunpack.c.h.b16 %v191
    %v1354 = vunpack.c.l.b16 %v192
    %v1355 = vunpack.c.h.b16 %v192
    %v1356 = vunpack.c.l.b16 %v193
    %v1357 = vunpack.c.h.b16 %v193
    %v1358 = vunpack.c.l.b16 %v194
    %v1359 = vunpack.c.h.b16 %v194
    %v1360 = vunpack.c.l.b16 %v195
    %v1361 = vunpack.c.h.b16 %v195
    %v1362 = vunpack.c.l.b16 %v196
    %v1363 = vunpack.c.h.b16 %v196
    %v1364 = vunpack.c.l.b16 %v197
    %v1365 = vunpack.c.h.b16 %v197
    %v1366 = vunpack.c.l.b16 %v198
    %v1367 = vunpack.c.h.b16 %v198
    %v1368 = vunpack.c.l.b16 %v199
    %v1369 = vunpack.c.h.b16 %v199
    %v1370 = vunpack.c.l.b16 %v200
    %v1371 = vunpack.c.h.b16 %v200
    %v1372 = vunpack.c.l.b16 %v201
    %v1373 = vunpack.c.h.b16 %v201
    %v1374 = vunpack.c.l.b16 %v202
    %v1375 = vunpack.c.h.b16 %v202
    %v1376 = vunpack.c.l.b16 %v203
    %v1377 = vunpack.c.h.b16 %v203
    %v1378 = vunpack.c.l.b16 %v204
    %v1379 = vunpack.c.h.b16 %v204
    %v1380 = vunpack.c.l.b16 %v205
    %v1381 = vunpack.c.h.b16 %v205
    %v1382 = vunpack.c.l.b16 %v206
    %v1383 = vunpack.c.h.b16 %v206
    %v1384 = vunpack.c.l.b16 %v207
    %v1385 = vunpack.c.h.b16 %v207
    %v1386 = vunpack.c.l.b16 %v208
    %v1387 = vunpack.c.h.b16 %v208
    %v1388 = vunpack.c.l.b16 %v209
    %v1389 = vunpack.c.h.b16 %v209
    %v1390 = vunpack.c.l.b16 %v210
    %v1391 = vunpack.c.h.b16 %v210
    %v1392 = vunpack.c.l.b16 %v211
    %v1393 = vunpack.c.h.b16 %v211
    %v1394 = vunpack.c.l.b16 %v212
    %v1395 = vunpack.c.h.b16 %v212
    %v1396 = vunpack.c.l.b16 %v213
    %v1397 = vunpack.c.h.b16 %v213
    %v1398 = vunpack.c.l.b16 %v214
    %v1399 = vunpack.c.h.b16 %v214
    %v1400 = vunpack.c.l.b16 %v215
    %v1401 = vunpack.c.h.b16 %v215
    %v1402 = vunpack.c.l.b16 %v216
    %v1403 = vunpack.c.h.b16 %v216
    %v1404 = vunpack.c.l.b16 %v217
    %v1405 = vunpack.c.h.b16 %v217
    %v1406 = vunpack.c.l.b16 %v218
    %v1407 = vunpack.c.h.b16 %v218
    %v1408 = vunpack.c.l.b16 %v219
    %v1409 = vunpack.c.h.b16 %v219
    %v1410 = vunpack.c.l.b16 %v220
    %v1411 = vunpack.c.h.b16 %v220
    %v1412 = vunpack.c.l.b16 %v221
    %v1413 = vunpack.c.h.b16 %v221
    %v1414 = vunpack.c.l.b16 %v222
    %v1415 = vunpack.c.h.b16 %v222
    %v1416 = vunpack.c.l.b16 %v223
    %v1417 = vunpack.c.h.b16 %v223
    %v1418 = vunpack.c.l.b16 %v224
    %v1419 = vunpack.c.h.b16 %v224
    %v1420 = vunpack.c.l.b16 %v225
    %v1421 = vunpack.c.h.b16 %v225
    %v1422 = vunpack.c.l.b16 %v226
    %v1423 = vunpack.c.h.b16 %v226
    %v1424 = vunpack.c.l.b16 %v227
    %v1425 = vunpack.c.h.b16 %v227
    %v1426 = vunpack.c.l.b16 %v228
    %v1427 = vunpack.c.h.b16 %v228
    %v1428 = vunpack.c.l.b16 %v229
    %v1429 = vunpack.c.h.b16 %v229
    %v1430 = vunpack.c.l.b16 %v230
    %v1431 = vunpack.c.h.b16 %v230
    %v1432 = vunpack.c.l.b16 %v231
    %v1433 = vunpack.c.h.b16 %v231
    %v1434 = vunpack.c.l.b16 %v232
    %v1435 = vunpack.c.h.b16 %v232
    %v1436 = vunpack.c.l.b16 %v233
    %v1437 = vunpack.c.h.b16 %v233
    %v1438 = vunpack.c.l.b16 %v234
    %v1439 = vunpack.c.h.b16 %v234
    %v1440 = vunpack.c.l.b16 %v235
    %v1441 = vunpack.c.h.b16 %v235
    %v1442 = vunpack.c.l.b16 %v236
    %v1443 = vunpack.c.h.b16 %v236
    %v1444 = vunpack.c.l.b16 %v237
    %v1445 = vunpack.c.h.b16 %v237
    %v1446 = vunpack.c.l.b16 %v238
    %v1447 = vunpack.c.h.b16 %v238
    %v1448 = vunpack.c.l.b16 %v239
    %v1449 = vunpack.c.h.b16 %v239
    %v1450 = vunpack.c.l.b16 %v240
    %v1451 = vunpack.c.h.b16 %v240
    %v1452 = vunpack.c.l.b16 %v241
    %v1453 = vunpack.c.h.b16 %v241
    %v1454 = vunpack.c.l.b16 %v242
    %v1455 = vunpack.c.h.b16 %v242
    %v1456 = vunpack.c.l.b16 %v243
    %v1457 = vunpack.c.h.b16 %v243
    %v1458 = vunpack.c.l.b16 %v244
    %v1459 = vunpack.c.h.b16 %v244
    %v1460 = vunpack.c.l.b16 %v245
    %v1461 = vunpack.c.h.b16 %v245
    %v1462 = vunpack.c.l.b16 %v246
    %v1463 = vunpack.c.h.b16 %v246
    %v1464 = vunpack.c.l.b16 %v247
    %v1465 = vunpack.c.h.b16 %v247
    %v1466 = vunpack.c.l.b16 %v248
    %v1467 = vunpack.c.h.b16 %v248
    %v1468 = vunpack.c.l.b16 %v249
    %v1469 = vunpack.c.h.b16 %v249
    %v1470 = vunpack.c.l.b16 %v250
    %v1471 = vunpack.c.h.b16 %v250
    %v1472 = vunpack.c.l.b16 %v251
    %v1473 = vunpack.c.h.b16 %v251
    %v1474 = vunpack.c.l.b16 %v252
    %v1475 = vunpack.c.h.b16 %v252
    %v1476 = vunpack.c.l.b16 %v253
    %v1477 = vunpack.c.h.b16 %v253
    %v1478 = vunpack.c.l.b16 %v254
    %v1479 = vunpack.c.h.b16 %v254
    %v1480 = vunpack.c.l.b16 %v255
    %v1481 = vunpack.c.h.b16 %v255
    %v1482 = vunpack.c.l.b16 %v256
    %v1483 = vunpack.c.h.b16 %v256
    %v1484 = vunpack.c.l.b16 %v257
    %v1485 = vunpack.c.h.b16 %v257
    %v1486 = vunpack.c.l.b16 %v258
    %v1487 = vunpack.c.h.b16 %v258
    %v1488 = vunpack.c.l.b16 %v259
    %v1489 = vunpack.c.h.b16 %v259
    %v1490 = vunpack.c.l.b16 %v260
    %v1491 = vunpack.c.h.b16 %v260
    %v1492 = vunpack.c.l.b16 %v261
    %v1493 = vunpack.c.h.b16 %v261
    %v1494 = vunpack.c.l.b16 %v262
    %v1495 = vunpack.c.h.b16 %v262
    %v1496 = vunpack.c.l.b16 %v263
    %v1497 = vunpack.c.h.b16 %v263
    %v1498 = vunpack.c.l.b16 %v264
    %v1499 = vunpack.c.h.b16 %v264
    %v1500 = vunpack.c.l.b16 %v265
    %v1501 = vunpack.c.h.b16 %v265
    %v1502 = vunpack.c.l.b16 %v266
    %v1503 = vunpack.c.h.b16 %v266
    %v1504 = vunpack.c.l.b16 %v267
    %v1505 = vunpack.c.h.b16 %v267
    %v1506 = vunpack.c.l.b16 %v268
    %v1507 = vunpack.c.h.b16 %v268
    %v1508 = vunpack.c.l.b16 %v269
    %v1509 = vunpack.c.h.b16 %v269
    %v1510 = vunpack.c.l.b16 %v270
    %v1511 = vunpack.c.h.b16 %v270
    %v1512 = vunpack.c.l.b16 %v271
    %v1513 = vunpack.c.h.b16 %v271
    %v1514 = vunpack.c.l.b16 %v272
    %v1515 = vunpack.c.h.b16 %v272
    %v1516 = vunpack.c.l.b16 %v273
    %v1517 = vunpack.c.h.b16 %v273
    %v1518 = vunpack.c.l.b16 %v274
    %v1519 = vunpack.c.h.b16 %v274
    %v1520 = vunpack.c.l.b16 %v275
    %v1521 = vunpack.c.h.b16 %v275
    %v1522 = vunpack.c.l.b16 %v276
    %v1523 = vunpack.c.h.b16 %v276
    %v1524 = vunpack.c.l.b16 %v277
    %v1525 = vunpack.c.h.b16 %v277
    %v1526 = vunpack.c.l.b16 %v278
    %v1527 = vunpack.c.h.b16 %v278
    %v1528 = vunpack.c.l.b16 %v279
    %v1529 = vunpack.c.h.b16 %v279
    %v1530 = vunpack.c.l.b16 %v280
    %v1531 = vunpack.c.h.b16 %v280
    %v1532 = vunpack.c.l.b16 %v281
    %v1533 = vunpack.c.h.b16 %v281
    %v1534 = vunpack.c.l.b16 %v282
    %v1535 = vunpack.c.h.b16 %v282
    %v1536 = vunpack.c.l.b16 %v283
    %v1537 = vunpack.c.h.b16 %v283
    %v1538 = vunpack.c.l.b16 %v284
    %v1539 = vunpack.c.h.b16 %v284
    %v1540 = vunpack.c.l.b16 %v285
    %v1541 = vunpack.c.h.b16 %v285
    %v1542 = vunpack.c.l.b16 %v286
    %v1543 = vunpack.c.h.b16 %v286
    %v1544 = vunpack.c.l.b16 %v287
    %v1545 = vunpack.c.h.b16 %v287
    %v1546 = vunpack.c.l.b16 %v288
    %v1547 = vunpack.c.h.b16 %v288
    %v1548 = vunpack.c.l.b16 %v289
    %v1549 = vunpack.c.h.b16 %v289
    %v1550 = vunpack.c.l.b16 %v290
    %v1551 = vunpack.c.h.b16 %v290
    %v1552 = vunpack.c.l.b16 %v291
    %v1553 = vunpack.c.h.b16 %v291
    %v1554 = vunpack.c.l.b16 %v292
    %v1555 = vunpack.c.h.b16 %v292
    %v1556 = vunpack.c.l.b16 %v293
    %v1557 = vunpack.c.h.b16 %v293
    %v1558 = vunpack.c.l.b16 %v294
    %v1559 = vunpack.c.h.b16 %v294
    %v1560 = vunpack.c.l.b16 %v295
    %v1561 = vunpack.c.h.b16 %v295
    %v1562 = vunpack.c.l.b16 %v296
    %v1563 = vunpack.c.h.b16 %v296
    %v1564 = vunpack.c.l.b16 %v297
    %v1565 = vunpack.c.h.b16 %v297
    %v1566 = vunpack.c.l.b16 %v298
    %v1567 = vunpack.c.h.b16 %v298
    %v1568 = vunpack.c.l.b16 %v299
    %v1569 = vunpack.c.h.b16 %v299
    %v1570 = vunpack.c.l.b16 %v300
    %v1571 = vunpack.c.h.b16 %v300
    %v1572 = vunpack.c.l.b16 %v301
    %v1573 = vunpack.c.h.b16 %v301
    %v1574 = vunpack.c.l.b16 %v302
    %v1575 = vunpack.c.h.b16 %v302
    %v1576 = vunpack.c.l.b16 %v303
    %v1577 = vunpack.c.h.b16 %v303
    %v1578 = vunpack.c.l.b16 %v304
    %v1579 = vunpack.c.h.b16 %v304
    %v1580 = vunpack.c.l.b16 %v305
    %v1581 = vunpack.c.h.b16 %v305
    %v1582 = vunpack.c.l.b16 %v306
    %v1583 = vunpack.c.h.b16 %v306
    %v1584 = vunpack.c.l.b16 %v307
    %v1585 = vunpack.c.h.b16 %v307
    %v1586 = vunpack.c.l.b16 %v308
    %v1587 = vunpack.c.h.b16 %v308
    %v1588 = vunpack.c.l.b16 %v309
    %v1589 = vunpack.c.h.b16 %v309
    %v1590 = vunpack.c.l.b16 %v310
    %v1591 = vunpack.c.h.b16 %v310
    %v1592 = vunpack.c.l.b16 %v311
    %v1593 = vunpack.c.h.b16 %v311
    %v1594 = vunpack.c.l.b16 %v312
    %v1595 = vunpack.c.h.b16 %v312
    %v1596 = vunpack.c.l.b16 %v313
    %v1597 = vunpack.c.h.b16 %v313
    %v1598 = vunpack.c.l.b16 %v314
    %v1599 = vunpack.c.h.b16 %v314
    %v1600 = vunpack.c.l.b16 %v315
    %v1601 = vunpack.c.h.b16 %v315
    %v1602 = vunpack.c.l.b16 %v316
    %v1603 = vunpack.c.h.b16 %v316
    %v1604 = vunpack.c.l.b16 %v317
    %v1605 = vunpack.c.h.b16 %v317
    %v1606 = vunpack.c.l.b16 %v318
    %v1607 = vunpack.c.h.b16 %v318
    %v1608 = vunpack.c.l.b16 %v319
    %v1609 = vunpack.c.h.b16 %v319
    %v1610 = vunpack.c.l.b16 %v320
    %v1611 = vunpack.c.h.b16 %v320
    %v1612 = vunpack.c.l.b16 %v321
    %v1613 = vunpack.c.h.b16 %v321
    %v1614 = vunpack.c.l.b16 %v322
    %v1615 = vunpack.c.h.b16 %v322
    %v1616 = vunpack.c.l.b16 %v323
    %v1617 = vunpack.c.h.b16 %v323
    %v1618 = vunpack.c.l.b16 %v324
    %v1619 = vunpack.c.h.b16 %v324
    %v1620 = vunpack.c.l.b16 %v325
    %v1621 = vunpack.c.h.b16 %v325
    %v1622 = vunpack.c.l.b16 %v326
    %v1623 = vunpack.c.h.b16 %v326
    %v1624 = vunpack.c.l.b16 %v327
    %v1625 = vunpack.c.h.b16 %v327
    %v1626 = vunpack.c.l.b16 %v328
    %v1627 = vunpack.c.h.b16 %v328
    %v1628 = vunpack.c.l.b16 %v329
    %v1629 = vunpack.c.h.b16 %v329
    %v1630 = vunpack.c.l.b16 %v330
    %v1631 = vunpack.c.h.b16 %v330
    %v1632 = vunpack.c.l.b16 %v331
    %v1633 = vunpack.c.h.b16 %v331
    %v1634 = vunpack.c.l.b16 %v332
    %v1635 = vunpack.c.h.b16 %v332
    %v1636 = vunpack.c.l.b16 %v333
    %v1637 = vunpack.c.h.b16 %v333
    %v1638 = vunpack.c.l.b16 %v334
    %v1639 = vunpack.c.h.b16 %v334
    %v1640 = vunpack.c.l.b16 %v335
    %v1641 = vunpack.c.h.b16 %v335
    %v1642 = vunpack.c.l.b16 %v336
    %v1643 = vunpack.c.h.b16 %v336
    %v1644 = vunpack.c.l.b16 %v337
    %v1645 = vunpack.c.h.b16 %v337
    %v1646 = vunpack.c.l.b16 %v338
    %v1647 = vunpack.c.h.b16 %v338
    %v1648 = vunpack.c.l.b16 %v339
    %v1649 = vunpack.c.h.b16 %v339
    %v1650 = vunpack.c.l.b16 %v340
    %v1651 = vunpack.c.h.b16 %v340
    %v1652 = vunpack.c.l.b16 %v341
    %v1653 = vunpack.c.h.b16 %v341
    %v1654 = vunpack.c.l.b16 %v342
    %v1655 = vunpack.c.h.b16 %v342
    %v1656 = vunpack.c.l.b16 %v343
    %v1657 = vunpack.c.h.b16 %v343
    %v1658 = vunpack.c.l.b16 %v344
    %v1659 = vunpack.c.h.b16 %v344
    %v1660 = vunpack.c.l.b16 %v345
    %v1661 = vunpack.c.h.b16 %v345
    %v1662 = vunpack.c.l.b16 %v346
    %v1663 = vunpack.c.h.b16 %v346
    %v1664 = vunpack.c.l.b16 %v347
    %v1665 = vunpack.c.h.b16 %v347
    %v1666 = vunpack.c.l.b16 %v348
    %v1667 = vunpack.c.h.b16 %v348
    %v1668 = vunpack.c.l.b16 %v349
    %v1669 = vunpack.c.h.b16 %v349
    %v1670 = vunpack.c.l.b16 %v350
    %v1671 = vunpack.c.h.b16 %v350
    %v1672 = vunpack.c.l.b16 %v351
    %v1673 = vunpack.c.h.b16 %v351
    %v1674 = vunpack.c.l.b16 %v352
    %v1675 = vunpack.c.h.b16 %v352
    %v1676 = vunpack.c.l.b16 %v353
    %v1677 = vunpack.c.h.b16 %v353
    %v1678 = vunpack.c.l.b16 %v354
    %v1679 = vunpack.c.h.b16 %v354
    %v1680 = vunpack.c.l.b16 %v355
    %v1681 = vunpack.c.h.b16 %v355
    %v1682 = vunpack.c.l.b16 %v356
    %v1683 = vunpack.c.h.b16 %v356
    %v1684 = vunpack.c.l.b16 %v357
    %v1685 = vunpack.c.h.b16 %v357
    %v1686 = vunpack.c.l.b16 %v358
    %v1687 = vunpack.c.h.b16 %v358
    %v1688 = vunpack.c.l.b16 %v359
    %v1689 = vunpack.c.h.b16 %v359
    %v1690 = vunpack.c.l.b16 %v360
    %v1691 = vunpack.c.h.b16 %v360
    %v1692 = vunpack.c.l.b16 %v361
    %v1693 = vunpack.c.h.b16 %v361
    %v1694 = vunpack.c.l.b16 %v362
    %v1695 = vunpack.c.h.b16 %v362
    %v1696 = vunpack.c.l.b16 %v363
    %v1697 = vunpack.c.h.b16 %v363
    %v1698 = vunpack.c.l.b16 %v364
    %v1699 = vunpack.c.h.b16 %v364
    %v1700 = vunpack.c.l.b16 %v365
    %v1701 = vunpack.c.h.b16 %v365
    %v1702 = vunpack.c.l.b16 %v366
    %v1703 = vunpack.c.h.b16 %v366
    %v1704 = vunpack.c.l.b16 %v367
    %v1705 = vunpack.c.h.b16 %v367
    %v1706 = vunpack.c.l.b16 %v368
    %v1707 = vunpack.c.h.b16 %v368
    %v1708 = vunpack.c.l.b16 %v369
    %v1709 = vunpack.c.h.b16 %v369
    %v1710 = vunpack.c.l.b16 %v370
    %v1711 = vunpack.c.h.b16 %v370
    %v1712 = vunpack.c.l.b16 %v371
    %v1713 = vunpack.c.h.b16 %v371
    %v1714 = vunpack.c.l.b16 %v372
    %v1715 = vunpack.c.h.b16 %v372
    %v1716 = vunpack.c.l.b16 %v373
    %v1717 = vunpack.c.h.b16 %v373
    %v1718 = vunpack.c.l.b16 %v374
    %v1719 = vunpack.c.h.b16 %v374
    %v1720 = vunpack.c.l.b16 %v375
    %v1721 = vunpack.c.h.b16 %v375
    %v1722 = vunpack.c.l.b16 %v376
    %v1723 = vunpack.c.h.b16 %v376
    %v1724 = vunpack.c.l.b16 %v377
    %v1725 = vunpack.c.h.b16 %v377
    %v1726 = vunpack.c.l.b16 %v378
    %v1727 = vunpack.c.h.b16 %v378
    %v1728 = vunpack.c.l.b16 %v379
    %v1729 = vunpack.c.h.b16 %v379
    %v1730 = vunpack.c.l.b16 %v380
    %v1731 = vunpack.c.h.b16 %v380
    %v1732 = vunpack.c.l.b16 %v381
    %v1733 = vunpack.c.h.b16 %v381
    %v1734 = vunpack.c.l.b16 %v382
    %v1735 = vunpack.c.h.b16 %v382
    %v1736 = vunpack.c.l.b16 %v383
    %v1737 = vunpack.c.h.b16 %v383
    %v1738 = vunpack.c.l.b16 %v384
    %v1739 = vunpack.c.h.b16 %v384
    %v1740 = vunpack.c.l.b16 %v385
    %v1741 = vunpack.c.h.b16 %v385
    %v1742 = vunpack.c.l.b16 %v386
    %v1743 = vunpack.c.h.b16 %v386
    %v1744 = vunpack.c.l.b16 %v387
    %v1745 = vunpack.c.h.b16 %v387
    %v1746 = vunpack.c.l.b16 %v388
    %v1747 = vunpack.c.h.b16 %v388
    %v1748 = vunpack.c.l.b16 %v389
    %v1749 = vunpack.c.h.b16 %v389
    %v1750 = vunpack.c.l.b16 %v390
    %v1751 = vunpack.c.h.b16 %v390
    %v1752 = vunpack.c.l.b16 %v391
    %v1753 = vunpack.c.h.b16 %v391
    %v1754 = vunpack.c.l.b16 %v392
    %v1755 = vunpack.c.h.b16 %v392
    %v1756 = vunpack.c.l.b16 %v393
    %v1757 = vunpack.c.h.b16 %v393
    %v1758 = vunpack.c.l.b16 %v394
    %v1759 = vunpack.c.h.b16 %v394
    %v1760 = vunpack.c.l.b16 %v395
    %v1761 = vunpack.c.h.b16 %v395
    %v1762 = vunpack.c.l.b16 %v396
    %v1763 = vunpack.c.h.b16 %v396
    %v1764 = vunpack.c.l.b16 %v397
    %v1765 = vunpack.c.h.b16 %v397
    %v1766 = vunpack.c.l.b16 %v398
    %v1767 = vunpack.c.h.b16 %v398
    %v1768 = vunpack.c.l.b16 %v399
    %v1769 = vunpack.c.h.b16 %v399
    %v1770 = vunpack.c.l.b16 %v400
    %v1771 = vunpack.c.h.b16 %v400
    %v1772 = vunpack.c.l.b16 %v401
    %v1773 = vunpack.c.h.b16 %v401
    %v1774 = vunpack.c.l.b16 %v402
    %v1775 = vunpack.c.h.b16 %v402
    %v1776 = vunpack.c.l.b16 %v403
    %v1777 = vunpack.c.h.b16 %v403
    %v1778 = vunpack.c.l.b16 %v404
    %v1779 = vunpack.c.h.b16 %v404
    %v1780 = vunpack.c.l.b16 %v405
    %v1781 = vunpack.c.h.b16 %v405
    %v1782 = vunpack.c.l.b16 %v406
    %v1783 = vunpack.c.h.b16 %v406
    %v1784 = vunpack.c.l.b16 %v407
    %v1785 = vunpack.c.h.b16 %v407
    %v1786 = vunpack.c.l.b16 %v408
    %v1787 = vunpack.c.h.b16 %v408
    %v1788 = vunpack.c.l.b16 %v409
    %v1789 = vunpack.c.h.b16 %v409
    %v1790 = vunpack.c.l.b16 %v410
    %v1791 = vunpack.c.h.b16 %v410
    %v1792 = vunpack.c.l.b16 %v411
    %v1793 = vunpack.c.h.b16 %v411
    %v1794 = vunpack.c.l.b16 %v412
    %v1795 = vunpack.c.h.b16 %v412
    %v1796 = vunpack.c.l.b16 %v413
    %v1797 = vunpack.c.h.b16 %v413
    %v1798 = vunpack.c.l.b16 %v414
    %v1799 = vunpack.c.h.b16 %v414
    %v1800 = vunpack.c.l.b16 %v415
    %v1801 = vunpack.c.h.b16 %v415
    %v1802 = vunpack.c.l.b16 %v416
    %v1803 = vunpack.c.h.b16 %v416
    %v1804 = vunpack.c.l.b16 %v417
    %v1805 = vunpack.c.h.b16 %v417
    %v1806 = vunpack.c.l.b16 %v418
    %v1807 = vunpack.c.h.b16 %v418
    %v1808 = vunpack.c.l.b16 %v419
    %v1809 = vunpack.c.h.b16 %v419
    %v1810 = vunpack.c.l.b16 %v420
    %v1811 = vunpack.c.h.b16 %v420
    %v1812 = vunpack.c.l.b16 %v421
    %v1813 = vunpack.c.h.b16 %v421
    %v1814 = vunpack.c.l.b16 %v422
    %v1815 = vunpack.c.h.b16 %v422
    %v1816 = vunpack.c.l.b16 %v423
    %v1817 = vunpack.c.h.b16 %v423
    %v1818 = vunpack.c.l.b16 %v424
    %v1819 = vunpack.c.h.b16 %v424
    %v1820 = vunpack.c.l.b16 %v425
    %v1821 = vunpack.c.h.b16 %v425
    %v1822 = vunpack.c.l.b16 %v426
    %v1823 = vunpack.c.h.b16 %v426
    %v1824 = vunpack.c.l.b16 %v427
    %v1825 = vunpack.c.h.b16 %v427
    %v1826 = vunpack.c.l.b16 %v428
    %v1827 = vunpack.c.h.b16 %v428
    %v1828 = vunpack.c.l.b16 %v429
    %v1829 = vunpack.c.h.b16 %v429
    %v1830 = vunpack.c.l.b16 %v430
    %v1831 = vunpack.c.h.b16 %v430
    %v1832 = vunpack.c.l.b16 %v431
    %v1833 = vunpack.c.h.b16 %v431
    %v1834 = vunpack.c.l.b16 %v432
    %v1835 = vunpack.c.h.b16 %v432
    %v1836 = vunpack.c.l.b16 %v433
    %v1837 = vunpack.c.h.b16 %v433
    %v1838 = vunpack.c.l.b16 %v434
    %v1839 = vunpack.c.h.b16 %v434
    %v1840 = vunpack.c.l.b16 %v435
    %v1841 = vunpack.c.h.b16 %v435
    %v1842 = vunpack.c.l.b16 %v436
    %v1843 = vunpack.c.h.b16 %v436
    %v1844 = vunpack.c.l.b16 %v437
    %v1845 = vunpack.c.h.b16 %v437
    %v1846 = vunpack.c.l.b16 %v438
    %v1847 = vunpack.c.h.b16 %v438
    %v1848 = vunpack.c.l.b16 %v439
    %v1849 = vunpack.c.h.b16 %v439
    %v1850 = vunpack.c.l.b16 %v440
    %v1851 = vunpack.c.h.b16 %v440
    %v1852 = vunpack.c.l.b16 %v441
    %v1853 = vunpack.c.h.b16 %v441
    %v1854 = vunpack.c.l.b16 %v442
    %v1855 = vunpack.c.h.b16 %v442
    %v1856 = vunpack.c.l.b16 %v443
    %v1857 = vunpack.c.h.b16 %v443
    %v1858 = vunpack.c.l.b16 %v444
    %v1859 = vunpack.c.h.b16 %v444
    %v1860 = vunpack.c.l.b16 %v445
    %v1861 = vunpack.c.h.b16 %v445
    %v1862 = vunpack.c.l.b16 %v446
    %v1863 = vunpack.c.h.b16 %v446
    %v1864 = vunpack.c.l.b16 %v447
    %v1865 = vunpack.c.h.b16 %v447
    %v1866 = vunpack.c.l.b16 %v448
    %v1867 = vunpack.c.h.b16 %v448
    %v1868 = vunpack.c.l.b16 %v449
    %v1869 = vunpack.c.h.b16 %v449
    %v1870 = vunpack.c.l.b16 %v450
    %v1871 = vunpack.c.h.b16 %v450
    %v1872 = vunpack.c.l.b16 %v451
    %v1873 = vunpack.c.h.b16 %v451
    %v1874 = vunpack.c.l.b16 %v452
    %v1875 = vunpack.c.h.b16 %v452
    %v1876 = vunpack.c.l.b16 %v453
    %v1877 = vunpack.c.h.b16 %v453
    %v1878 = vunpack.c.l.b16 %v454
    %v1879 = vunpack.c.h.b16 %v454
    %v1880 = vunpack.c.l.b16 %v455
    %v1881 = vunpack.c.h.b16 %v455
    %v1882 = vunpack.c.l.b16 %v456
    %v1883 = vunpack.c.h.b16 %v456
    %v1884 = vunpack.c.l.b16 %v457
    %v1885 = vunpack.c.h.b16 %v457
    %v1886 = vunpack.c.l.b16 %v458
    %v1887 = vunpack.c.h.b16 %v458
    %v1888 = vunpack.c.l.b16 %v459
    %v1889 = vunpack.c.h.b16 %v459
    %v1890 = vunpack.c.l.b16 %v460
    %v1891 = vunpack.c.h.b16 %v460
    %v1892 = vunpack.c.l.b16 %v461
    %v1893 = vunpack.c.h.b16 %v461
    %v1894 = vunpack.c.l.b16 %v462
    %v1895 = vunpack.c.h.b16 %v462
    %v1896 = vunpack.c.l.b16 %v463
    %v1897 = vunpack.c.h.b16 %v463
    %v1898 = vunpack.c.l.b16 %v464
    %v1899 = vunpack.c.h.b16 %v464
    %v1900 = vunpack.c.l.b16 %v465
    %v1901 = vunpack.c.h.b16 %v465
    %v1902 = vunpack.c.l.b16 %v466
    %v1903 = vunpack.c.h.b16 %v466
    %v1904 = vunpack.c.l.b16 %v467
    %v1905 = vunpack.c.h.b16 %v467
    %v1906 = vunpack.c.l.b16 %v468
    %v1907 = vunpack.c.h.b16 %v468
    %v1908 = vunpack.c.l.b16 %v469
    %v1909 = vunpack.c.h.b16 %v469
    %v1910 = vunpack.c.l.b16 %v470
    %v1911 = vunpack.c.h.b16 %v470
    %v1912 = vunpack.c.l.b16 %v471
    %v1913 = vunpack.c.h.b16 %v471
    %v1914 = vunpack.c.l.b16 %v472
    %v1915 = vunpack.c.h.b16 %v472
    %v1916 = vunpack.c.l.b16 %v473
    %v1917 = vunpack.c.h.b16 %v473
    %v1918 = vunpack.c.l.b16 %v474
    %v1919 = vunpack.c.h.b16 %v474
    %v1920 = vunpack.c.l.b16 %v475
    %v1921 = vunpack.c.h.b16 %v475
    %v1922 = vunpack.c.l.b16 %v476
    %v1923 = vunpack.c.h.b16 %v476
    %v1924 = vunpack.c.l.b16 %v477
    %v1925 = vunpack.c.h.b16 %v477
    %v1926 = vunpack.c.l.b16 %v478
    %v1927 = vunpack.c.h.b16 %v478
    %v1928 = vunpack.c.l.b16 %v479
    %v1929 = vunpack.c.h.b16 %v479
    %v1930 = vunpack.c.l.b16 %v480
    %v1931 = vunpack.c.h.b16 %v480
    %v1932 = vunpack.c.l.b16 %v481
    %v1933 = vunpack.c.h.b16 %v481
    %v1934 = vunpack.c.l.b16 %v482
    %v1935 = vunpack.c.h.b16 %v482
    %v1936 = vunpack.c.l.b16 %v483
    %v1937 = vunpack.c.h.b16 %v483
    %v1938 = vunpack.c.l.b16 %v484
    %v1939 = vunpack.c.h.b16 %v484
    %v1940 = vunpack.c.l.b16 %v485
    %v1941 = vunpack.c.h.b16 %v485
    %v1942 = vunpack.c.l.b16 %v486
    %v1943 = vunpack.c.h.b16 %v486
    %v1944 = vunpack.c.l.b16 %v487
    %v1945 = vunpack.c.h.b16 %v487
    %v1946 = vunpack.c.l.b16 %v488
    %v1947 = vunpack.c.h.b16 %v488
    %v1948 = vunpack.c.l.b16 %v489
    %v1949 = vunpack.c.h.b16 %v489
    %v1950 = vunpack.c.l.b16 %v490
    %v1951 = vunpack.c.h.b16 %v490
    %v1952 = vunpack.c.l.b16 %v491
    %v1953 = vunpack.c.h.b16 %v491
    %v1954 = vunpack.c.l.b16 %v492
    %v1955 = vunpack.c.h.b16 %v492
    %v1956 = vunpack.c.l.b16 %v493
    %v1957 = vunpack.c.h.b16 %v493
    %v1958 = vunpack.c.l.b16 %v494
    %v1959 = vunpack.c.h.b16 %v494
    %v1960 = vunpack.c.l.b16 %v495
    %v1961 = vunpack.c.h.b16 %v495
    %v1962 = vunpack.c.l.b16 %v496
    %v1963 = vunpack.c.h.b16 %v496
    %v1964 = vunpack.c.l.b16 %v497
    %v1965 = vunpack.c.h.b16 %v497
    %v1966 = vunpack.c.l.b16 %v498
    %v1967 = vunpack.c.h.b16 %v498
    %v1968 = vunpack.c.l.b16 %v499
    %v1969 = vunpack.c.h.b16 %v499
    %v1970 = vunpack.c.l.b16 %v500
    %v1971 = vunpack.c.h.b16 %v500
    %v1972 = vunpack.c.l.b16 %v501
    %v1973 = vunpack.c.h.b16 %v501
    %v1974 = vunpack.c.l.b16 %v502
    %v1975 = vunpack.c.h.b16 %v502
    %v1976 = vunpack.c.l.b16 %v503
    %v1977 = vunpack.c.h.b16 %v503
    %v1978 = vunpack.c.l.b16 %v504
    %v1979 = vunpack.c.h.b16 %v504
    %v1980 = vunpack.c.l.b16 %v505
    %v1981 = vunpack.c.h.b16 %v505
    %v1982 = vunpack.c.l.b16 %v506
    %v1983 = vunpack.c.h.b16 %v506
    %v1984 = vunpack.c.l.b16 %v507
    %v1985 = vunpack.c.h.b16 %v507
    %v1986 = vunpack.c.l.b16 %v508
    %v1987 = vunpack.c.h.b16 %v508
    %v1988 = vunpack.c.l.b16 %v509
    %v1989 = vunpack.c.h.b16 %v509
    %v1990 = vunpack.c.l.b16 %v510
    %v1991 = vunpack.c.h.b16 %v510
    %v1992 = vunpack.c.l.b16 %v511
    %v1993 = vunpack.c.h.b16 %v511
    %v1994 = vunpack.c.l.b16 %v512
    %v1995 = vunpack.c.h.b16 %v512
    %v1996 = vunpack.c.l.b16 %v513
    %v1997 = vunpack.c.h.b16 %v513
    %v1998 = vunpack.c.l.b16 %v514
    %v1999 = vunpack.c.h.b16 %v514
    %v2000 = vunpack.c.l.b16 %v515
    %v2001 = vunpack.c.h.b16 %v515
    %v2002 = vunpack.c.l.b16 %v516
    %v2003 = vunpack.c.h.b16 %v516
    %v2004 = vunpack.c.l.b16 %v517
    %v2005 = vunpack.c.h.b16 %v517
    %v2006 = vunpack.c.l.b16 %v518
    %v2007 = vunpack.c.h.b16 %v518
    %v2008 = vunpack.c.l.b16 %v519
    %v2009 = vunpack.c.h.b16 %v519
    %v2010 = vunpack.c.l.b16 %v520
    %v2011 = vunpack.c.h.b16 %v520
    %v2012 = vunpack.c.l.b16 %v521
    %v2013 = vunpack.c.h.b16 %v521
    %v2014 = vunpack.c.l.b16 %v522
    %v2015 = vunpack.c.h.b16 %v522
    %v2016 = vunpack.c.l.b16 %v523
    %v2017 = vunpack.c.h.b16 %v523
    %v2018 = vunpack.c.l.b16 %v524
    %v2019 = vunpack.c.h.b16 %v524
    %v2020 = vunpack.c.l.b16 %v525
    %v2021 = vunpack.c.h.b16 %v525
    %v2022 = vunpack.c.l.b16 %v526
    %v2023 = vunpack.c.h.b16 %v526
    %v2024 = vunpack.c.l.b16 %v527
    %v2025 = vunpack.c.h.b16 %v527
    %v2026 = vunpack.c.l.b16 %v528
    %v2027 = vunpack.c.h.b16 %v528
    %v2028 = vunpack.c.l.b16 %v529
    %v2029 = vunpack.c.h.b16 %v529
    %v2030 = vunpack.c.l.b16 %v530
    %v2031 = vunpack.c.h.b16 %v530
    %v2032 = vunpack.c.l.b16 %v531
    %v2033 = vunpack.c.h.b16 %v531
    %v2034 = vunpack.c.l.b16 %v532
    %v2035 = vunpack.c.h.b16 %v532
    %v2036 = vunpack.c.l.b16 %v533
    %v2037 = vunpack.c.h.b16 %v533
    %v2038 = vunpack.c.l.b16 %v534
    %v2039 = vunpack.c.h.b16 %v534
    %v2040 = vunpack.c.l.b16 %v535
    %v2041 = vunpack.c.h.b16 %v535
    %v2042 = vunpack.c.l.b16 %v536
    %v2043 = vunpack.c.h.b16 %v536
    %v2044 = vunpack.c.l.b16 %v537
    %v2045 = vunpack.c.h.b16 %v537
    %v2046 = vunpack.c.l.b16 %v538
    %v2047 = vunpack.c.h.b16 %v538
    %v2048 = vunpack.c.l.b16 %v539
    %v2049 = vunpack.c.h.b16 %v539
    %v2050 = vunpack.c.l.b16 %v540
    %v2051 = vunpack.c.h.b16 %v540
    %v2052 = vunpack.c.l.b16 %v541
    %v2053 = vunpack.c.h.b16 %v541
    %v2054 = vunpack.c.l.b16 %v542
    %v2055 = vunpack.c.h.b16 %v542
    %v2056 = vunpack.c.l.b16 %v543
    %v2057 = vunpack.c.h.b16 %v543
    %v2058 = vunpack.c.l.b16 %v544
    %v2059 = vunpack.c.h.b16 %v544
    %v2060 = vunpack.c.l.b16 %v545
    %v2061 = vunpack.c.h.b16 %v545
    %v2062 = vunpack.c.l.b16 %v546
    %v2063 = vunpack.c.h.b16 %v546
    %v2064 = vunpack.c.l.b16 %v547
    %v2065 = vunpack.c.h.b16 %v547
    %v2066 = vunpack.c.l.b16 %v548
    %v2067 = vunpack.c.h.b16 %v548
    %v2068 = vunpack.c.l.b16 %v549
    %v2069 = vunpack.c.h.b16 %v549
    %v2070 = vunpack.c.l.b16 %v550
    %v2071 = vunpack.c.h.b16 %v550
    %v2072 = vunpack.c.l.b16 %v551
    %v2073 = vunpack.c.h.b16 %v551
    %v2074 = vunpack.c.l.b16 %v552
    %v2075 = vunpack.c.h.b16 %v552
    %v2076 = vunpack.c.l.b16 %v553
    %v2077 = vunpack.c.h.b16 %v553
    %v2078 = vunpack.c.l.b16 %v554
    %v2079 = vunpack.c.h.b16 %v554
    %v2080 = vunpack.c.l.b16 %v555
    %v2081 = vunpack.c.h.b16 %v555
    %v2082 = vunpack.c.l.b16 %v556
    %v2083 = vunpack.c.h.b16 %v556
    %v2084 = vunpack.c.l.b16 %v557
    %v2085 = vunpack.c.h.b16 %v557
    %v2086 = vunpack.c.l.b16 %v558
    %v2087 = vunpack.c.h.b16 %v558
    %v2088 = vunpack.c.l.b16 %v559
    %v2089 = vunpack.c.h.b16 %v559
    %v2090 = vunpack.c.l.b16 %v560
    %v2091 = vunpack.c.h.b16 %v560
    %v2092 = vunpack.c.l.b16 %v561
    %v2093 = vunpack.c.h.b16 %v561
    %v2094 = vunpack.c.l.b16 %v562
    %v2095 = vunpack.c.h.b16 %v562
    %v2096 = vunpack.c.l.b16 %v563
    %v2097 = vunpack.c.h.b16 %v563
    %v2098 = vunpack.c.l.b16 %v564
    %v2099 = vunpack.c.h.b16 %v564
    %v2100 = vunpack.c.l.b16 %v565
    %v2101 = vunpack.c.h.b16 %v565
    %v2102 = vunpack.c.l.b16 %v566
    %v2103 = vunpack.c.h.b16 %v566
    %v2104 = vunpack.c.l.b16 %v567
    %v2105 = vunpack.c.h.b16 %v567
    %v2106 = vunpack.c.l.b16 %v568
    %v2107 = vunpack.c.h.b16 %v568
    %v2108 = vunpack.c.l.b16 %v569
    %v2109 = vunpack.c.h.b16 %v569
    %v2110 = vunpack.c.l.b16 %v570
    %v2111 = vunpack.c.h.b16 %v570
    %v2112 = vunpack.c.l.b16 %v571
    %v2113 = vunpack.c.h.b16 %v571
    %v2114 = vunpack.c.l.b16 %v572
    %v2115 = vunpack.c.h.b16 %v572
    %v2116 = vunpack.c.l.b16 %v573
    %v2117 = vunpack.c.h.b16 %v573
    %v2118 = vunpack.c.l.b16 %v574
    %v2119 = vunpack.c.h.b16 %v574
    %v2120 = vunpack.c.l.b16 %v575
    %v2121 = vunpack.c.h.b16 %v575
    %v2122 = vunpack.c.l.b16 %v576
    %v2123 = vunpack.c.h.b16 %v576
    %v2124 = vunpack.c.l.b16 %v577
    %v2125 = vunpack.c.h.b16 %v577
    %v2126 = vunpack.c.l.b16 %v578
    %v2127 = vunpack.c.h.b16 %v578
    %v2128 = vunpack.c.l.b16 %v579
    %v2129 = vunpack.c.h.b16 %v579
    %v2130 = vunpack.c.l.b16 %v580
    %v2131 = vunpack.c.h.b16 %v580
    %v2132 = vunpack.c.l.b16 %v581
    %v2133 = vunpack.c.h.b16 %v581
    %v2134 = vunpack.c.l.b16 %v582
    %v2135 = vunpack.c.h.b16 %v582
    %v2136 = vunpack.c.l.b16 %v583
    %v2137 = vunpack.c.h.b16 %v583
    %v2138 = vunpack.c.l.b16 %v584
    %v2139 = vunpack.c.h.b16 %v584
    %v2140 = vunpack.c.l.b16 %v585
    %v2141 = vunpack.c.h.b16 %v585
    %v2142 = vunpack.c.l.b16 %v586
    %v2143 = vunpack.c.h.b16 %v586
    %v2144 = vunpack.c.l.b16 %v587
    %v2145 = vunpack.c.h.b16 %v587
    %v2146 = vunpack.c.l.b16 %v588
    %v2147 = vunpack.c.h.b16 %v588
    %v2148 = vunpack.c.l.b16 %v589
    %v2149 = vunpack.c.h.b16 %v589
    %v2150 = vunpack.c.l.b16 %v590
    %v2151 = vunpack.c.h.b16 %v590
    %v2152 = vunpack.c.l.b16 %v591
    %v2153 = vunpack.c.h.b16 %v591
    %v2154 = vunpack.c.l.b16 %v592
    %v2155 = vunpack.c.h.b16 %v592
    %v2156 = vunpack.c.l.b16 %v593
    %v2157 = vunpack.c.h.b16 %v593
    %v2158 = vunpack.c.l.b16 %v594
    %v2159 = vunpack.c.h.b16 %v594
    %v2160 = vunpack.c.l.b16 %v595
    %v2161 = vunpack.c.h.b16 %v595
    %v2162 = vunpack.c.l.b16 %v596
    %v2163 = vunpack.c.h.b16 %v596
    %v2164 = vunpack.c.l.b16 %v597
    %v2165 = vunpack.c.h.b16 %v597
    %v2166 = vunpack.c.l.b16 %v598
    %v2167 = vunpack.c.h.b16 %v598
    %v2168 = vunpack.c.l.b16 %v599
    %v2169 = vunpack.c.h.b16 %v599
    %v2170 = vunpack.c.l.b16 %v600
    %v2171 = vunpack.c.h.b16 %v600
    %v2172 = vunpack.c.l.b16 %v601
    %v2173 = vunpack.c.h.b16 %v601
    %v2174 = vunpack.c.l.b16 %v602
    %v2175 = vunpack.c.h.b16 %v602
    %v2176 = vunpack.c.l.b16 %v603
    %v2177 = vunpack.c.h.b16 %v603
    %v2178 = vunpack.c.l.b16 %v604
    %v2179 = vunpack.c.h.b16 %v604
    %v2180 = vunpack.c.l.b16 %v605
    %v2181 = vunpack.c.h.b16 %v605
    %v2182 = vunpack.c.l.b16 %v606
    %v2183 = vunpack.c.h.b16 %v606
    %v2184 = vunpack.c.l.b16 %v607
    %v2185 = vunpack.c.h.b16 %v607
    %v2186 = vpack.c.b16 %v1170, %v1162
    %v2187 = vpack.c.b16 %v1171, %v1163
    %v2188 = vpack.c.b16 %v1172, %v1164
    %v2189 = vpack.c.b16 %v1173, %v1165
    %v2190 = vpack.c.b16 %v1174, %v1166
    %v2191 = vpack.c.b16 %v1175, %v1167
    %v2192 = vpack.c.b16 %v1176, %v1168
    %v2193 = vpack.c.b16 %v1177, %v1169
    %v2194 = vpack.c.b16 %v1186, %v1178
    %v2195 = vpack.c.b16 %v1187, %v1179
    %v2196 = vpack.c.b16 %v1188, %v1180
    %v2197 = vpack.c.b16 %v1189, %v1181
    %v2198 = vpack.c.b16 %v1190, %v1182
    %v2199 = vpack.c.b16 %v1191, %v1183
    %v2200 = vpack.c.b16 %v1192, %v1184
    %v2201 = vpack.c.b16 %v1193, %v1185
    %v2202 = vpack.c.b16 %v1202, %v1194
    %v2203 = vpack.c.b16 %v1203, %v1195
    %v2204 = vpack.c.b16 %v1204, %v1196
    %v2205 = vpack.c.b16 %v1205, %v1197
    %v2206 = vpack.c.b16 %v1206, %v1198
    %v2207 = vpack.c.b16 %v1207, %v1199
    %v2208 = vpack.c.b16 %v1208, %v1200
    %v2209 = vpack.c.b16 %v1209, %v1201
    %v2210 = vpack.c.b16 %v1218, %v1210
    %v2211 = vpack.c.b16 %v1219, %v1211
    %v2212 = vpack.c.b16 %v1220, %v1212
    %v2213 = vpack.c.b16 %v1221, %v1213
    %v2214 = vpack.c.b16 %v1222, %v1214
    %v2215 = vpack.c.b16 %v1223, %v1215
    %v2216 = vpack.c.b16 %v1224, %v1216
    %v2217 = vpack.c.b16 %v1225, %v1217
    %v2218 = vpack.c.b16 %v1234, %v1226
    %v2219 = vpack.c.b16 %v1235, %v1227
    %v2220 = vpack.c.b16 %v1236, %v1228
    %v2221 = vpack.c.b16 %v1237, %v1229
    %v2222 = vpack.c.b16 %v1238, %v1230
    %v2223 = vpack.c.b16 %v1239, %v1231
    %v2224 = vpack.c.b16 %v1240, %v1232
    %v2225 = vpack.c.b16 %v1241, %v1233
    %v2226 = vpack.c.b16 %v1250, %v1242
    %v2227 = vpack.c.b16 %v1251, %v1243
    %v2228 = vpack.c.b16 %v1252, %v1244
    %v2229 = vpack.c.b16 %v1253, %v1245
    %v2230 = vpack.c.b16 %v1254, %v1246
    %v2231 = vpack.c.b16 %v1255, %v1247
    %v2232 = vpack.c.b16 %v1256, %v1248
    %v2233 = vpack.c.b16 %v1257, %v1249
    %v2234 = vpack.c.b16 %v1266, %v1258
    %v2235 = vpack.c.b16 %v1267, %v1259
    %v2236 = vpack.c.b16 %v1268, %v1260
    %v2237 = vpack.c.b16 %v1269, %v1261
    %v2238 = vpack.c.b16 %v1270, %v1262
    %v2239 = vpack.c.b16 %v1271, %v1263
    %v2240 = vpack.c.b16 %v1272, %v1264
    %v2241 = vpack.c.b16 %v1273, %v1265
    %v2242 = vpack.c.b16 %v1282, %v1274
    %v2243 = vpack.c.b16 %v1283, %v1275
    %v2244 = vpack.c.b16 %v1284, %v1276
    %v2245 = vpack.c.b16 %v1285, %v1277
    %v2246 = vpack.c.b16 %v1286, %v1278
    %v2247 = vpack.c.b16 %v1287, %v1279
    %v2248 = vpack.c.b16 %v1288, %v1280
    %v2249 = vpack.c.b16 %v1289, %v1281
    %v2250 = vpack.c.b16 %v1298, %v1290
    %v2251 = vpack.c.b16 %v1299, %v1291
    %v2252 = vpack.c.b16 %v1300, %v1292
    %v2253 = vpack.c.b16 %v1301, %v1293
    %v2254 = vpack.c.b16 %v1302, %v1294
    %v2255 = vpack.c.b16 %v1303, %v1295
    %v2256 = vpack.c.b16 %v1304, %v1296
    %v2257 = vpack.c.b16 %v1305, %v1297
    %v2258 = vpack.c.b16 %v1314, %v1306
    %v2259 = vpack.c.b16 %v1315, %v1307
    %v2260 = vpack.c.b16 %v1316, %v1308
    %v2261 = vpack.c.b16 %v1317, %v1309
    %v2262 = vpack.c.b16 %v1318, %v1310
    %v2263 = vpack.c.b16 %v1319, %v1311
    %v2264 = vpack.c.b16 %v1320, %v1312
    %v2265 = vpack.c.b16 %v1321, %v1313
    %v2266 = vpack.c.b16 %v1330, %v1322
    %v2267 = vpack.c.b16 %v1331, %v1323
    %v2268 = vpack.c.b16 %v1332, %v1324
    %v2269 = vpack.c.b16 %v1333, %v1325
    %v2270 = vpack.c.b16 %v1334, %v1326
    %v2271 = vpack.c.b16 %v1335, %v1327
    %v2272 = vpack.c.b16 %v1336, %v1328
    %v2273 = vpack.c.b16 %v1337, %v1329
    %v2274 = vpack.c.b16 %v1346, %v1338
    %v2275 = vpack.c.b16 %v1347, %v1339
    %v2276 = vpack.c.b16 %v1348, %v1340
    %v2277 = vpack.c.b16 %v1349, %v1341
    %v2278 = vpack.c.b16 %v1350, %v1342
    %v2279 = vpack.c.b16 %v1351, %v1343
    %v2280 = vpack.c.b16 %v1352, %v1344
    %v2281 = vpack.c.b16 %v1353, %v1345
    %v2282 = vpack.c.b16 %v1362, %v1354
    %v2283 = vpack.c.b16 %v1363, %v1355
    %v2284 = vpack.c.b16 %v1364, %v1356
    %v2285 = vpack.c.b16 %v1365, %v1357
    %v2286 = vpack.c.b16 %v1366, %v1358
    %v2287 = vpack.c.b16 %v1367, %v1359
    %v2288 = vpack.c.b16 %v1368, %v1360
    %v2289 = vpack.c.b16 %v1369, %v1361
    %v2290 = vpack.c.b16 %v1378, %v1370
    %v2291 = vpack.c.b16 %v1379, %v1371
    %v2292 = vpack.c.b16 %v1380, %v1372
    %v2293 = vpack.c.b16 %v1381, %v1373
    %v2294 = vpack.c.b16 %v1382, %v1374
    %v2295 = vpack.c.b16 %v1383, %v1375
    %v2296 = vpack.c.b16 %v1384, %v1376
    %v2297 = vpack.c.b16 %v1385, %v1377
    %v2298 = vpack.c.b16 %v1394, %v1386
    %v2299 = vpack.c.b16 %v1395, %v1387
    %v2300 = vpack.c.b16 %v1396, %v1388
    %v2301 = vpack.c.b16 %v1397, %v1389
    %v2302 = vpack.c.b16 %v1398, %v1390
    %v2303 = vpack.c.b16 %v1399, %v1391
    %v2304 = vpack.c.b16 %v1400, %v1392
    %v2305 = vpack.c.b16 %v1401, %v1393
    %v2306 = vpack.c.b16 %v1410, %v1402
    %v2307 = vpack.c.b16 %v1411, %v1403
    %v2308 = vpack.c.b16 %v1412, %v1404
    %v2309 = vpack.c.b16 %v1413, %v1405
    %v2310 = vpack.c.b16 %v1414, %v1406
    %v2311 = vpack.c.b16 %v1415, %v1407
    %v2312 = vpack.c.b16 %v1416, %v1408
    %v2313 = vpack.c.b16 %v1417, %v1409
    %v2314 = vpack.c.b16 %v1426, %v1418
    %v2315 = vpack.c.b16 %v1427, %v1419
    %v2316 = vpack.c.b16 %v1428, %v1420
    %v2317 = vpack.c.b16 %v1429, %v1421
    %v2318 = vpack.c.b16 %v1430, %v1422
    %v2319 = vpack.c.b16 %v1431, %v1423
    %v2320 = vpack.c.b16 %v1432, %v1424
    %v2321 = vpack.c.b16 %v1433, %v1425
    %v2322 = vpack.c.b16 %v1442, %v1434
    %v2323 = vpack.c.b16 %v1443, %v1435
    %v2324 = vpack.c.b16 %v1444, %v1436
    %v2325 = vpack.c.b16 %v1445, %v1437
    %v2326 = vpack.c.b16 %v1446, %v1438
    %v2327 = vpack.c.b16 %v1447, %v1439
    %v2328 = vpack.c.b16 %v1448, %v1440
    %v2329 = vpack.c.b16 %v1449, %v1441
    %v2330 = vpack.c.b16 %v1458, %v1450
    %v2331 = vpack.c.b16 %v1459, %v1451
    %v2332 = vpack.c.b16 %v1460, %v1452
    %v2333 = vpack.c.b16 %v1461, %v1453
    %v2334 = vpack.c.b16 %v1462, %v1454
    %v2335 = vpack.c.b16 %v1463, %v1455
    %v2336 = vpack.c.b16 %v1464, %v1456
    %v2337 = vpack.c.b16 %v1465, %v1457
    %v2338 = vpack.c.b16 %v1474, %v1466
    %v2339 = vpack.c.b16 %v1475, %v1467
    %v2340 = vpack.c.b16 %v1476, %v1468
    %v2341 = vpack.c.b16 %v1477, %v1469
    %v2342 = vpack.c.b16 %v1478, %v1470
    %v2343 = vpack.c.b16 %v1479, %v1471
    %v2344 = vpack.c.b16 %v1480, %v1472
    %v2345 = vpack.c.b16 %v1481, %v1473
    %v2346 = vpack.c.b16 %v1490, %v1482
    %v2347 = vpack.c.b16 %v1491, %v1483
    %v2348 = vpack.c.b16 %v1492, %v1484
    %v2349 = vpack.c.b16 %v1493, %v1485
    %v2350 = vpack.c.b16 %v1494, %v1486
    %v2351 = vpack.c.b16 %v1495, %v1487
    %v2352 = vpack.c.b16 %v1496, %v1488
    %v2353 = vpack.c.b16 %v1497, %v1489
    %v2354 = vpack.c.b16 %v1506, %v1498
    %v2355 = vpack.c.b16 %v1507, %v1499
    %v2356 = vpack.c.b16 %v1508, %v1500
    %v2357 = vpack.c.b16 %v1509, %v1501
    %v2358 = vpack.c.b16 %v1510, %v1502
    %v2359 = vpack.c.b16 %v1511, %v1503
    %v2360 = vpack.c.b16 %v1512, %v1504
    %v2361 = vpack.c.b16 %v1513, %v1505
    %v2362 = vpack.c.b16 %v1522, %v1514
    %v2363 = vpack.c.b16 %v1523, %v1515
    %v2364 = vpack.c.b16 %v1524, %v1516
    %v2365 = vpack.c.b16 %v1525, %v1517
    %v2366 = vpack.c.b16 %v1526, %v1518
    %v2367 = vpack.c.b16 %v1527, %v1519
    %v2368 = vpack.c.b16 %v1528, %v1520
    %v2369 = vpack.c.b16 %v1529, %v1521
    %v2370 = vpack.c.b16 %v1538, %v1530
    %v2371 = vpack.c.b16 %v1539, %v1531
    %v2372 = vpack.c.b16 %v1540, %v1532
    %v2373 = vpack.c.b16 %v1541, %v1533
    %v2374 = vpack.c.b16 %v1542, %v1534
    %v2375 = vpack.c.b16 %v1543, %v1535
    %v2376 = vpack.c.b16 %v1544, %v1536
    %v2377 = vpack.c.b16 %v1545, %v1537
    %v2378 = vpack.c.b16 %v1554, %v1546
    %v2379 = vpack.c.b16 %v1555, %v1547
    %v2380 = vpack.c.b16 %v1556, %v1548
    %v2381 = vpack.c.b16 %v1557, %v1549
    %v2382 = vpack.c.b16 %v1558, %v1550
    %v2383 = vpack.c.b16 %v1559, %v1551
    %v2384 = vpack.c.b16 %v1560, %v1552
    %v2385 = vpack.c.b16 %v1561, %v1553
    %v2386 = vpack.c.b16 %v1570, %v1562
    %v2387 = vpack.c.b16 %v1571, %v1563
    %v2388 = vpack.c.b16 %v1572, %v1564
    %v2389 = vpack.c.b16 %v1573, %v1565
    %v2390 = vpack.c.b16 %v1574, %v1566
    %v2391 = vpack.c.b16 %v1575, %v1567
    %v2392 = vpack.c.b16 %v1576, %v1568
    %v2393 = vpack.c.b16 %v1577, %v1569
    %v2394 = vpack.c.b16 %v1586, %v1578
    %v2395 = vpack.c.b16 %v1587, %v1579
    %v2396 = vpack.c.b16 %v1588, %v1580
    %v2397 = vpack.c.b16 %v1589, %v1581
    %v2398 = vpack.c.b16 %v1590, %v1582
    %v2399 = vpack.c.b16 %v1591, %v1583
    %v2400 = vpack.c.b16 %v1592, %v1584
    %v2401 = vpack.c.b16 %v1593, %v1585
    %v2402 = vpack.c.b16 %v1602, %v1594
    %v2403 = vpack.c.b16 %v1603, %v1595
    %v2404 = vpack.c.b16 %v1604, %v1596
    %v2405 = vpack.c.b16 %v1605, %v1597
    %v2406 = vpack.c.b16 %v1606, %v1598
    %v2407 = vpack.c.b16 %v1607, %v1599
    %v2408 = vpack.c.b16 %v1608, %v1600
    %v2409 = vpack.c.b16 %v1609, %v1601
    %v2410 = vpack.c.b16 %v1618, %v1610
    %v2411 = vpack.c.b16 %v1619, %v1611
    %v2412 = vpack.c.b16 %v1620, %v1612
    %v2413 = vpack.c.b16 %v1621, %v1613
    %v2414 = vpack.c.b16 %v1622, %v1614
    %v2415 = vpack.c.b16 %v1623, %v1615
    %v2416 = vpack.c.b16 %v1624, %v1616
    %v2417 = vpack.c.b16 %v1625, %v1617
    %v2418 = vpack.c.b16 %v1634, %v1626
    %v2419 = vpack.c.b16 %v1635, %v1627
    %v2420 = vpack.c.b16 %v1636, %v1628
    %v2421 = vpack.c.b16 %v1637, %v1629
    %v2422 = vpack.c.b16 %v1638, %v1630
    %v2423 = vpack.c.b16 %v1639, %v1631
    %v2424 = vpack.c.b16 %v1640, %v1632
    %v2425 = vpack.c.b16 %v1641, %v1633
    %v2426 = vpack.c.b16 %v1650, %v1642
    %v2427 = vpack.c.b16 %v1651, %v1643
    %v2428 = vpack.c.b16 %v1652, %v1644
    %v2429 = vpack.c.b16 %v1653, %v1645
    %v2430 = vpack.c.b16 %v1654, %v1646
    %v2431 = vpack.c.b16 %v1655, %v1647
    %v2432 = vpack.c.b16 %v1656, %v1648
    %v2433 = vpack.c.b16 %v1657, %v1649
    %v2434 = vpack.c.b16 %v1666, %v1658
    %v2435 = vpack.c.b16 %v1667, %v1659
    %v2436 = vpack.c.b16 %v1668, %v1660
    %v2437 = vpack.c.b16 %v1669, %v1661
    %v2438 = vpack.c.b16 %v1670, %v1662
    %v2439 = vpack.c.b16 %v1671, %v1663
    %v2440 = vpack.c.b16 %v1672, %v1664
    %v2441 = vpack.c.b16 %v1673, %v1665
    %v2442 = vpack.c.b16 %v1682, %v1674
    %v2443 = vpack.c.b16 %v1683, %v1675
    %v2444 = vpack.c.b16 %v1684, %v1676
    %v2445 = vpack.c.b16 %v1685, %v1677
    %v2446 = vpack.c.b16 %v1686, %v1678
    %v2447 = vpack.c.b16 %v1687, %v1679
    %v2448 = vpack.c.b16 %v1688, %v1680
    %v2449 = vpack.c.b16 %v1689, %v1681
    %v2450 = vpack.c.b16 %v1698, %v1690
    %v2451 = vpack.c.b16 %v1699, %v1691
    %v2452 = vpack.c.b16 %v1700, %v1692
    %v2453 = vpack.c.b16 %v1701, %v1693
    %v2454 = vpack.c.b16 %v1702, %v1694
    %v2455 = vpack.c.b16 %v1703, %v1695
    %v2456 = vpack.c.b16 %v1704, %v1696
    %v2457 = vpack.c.b16 %v1705, %v1697
    %v2458 = vpack.c.b16 %v1714, %v1706
    %v2459 = vpack.c.b16 %v1715, %v1707
    %v2460 = vpack.c.b16 %v1716, %v1708
    %v2461 = vpack.c.b16 %v1717, %v1709
    %v2462 = vpack.c.b16 %v1718, %v1710
    %v2463 = vpack.c.b16 %v1719, %v1711
    %v2464 = vpack.c.b16 %v1720, %v1712
    %v2465 = vpack.c.b16 %v1721, %v1713
    %v2466 = vpack.c.b16 %v1730, %v1722
    %v2467 = vpack.c.b16 %v1731, %v1723
    %v2468 = vpack.c.b16 %v1732, %v1724
    %v2469 = vpack.c.b16 %v1733, %v1725
    %v2470 = vpack.c.b16 %v1734, %v1726
    %v2471 = vpack.c.b16 %v1735, %v1727
    %v2472 = vpack.c.b16 %v1736, %v1728
    %v2473 = vpack.c.b16 %v1737, %v1729
    %v2474 = vpack.c.b16 %v1746, %v1738
    %v2475 = vpack.c.b16 %v1747, %v1739
    %v2476 = vpack.c.b16 %v1748, %v1740
    %v2477 = vpack.c.b16 %v1749, %v1741
    %v2478 = vpack.c.b16 %v1750, %v1742
    %v2479 = vpack.c.b16 %v1751, %v1743
    %v2480 = vpack.c.b16 %v1752, %v1744
    %v2481 = vpack.c.b16 %v1753, %v1745
    %v2482 = vpack.c.b16 %v1762, %v1754
    %v2483 = vpack.c.b16 %v1763, %v1755
    %v2484 = vpack.c.b16 %v1764, %v1756
    %v2485 = vpack.c.b16 %v1765, %v1757
    %v2486 = vpack.c.b16 %v1766, %v1758
    %v2487 = vpack.c.b16 %v1767, %v1759
    %v2488 = vpack.c.b16 %v1768, %v1760
    %v2489 = vpack.c.b16 %v1769, %v1761
    %v2490 = vpack.c.b16 %v1778, %v1770
    %v2491 = vpack.c.b16 %v1779, %v1771
    %v2492 = vpack.c.b16 %v1780, %v1772
    %v2493 = vpack.c.b16 %v1781, %v1773
    %v2494 = vpack.c.b16 %v1782, %v1774
    %v2495 = vpack.c.b16 %v1783, %v1775
    %v2496 = vpack.c.b16 %v1784, %v1776
    %v2497 = vpack.c.b16 %v1785, %v1777
    %v2498 = vpack.c.b16 %v1794, %v1786
    %v2499 = vpack.c.b16 %v1795, %v1787
    %v2500 = vpack.c.b16 %v1796, %v1788
    %v2501 = vpack.c.b16 %v1797, %v1789
    %v2502 = vpack.c.b16 %v1798, %v1790
    %v2503 = vpack.c.b16 %v1799, %v1791
    %v2504 = vpack.c.b16 %v1800, %v1792
    %v2505 = vpack.c.b16 %v1801, %v1793
    %v2506 = vpack.c.b16 %v1810, %v1802
    %v2507 = vpack.c.b16 %v1811, %v1803
    %v2508 = vpack.c.b16 %v1812, %v1804
    %v2509 = vpack.c.b16 %v1813, %v1805
    %v2510 = vpack.c.b16 %v1814, %v1806
    %v2511 = vpack.c.b16 %v1815, %v1807
    %v2512 = vpack.c.b16 %v1816, %v1808
    %v2513 = vpack.c.b16 %v1817, %v1809
    %v2514 = vpack.c.b16 %v1826, %v1818
    %v2515 = vpack.c.b16 %v1827, %v1819
    %v2516 = vpack.c.b16 %v1828, %v1820
    %v2517 = vpack.c.b16 %v1829, %v1821
    %v2518 = vpack.c.b16 %v1830, %v1822
    %v2519 = vpack.c.b16 %v1831, %v1823
    %v2520 = vpack.c.b16 %v1832, %v1824
    %v2521 = vpack.c.b16 %v1833, %v1825
    %v2522 = vpack.c.b16 %v1842, %v1834
    %v2523 = vpack.c.b16 %v1843, %v1835
    %v2524 = vpack.c.b16 %v1844, %v1836
    %v2525 = vpack.c.b16 %v1845, %v1837
    %v2526 = vpack.c.b16 %v1846, %v1838
    %v2527 = vpack.c.b16 %v1847, %v1839
    %v2528 = vpack.c.b16 %v1848, %v1840
    %v2529 = vpack.c.b16 %v1849, %v1841
    %v2530 = vpack.c.b16 %v1858, %v1850
    %v2531 = vpack.c.b16 %v1859, %v1851
    %v2532 = vpack.c.b16 %v1860, %v1852
    %v2533 = vpack.c.b16 %v1861, %v1853
    %v2534 = vpack.c.b16 %v1862, %v1854
    %v2535 = vpack.c.b16 %v1863, %v1855
    %v2536 = vpack.c.b16 %v1864, %v1856
    %v2537 = vpack.c.b16 %v1865, %v1857
    %v2538 = vpack.c.b16 %v1874, %v1866
    %v2539 = vpack.c.b16 %v1875, %v1867
    %v2540 = vpack.c.b16 %v1876, %v1868
    %v2541 = vpack.c.b16 %v1877, %v1869
    %v2542 = vpack.c.b16 %v1878, %v1870
    %v2543 = vpack.c.b16 %v1879, %v1871
    %v2544 = vpack.c.b16 %v1880, %v1872
    %v2545 = vpack.c.b16 %v1881, %v1873
    %v2546 = vpack.c.b16 %v1890, %v1882
    %v2547 = vpack.c.b16 %v1891, %v1883
    %v2548 = vpack.c.b16 %v1892, %v1884
    %v2549 = vpack.c.b16 %v1893, %v1885
    %v2550 = vpack.c.b16 %v1894, %v1886
    %v2551 = vpack.c.b16 %v1895, %v1887
    %v2552 = vpack.c.b16 %v1896, %v1888
    %v2553 = vpack.c.b16 %v1897, %v1889
    %v2554 = vpack.c.b16 %v1906, %v1898
    %v2555 = vpack.c.b16 %v1907, %v1899
    %v2556 = vpack.c.b16 %v1908, %v1900
    %v2557 = vpack.c.b16 %v1909, %v1901
    %v2558 = vpack.c.b16 %v1910, %v1902
    %v2559 = vpack.c.b16 %v1911, %v1903
    %v2560 = vpack.c.b16 %v1912, %v1904
    %v2561 = vpack.c.b16 %v1913, %v1905
    %v2562 = vpack.c.b16 %v1922, %v1914
    %v2563 = vpack.c.b16 %v1923, %v1915
    %v2564 = vpack.c.b16 %v1924, %v1916
    %v2565 = vpack.c.b16 %v1925, %v1917
    %v2566 = vpack.c.b16 %v1926, %v1918
    %v2567 = vpack.c.b16 %v1927, %v1919
    %v2568 = vpack.c.b16 %v1928, %v1920
    %v2569 = vpack.c.b16 %v1929, %v1921
    %v2570 = vpack.c.b16 %v1938, %v1930
    %v2571 = vpack.c.b16 %v1939, %v1931
    %v2572 = vpack.c.b16 %v1940, %v1932
    %v2573 = vpack.c.b16 %v1941, %v1933
    %v2574 = vpack.c.b16 %v1942, %v1934
    %v2575 = vpack.c.b16 %v1943, %v1935
    %v2576 = vpack.c.b16 %v1944, %v1936
    %v2577 = vpack.c.b16 %v1945, %v1937
    %v2578 = vpack.c.b16 %v1954, %v1946
    %v2579 = vpack.c.b16 %v1955, %v1947
    %v2580 = vpack.c.b16 %v1956, %v1948
    %v2581 = vpack.c.b16 %v1957, %v1949
    %v2582 = vpack.c.b16 %v1958, %v1950
    %v2583 = vpack.c.b16 %v1959, %v1951
    %v2584 = vpack.c.b16 %v1960, %v1952
    %v2585 = vpack.c.b16 %v1961, %v1953
    %v2586 = vpack.c.b16 %v1970, %v1962
    %v2587 = vpack.c.b16 %v1971, %v1963
    %v2588 = vpack.c.b16 %v1972, %v1964
    %v2589 = vpack.c.b16 %v1973, %v1965
    %v2590 = vpack.c.b16 %v1974, %v1966
    %v2591 = vpack.c.b16 %v1975, %v1967
    %v2592 = vpack.c.b16 %v1976, %v1968
    %v2593 = vpack.c.b16 %v1977, %v1969
    %v2594 = vpack.c.b16 %v1986, %v1978
    %v2595 = vpack.c.b16 %v1987, %v1979
    %v2596 = vpack.c.b16 %v1988, %v1980
    %v2597 = vpack.c.b16 %v1989, %v1981
    %v2598 = vpack.c.b16 %v1990, %v1982
    %v2599 = vpack.c.b16 %v1991, %v1983
    %v2600 = vpack.c.b16 %v1992, %v1984
    %v2601 = vpack.c.b16 %v1993, %v1985
    %v2602 = vpack.c.b16 %v2002, %v1994
    %v2603 = vpack.c.b16 %v2003, %v1995
    %v2604 = vpack.c.b16 %v2004, %v1996
    %v2605 = vpack.c.b16 %v2005, %v1997
    %v2606 = vpack.c.b16 %v2006, %v1998
    %v2607 = vpack.c.b16 %v2007, %v1999
    %v2608 = vpack.c.b16 %v2008, %v2000
    %v2609 = vpack.c.b16 %v2009, %v2001
    %v2610 = vpack.c.b16 %v2018, %v2010
    %v2611 = vpack.c.b16 %v2019, %v2011
    %v2612 = vpack.c.b16 %v2020, %v2012
    %v2613 = vpack.c.b16 %v2021, %v2013
    %v2614 = vpack.c.b16 %v2022, %v2014
    %v2615 = vpack.c.b16 %v2023, %v2015
    %v2616 = vpack.c.b16 %v2024, %v2016
    %v2617 = vpack.c.b16 %v2025, %v2017
    %v2618 = vpack.c.b16 %v2034, %v2026
    %v2619 = vpack.c.b16 %v2035, %v2027
    %v2620 = vpack.c.b16 %v2036, %v2028
    %v2621 = vpack.c.b16 %v2037, %v2029
    %v2622 = vpack.c.b16 %v2038, %v2030
    %v2623 = vpack.c.b16 %v2039, %v2031
    %v2624 = vpack.c.b16 %v2040, %v2032
    %v2625 = vpack.c.b16 %v2041, %v2033
    %v2626 = vpack.c.b16 %v2050, %v2042
    %v2627 = vpack.c.b16 %v2051, %v2043
    %v2628 = vpack.c.b16 %v2052, %v2044
    %v2629 = vpack.c.b16 %v2053, %v2045
    %v2630 = vpack.c.b16 %v2054, %v2046
    %v2631 = vpack.c.b16 %v2055, %v2047
    %v2632 = vpack.c.b16 %v2056, %v2048
    %v2633 = vpack.c.b16 %v2057, %v2049
    %v2634 = vpack.c.b16 %v2066, %v2058
    %v2635 = vpack.c.b16 %v2067, %v2059
    %v2636 = vpack.c.b16 %v2068, %v2060
    %v2637 = vpack.c.b16 %v2069, %v2061
    %v2638 = vpack.c.b16 %v2070, %v2062
    %v2639 = vpack.c.b16 %v2071, %v2063
    %v2640 = vpack.c.b16 %v2072, %v2064
    %v2641 = vpack.c.b16 %v2073, %v2065
    %v2642 = vpack.c.b16 %v2082, %v2074
    %v2643 = vpack.c.b16 %v2083, %v2075
    %v2644 = vpack.c.b16 %v2084, %v2076
    %v2645 = vpack.c.b16 %v2085, %v2077
    %v2646 = vpack.c.b16 %v2086, %v2078
    %v2647 = vpack.c.b16 %v2087, %v2079
    %v2648 = vpack.c.b16 %v2088, %v2080
    %v2649 = vpack.c.b16 %v2089, %v2081
    %v2650 = vpack.c.b16 %v2098, %v2090
    %v2651 = vpack.c.b16 %v2099, %v2091
    %v2652 = vpack.c.b16 %v2100, %v2092
    %v2653 = vpack.c.b16 %v2101, %v2093
    %v2654 = vpack.c.b16 %v2102, %v2094
    %v2655 = vpack.c.b16 %v2103, %v2095
    %v2656 = vpack.c.b16 %v2104, %v2096
    %v2657 = vpack.c.b16 %v2105, %v2097
    %v2658 = vpack.c.b16 %v2114, %v2106
    %v2659 = vpack.c.b16 %v2115, %v2107
    %v2660 = vpack.c.b16 %v2116, %v2108
    %v2661 = vpack.c.b16 %v2117, %v2109
    %v2662 = vpack.c.b16 %v2118, %v2110
    %v2663 = vpack.c.b16 %v2119, %v2111
    %v2664 = vpack.c.b16 %v2120, %v2112
    %v2665 = vpack.c.b16 %v2121, %v2113
    %v2666 = vpack.c.b16 %v2130, %v2122
    %v2667 = vpack.c.b16 %v2131, %v2123
    %v2668 = vpack.c.b16 %v2132, %v2124
    %v2669 = vpack.c.b16 %v2133, %v2125
    %v2670 = vpack.c.b16 %v2134, %v2126
    %v2671 = vpack.c.b16 %v2135, %v2127
    %v2672 = vpack.c.b16 %v2136, %v2128
    %v2673 = vpack.c.b16 %v2137, %v2129
    %v2674 = vpack.c.b16 %v2146, %v2138
    %v2675 = vpack.c.b16 %v2147, %v2139
    %v2676 = vpack.c.b16 %v2148, %v2140
    %v2677 = vpack.c.b16 %v2149, %v2141
    %v2678 = vpack.c.b16 %v2150, %v2142
    %v2679 = vpack.c.b16 %v2151, %v2143
    %v2680 = vpack.c.b16 %v2152, %v2144
    %v2681 = vpack.c.b16 %v2153, %v2145
    %v2682 = vpack.c.b16 %v2162, %v2154
    %v2683 = vpack.c.b16 %v2163, %v2155
    %v2684 = vpack.c.b16 %v2164, %v2156
    %v2685 = vpack.c.b16 %v2165, %v2157
    %v2686 = vpack.c.b16 %v2166, %v2158
    %v2687 = vpack.c.b16 %v2167, %v2159
    %v2688 = vpack.c.b16 %v2168, %v2160
    %v2689 = vpack.c.b16 %v2169, %v2161
    %v2690 = vpack.c.b16 %v2178, %v2170
    %v2691 = vpack.c.b16 %v2179, %v2171
    %v2692 = vpack.c.b16 %v2180, %v2172
    %v2693 = vpack.c.b16 %v2181, %v2173
    %v2694 = vpack.c.b16 %v2182, %v2174
    %v2695 = vpack.c.b16 %v2183, %v2175
    %v2696 = vpack.c.b16 %v2184, %v2176
    %v2697 = vpack.c.b16 %v2185, %v2177
    %3210 = vmatprep.subr.bf16.mxu0 %v2243
    %3211 = vmatpush1.bf16.msra.mxu0 %v2242
    %3212 = vmatprep.subr.bf16.mxu0 %v2235
    %3213 = vmatpush1.bf16.msra.mxu0 %v2234
    %3214 = vmatprep.subr.bf16.mxu0 %v2227
    %3215 = vmatpush1.bf16.msra.mxu0 %v2226
    %3216 = vmatprep.subr.bf16.mxu0 %v2219
    %3217 = vmatpush1.bf16.msra.mxu0 %v2218
    %3218 = vmatprep.subr.bf16.mxu0 %v2211
    %3219 = vmatpush1.bf16.msra.mxu0 %v2210
    %3220 = vmatprep.subr.bf16.mxu0 %v2203
    %3221 = vmatpush1.bf16.msra.mxu0 %v2202
    %3222 = vmatprep.subr.bf16.mxu0 %v2195
    %3223 = vmatpush1.bf16.msra.mxu0 %v2194
    %3224 = vmatprep.subr.bf16.mxu0 %v2187
    %3225 = vmatpush1.bf16.msra.mxu0 %v2186
    %3226 = vmatprep.subr.bf16.mxu0 %v2307
    %3227 = vmatpush2.bf16.msra.mxu0 %v2306
    %3228 = vmatprep.subr.bf16.mxu0 %v2299
    %3229 = vmatpush2.bf16.msra.mxu0 %v2298
    %3230 = vmatprep.subr.bf16.mxu0 %v2291
    %3231 = vmatpush2.bf16.msra.mxu0 %v2290
    %3232 = vmatprep.subr.bf16.mxu0 %v2283
    %3233 = vmatpush2.bf16.msra.mxu0 %v2282
    %3234 = vmatprep.subr.bf16.mxu0 %v2275
    %3235 = vmatpush2.bf16.msra.mxu0 %v2274
    %3236 = vmatprep.subr.bf16.mxu0 %v2267
    %3237 = vmatpush2.bf16.msra.mxu0 %v2266
    %3238 = vmatprep.subr.bf16.mxu0 %v2259
    %3239 = vmatpush2.bf16.msra.mxu0 %v2258
    %3240 = vmatprep.subr.bf16.mxu0 %v2251
    %3241 = vmatpush2.bf16.msra.mxu0 %v2250
    %3242 = vmatprep.mubr.bf16.mxu0 %v89
    %3243 = vmatmul.mubr.bf16.gmra.mxu0 %v88
    %v3244 = vpop.f32.mrf.mxu0
    %v3245 = vadd.f32 %v613, %v3244
    %v3246 = vpop.f32.mrf.mxu0
    %v3247 = vadd.f32 %v617, %v3246
    %v3248 = vpop.f32.mrf.mxu0
    %v3249 = vadd.f32 %v613, %v3248
    %v3250 = vpop.f32.mrf.mxu0
    %v3251 = vadd.f32 %v617, %v3250
    %3252 = vdwg.mxu0
    %3253 = vmatprep.subr.bf16.mxu0 %v2371
    %3254 = vmatpush1.bf16.msra.mxu0 %v2370
    %3255 = vmatprep.subr.bf16.mxu0 %v2363
    %3256 = vmatpush1.bf16.msra.mxu0 %v2362
    %3257 = vmatprep.subr.bf16.mxu0 %v2355
    %3258 = vmatpush1.bf16.msra.mxu0 %v2354
    %3259 = vmatprep.subr.bf16.mxu0 %v2347
    %3260 = vmatpush1.bf16.msra.mxu0 %v2346
    %3261 = vmatprep.subr.bf16.mxu0 %v2339
    %3262 = vmatpush1.bf16.msra.mxu0 %v2338
    %3263 = vmatprep.subr.bf16.mxu0 %v2331
    %3264 = vmatpush1.bf16.msra.mxu0 %v2330
    %3265 = vmatprep.subr.bf16.mxu0 %v2323
    %3266 = vmatpush1.bf16.msra.mxu0 %v2322
    %3267 = vmatprep.subr.bf16.mxu0 %v2315
    %3268 = vmatpush1.bf16.msra.mxu0 %v2314
    %3269 = vmatprep.subr.bf16.mxu0 %v2435
    %3270 = vmatpush2.bf16.msra.mxu0 %v2434
    %3271 = vmatprep.subr.bf16.mxu0 %v2427
    %3272 = vmatpush2.bf16.msra.mxu0 %v2426
    %3273 = vmatprep.subr.bf16.mxu0 %v2419
    %3274 = vmatpush2.bf16.msra.mxu0 %v2418
    %3275 = vmatprep.subr.bf16.mxu0 %v2411
    %3276 = vmatpush2.bf16.msra.mxu0 %v2410
    %3277 = vmatprep.subr.bf16.mxu0 %v2403
    %3278 = vmatpush2.bf16.msra.mxu0 %v2402
    %3279 = vmatprep.subr.bf16.mxu0 %v2395
    %3280 = vmatpush2.bf16.msra.mxu0 %v2394
    %3281 = vmatprep.subr.bf16.mxu0 %v2387
    %3282 = vmatpush2.bf16.msra.mxu0 %v2386
    %3283 = vmatprep.subr.bf16.mxu0 %v2379
    %3284 = vmatpush2.bf16.msra.mxu0 %v2378
    %3285 = vmatprep.mubr.bf16.mxu0 %v91
    %3286 = vmatmul.mubr.bf16.gmra.mxu0 %v90
    %v3287 = vpop.f32.mrf.mxu0
    %v3288 = vadd.f32 %v3245, %v3287
    %v3289 = vpop.f32.mrf.mxu0
    %v3290 = vadd.f32 %v3247, %v3289
    %v3291 = vpop.f32.mrf.mxu0
    %v3292 = vadd.f32 %v3249, %v3291
    %v3293 = vpop.f32.mrf.mxu0
    %v3294 = vadd.f32 %v3251, %v3293
    %3295 = vdwg.mxu0
    %3296 = vmatprep.subr.bf16.mxu0 %v2499
    %3297 = vmatpush1.bf16.msra.mxu0 %v2498
    %3298 = vmatprep.subr.bf16.mxu0 %v2491
    %3299 = vmatpush1.bf16.msra.mxu0 %v2490
    %3300 = vmatprep.subr.bf16.mxu0 %v2483
    %3301 = vmatpush1.bf16.msra.mxu0 %v2482
    %3302 = vmatprep.subr.bf16.mxu0 %v2475
    %3303 = vmatpush1.bf16.msra.mxu0 %v2474
    %3304 = vmatprep.subr.bf16.mxu0 %v2467
    %3305 = vmatpush1.bf16.msra.mxu0 %v2466
    %3306 = vmatprep.subr.bf16.mxu0 %v2459
    %3307 = vmatpush1.bf16.msra.mxu0 %v2458
    %3308 = vmatprep.subr.bf16.mxu0 %v2451
    %3309 = vmatpush1.bf16.msra.mxu0 %v2450
    %3310 = vmatprep.subr.bf16.mxu0 %v2443
    %3311 = vmatpush1.bf16.msra.mxu0 %v2442
    %3312 = vmatprep.subr.bf16.mxu0 %v2563
    %3313 = vmatpush2.bf16.msra.mxu0 %v2562
    %3314 = vmatprep.subr.bf16.mxu0 %v2555
    %3315 = vmatpush2.bf16.msra.mxu0 %v2554
    %3316 = vmatprep.subr.bf16.mxu0 %v2547
    %3317 = vmatpush2.bf16.msra.mxu0 %v2546
    %3318 = vmatprep.subr.bf16.mxu0 %v2539
    %3319 = vmatpush2.bf16.msra.mxu0 %v2538
    %3320 = vmatprep.subr.bf16.mxu0 %v2531
    %3321 = vmatpush2.bf16.msra.mxu0 %v2530
    %3322 = vmatprep.subr.bf16.mxu0 %v2523
    %3323 = vmatpush2.bf16.msra.mxu0 %v2522
    %3324 = vmatprep.subr.bf16.mxu0 %v2515
    %3325 = vmatpush2.bf16.msra.mxu0 %v2514
    %3326 = vmatprep.subr.bf16.mxu0 %v2507
    %3327 = vmatpush2.bf16.msra.mxu0 %v2506
    %3328 = vmatprep.mubr.bf16.mxu0 %v93
    %3329 = vmatmul.mubr.bf16.gmra.mxu0 %v92
    %v3330 = vpop.f32.mrf.mxu0
    %v3331 = vadd.f32 %v3288, %v3330
    %v3332 = vpop.f32.mrf.mxu0
    %v3333 = vadd.f32 %v3290, %v3332
    %v3334 = vpop.f32.mrf.mxu0
    %v3335 = vadd.f32 %v3292, %v3334
    %v3336 = vpop.f32.mrf.mxu0
    %v3337 = vadd.f32 %v3294, %v3336
    %3338 = vdwg.mxu0
    %3339 = vmatprep.subr.bf16.mxu0 %v2627
    %3340 = vmatpush1.bf16.msra.mxu0 %v2626
    %3341 = vmatprep.subr.bf16.mxu0 %v2619
    %3342 = vmatpush1.bf16.msra.mxu0 %v2618
    %3343 = vmatprep.subr.bf16.mxu0 %v2611
    %3344 = vmatpush1.bf16.msra.mxu0 %v2610
    %3345 = vmatprep.subr.bf16.mxu0 %v2603
    %3346 = vmatpush1.bf16.msra.mxu0 %v2602
    %3347 = vmatprep.subr.bf16.mxu0 %v2595
    %3348 = vmatpush1.bf16.msra.mxu0 %v2594
    %3349 = vmatprep.subr.bf16.mxu0 %v2587
    %3350 = vmatpush1.bf16.msra.mxu0 %v2586
    %3351 = vmatprep.subr.bf16.mxu0 %v2579
    %3352 = vmatpush1.bf16.msra.mxu0 %v2578
    %3353 = vmatprep.subr.bf16.mxu0 %v2571
    %3354 = vmatpush1.bf16.msra.mxu0 %v2570
    %3355 = vmatprep.subr.bf16.mxu0 %v2691
    %3356 = vmatpush2.bf16.msra.mxu0 %v2690
    %3357 = vmatprep.subr.bf16.mxu0 %v2683
    %3358 = vmatpush2.bf16.msra.mxu0 %v2682
    %3359 = vmatprep.subr.bf16.mxu0 %v2675
    %3360 = vmatpush2.bf16.msra.mxu0 %v2674
    %3361 = vmatprep.subr.bf16.mxu0 %v2667
    %3362 = vmatpush2.bf16.msra.mxu0 %v2666
    %3363 = vmatprep.subr.bf16.mxu0 %v2659
    %3364 = vmatpush2.bf16.msra.mxu0 %v2658
    %3365 = vmatprep.subr.bf16.mxu0 %v2651
    %3366 = vmatpush2.bf16.msra.mxu0 %v2650
    %3367 = vmatprep.subr.bf16.mxu0 %v2643
    %3368 = vmatpush2.bf16.msra.mxu0 %v2642
    %3369 = vmatprep.subr.bf16.mxu0 %v2635
    %3370 = vmatpush2.bf16.msra.mxu0 %v2634
    %3371 = vmatprep.mubr.bf16.mxu0 %v95
    %3372 = vmatmul.mubr.bf16.gmra.mxu0 %v94
    %v3373 = vpop.f32.mrf.mxu0
    %v3374 = vadd.f32 %v3331, %v3373
    %v3375 = vpop.f32.mrf.mxu0
    %v3376 = vadd.f32 %v3333, %v3375
    %v3377 = vpop.f32.mrf.mxu0
    %v3378 = vadd.f32 %v3335, %v3377
    %v3379 = vpop.f32.mrf.mxu0
    %v3380 = vadd.f32 %v3337, %v3379
    %3381 = vdwg.mxu0
    %3382 = vmatprep.subr.bf16.mxu0 %v2245
    %3383 = vmatpush1.bf16.msra.mxu0 %v2244
    %3384 = vmatprep.subr.bf16.mxu0 %v2237
    %3385 = vmatpush1.bf16.msra.mxu0 %v2236
    %3386 = vmatprep.subr.bf16.mxu0 %v2229
    %3387 = vmatpush1.bf16.msra.mxu0 %v2228
    %3388 = vmatprep.subr.bf16.mxu0 %v2221
    %3389 = vmatpush1.bf16.msra.mxu0 %v2220
    %3390 = vmatprep.subr.bf16.mxu0 %v2213
    %3391 = vmatpush1.bf16.msra.mxu0 %v2212
    %3392 = vmatprep.subr.bf16.mxu0 %v2205
    %3393 = vmatpush1.bf16.msra.mxu0 %v2204
    %3394 = vmatprep.subr.bf16.mxu0 %v2197
    %3395 = vmatpush1.bf16.msra.mxu0 %v2196
    %3396 = vmatprep.subr.bf16.mxu0 %v2189
    %3397 = vmatpush1.bf16.msra.mxu0 %v2188
    %3398 = vmatprep.subr.bf16.mxu0 %v2309
    %3399 = vmatpush2.bf16.msra.mxu0 %v2308
    %3400 = vmatprep.subr.bf16.mxu0 %v2301
    %3401 = vmatpush2.bf16.msra.mxu0 %v2300
    %3402 = vmatprep.subr.bf16.mxu0 %v2293
    %3403 = vmatpush2.bf16.msra.mxu0 %v2292
    %3404 = vmatprep.subr.bf16.mxu0 %v2285
    %3405 = vmatpush2.bf16.msra.mxu0 %v2284
    %3406 = vmatprep.subr.bf16.mxu0 %v2277
    %3407 = vmatpush2.bf16.msra.mxu0 %v2276
    %3408 = vmatprep.subr.bf16.mxu0 %v2269
    %3409 = vmatpush2.bf16.msra.mxu0 %v2268
    %3410 = vmatprep.subr.bf16.mxu0 %v2261
    %3411 = vmatpush2.bf16.msra.mxu0 %v2260
    %3412 = vmatprep.subr.bf16.mxu0 %v2253
    %3413 = vmatpush2.bf16.msra.mxu0 %v2252
    %3414 = vmatprep.mubr.bf16.mxu0 %v89
    %3415 = vmatmul.mubr.bf16.gmra.mxu0 %v88
    %v3416 = vpop.f32.mrf.mxu0
    %v3417 = vadd.f32 %v621, %v3416
    %v3418 = vpop.f32.mrf.mxu0
    %v3419 = vadd.f32 %v625, %v3418
    %v3420 = vpop.f32.mrf.mxu0
    %v3421 = vadd.f32 %v621, %v3420
    %v3422 = vpop.f32.mrf.mxu0
    %v3423 = vadd.f32 %v625, %v3422
    %3424 = vdwg.mxu0
    %3425 = vmatprep.subr.bf16.mxu0 %v2373
    %3426 = vmatpush1.bf16.msra.mxu0 %v2372
    %3427 = vmatprep.subr.bf16.mxu0 %v2365
    %3428 = vmatpush1.bf16.msra.mxu0 %v2364
    %3429 = vmatprep.subr.bf16.mxu0 %v2357
    %3430 = vmatpush1.bf16.msra.mxu0 %v2356
    %3431 = vmatprep.subr.bf16.mxu0 %v2349
    %3432 = vmatpush1.bf16.msra.mxu0 %v2348
    %3433 = vmatprep.subr.bf16.mxu0 %v2341
    %3434 = vmatpush1.bf16.msra.mxu0 %v2340
    %3435 = vmatprep.subr.bf16.mxu0 %v2333
    %3436 = vmatpush1.bf16.msra.mxu0 %v2332
    %3437 = vmatprep.subr.bf16.mxu0 %v2325
    %3438 = vmatpush1.bf16.msra.mxu0 %v2324
    %3439 = vmatprep.subr.bf16.mxu0 %v2317
    %3440 = vmatpush1.bf16.msra.mxu0 %v2316
    %3441 = vmatprep.subr.bf16.mxu0 %v2437
    %3442 = vmatpush2.bf16.msra.mxu0 %v2436
    %3443 = vmatprep.subr.bf16.mxu0 %v2429
    %3444 = vmatpush2.bf16.msra.mxu0 %v2428
    %3445 = vmatprep.subr.bf16.mxu0 %v2421
    %3446 = vmatpush2.bf16.msra.mxu0 %v2420
    %3447 = vmatprep.subr.bf16.mxu0 %v2413
    %3448 = vmatpush2.bf16.msra.mxu0 %v2412
    %3449 = vmatprep.subr.bf16.mxu0 %v2405
    %3450 = vmatpush2.bf16.msra.mxu0 %v2404
    %3451 = vmatprep.subr.bf16.mxu0 %v2397
    %3452 = vmatpush2.bf16.msra.mxu0 %v2396
    %3453 = vmatprep.subr.bf16.mxu0 %v2389
    %3454 = vmatpush2.bf16.msra.mxu0 %v2388
    %3455 = vmatprep.subr.bf16.mxu0 %v2381
    %3456 = vmatpush2.bf16.msra.mxu0 %v2380
    %3457 = vmatprep.mubr.bf16.mxu0 %v91
    %3458 = vmatmul.mubr.bf16.gmra.mxu0 %v90
    %v3459 = vpop.f32.mrf.mxu0
    %v3460 = vadd.f32 %v3417, %v3459
    %v3461 = vpop.f32.mrf.mxu0
    %v3462 = vadd.f32 %v3419, %v3461
    %v3463 = vpop.f32.mrf.mxu0
    %v3464 = vadd.f32 %v3421, %v3463
    %v3465 = vpop.f32.mrf.mxu0
    %v3466 = vadd.f32 %v3423, %v3465
    %3467 = vdwg.mxu0
    %3468 = vmatprep.subr.bf16.mxu0 %v2501
    %3469 = vmatpush1.bf16.msra.mxu0 %v2500
    %3470 = vmatprep.subr.bf16.mxu0 %v2493
    %3471 = vmatpush1.bf16.msra.mxu0 %v2492
    %3472 = vmatprep.subr.bf16.mxu0 %v2485
    %3473 = vmatpush1.bf16.msra.mxu0 %v2484
    %3474 = vmatprep.subr.bf16.mxu0 %v2477
    %3475 = vmatpush1.bf16.msra.mxu0 %v2476
    %3476 = vmatprep.subr.bf16.mxu0 %v2469
    %3477 = vmatpush1.bf16.msra.mxu0 %v2468
    %3478 = vmatprep.subr.bf16.mxu0 %v2461
    %3479 = vmatpush1.bf16.msra.mxu0 %v2460
    %3480 = vmatprep.subr.bf16.mxu0 %v2453
    %3481 = vmatpush1.bf16.msra.mxu0 %v2452
    %3482 = vmatprep.subr.bf16.mxu0 %v2445
    %3483 = vmatpush1.bf16.msra.mxu0 %v2444
    %3484 = vmatprep.subr.bf16.mxu0 %v2565
    %3485 = vmatpush2.bf16.msra.mxu0 %v2564
    %3486 = vmatprep.subr.bf16.mxu0 %v2557
    %3487 = vmatpush2.bf16.msra.mxu0 %v2556
    %3488 = vmatprep.subr.bf16.mxu0 %v2549
    %3489 = vmatpush2.bf16.msra.mxu0 %v2548
    %3490 = vmatprep.subr.bf16.mxu0 %v2541
    %3491 = vmatpush2.bf16.msra.mxu0 %v2540
    %3492 = vmatprep.subr.bf16.mxu0 %v2533
    %3493 = vmatpush2.bf16.msra.mxu0 %v2532
    %3494 = vmatprep.subr.bf16.mxu0 %v2525
    %3495 = vmatpush2.bf16.msra.mxu0 %v2524
    %3496 = vmatprep.subr.bf16.mxu0 %v2517
    %3497 = vmatpush2.bf16.msra.mxu0 %v2516
    %3498 = vmatprep.subr.bf16.mxu0 %v2509
    %3499 = vmatpush2.bf16.msra.mxu0 %v2508
    %3500 = vmatprep.mubr.bf16.mxu0 %v93
    %3501 = vmatmul.mubr.bf16.gmra.mxu0 %v92
    %v3502 = vpop.f32.mrf.mxu0
    %v3503 = vadd.f32 %v3460, %v3502
    %v3504 = vpop.f32.mrf.mxu0
    %v3505 = vadd.f32 %v3462, %v3504
    %v3506 = vpop.f32.mrf.mxu0
    %v3507 = vadd.f32 %v3464, %v3506
    %v3508 = vpop.f32.mrf.mxu0
    %v3509 = vadd.f32 %v3466, %v3508
    %3510 = vdwg.mxu0
    %3511 = vmatprep.subr.bf16.mxu0 %v2629
    %3512 = vmatpush1.bf16.msra.mxu0 %v2628
    %3513 = vmatprep.subr.bf16.mxu0 %v2621
    %3514 = vmatpush1.bf16.msra.mxu0 %v2620
    %3515 = vmatprep.subr.bf16.mxu0 %v2613
    %3516 = vmatpush1.bf16.msra.mxu0 %v2612
    %3517 = vmatprep.subr.bf16.mxu0 %v2605
    %3518 = vmatpush1.bf16.msra.mxu0 %v2604
    %3519 = vmatprep.subr.bf16.mxu0 %v2597
    %3520 = vmatpush1.bf16.msra.mxu0 %v2596
    %3521 = vmatprep.subr.bf16.mxu0 %v2589
    %3522 = vmatpush1.bf16.msra.mxu0 %v2588
    %3523 = vmatprep.subr.bf16.mxu0 %v2581
    %3524 = vmatpush1.bf16.msra.mxu0 %v2580
    %3525 = vmatprep.subr.bf16.mxu0 %v2573
    %3526 = vmatpush1.bf16.msra.mxu0 %v2572
    %3527 = vmatprep.subr.bf16.mxu0 %v2693
    %3528 = vmatpush2.bf16.msra.mxu0 %v2692
    %3529 = vmatprep.subr.bf16.mxu0 %v2685
    %3530 = vmatpush2.bf16.msra.mxu0 %v2684
    %3531 = vmatprep.subr.bf16.mxu0 %v2677
    %3532 = vmatpush2.bf16.msra.mxu0 %v2676
    %3533 = vmatprep.subr.bf16.mxu0 %v2669
    %3534 = vmatpush2.bf16.msra.mxu0 %v2668
    %3535 = vmatprep.subr.bf16.mxu0 %v2661
    %3536 = vmatpush2.bf16.msra.mxu0 %v2660
    %3537 = vmatprep.subr.bf16.mxu0 %v2653
    %3538 = vmatpush2.bf16.msra.mxu0 %v2652
    %3539 = vmatprep.subr.bf16.mxu0 %v2645
    %3540 = vmatpush2.bf16.msra.mxu0 %v2644
    %3541 = vmatprep.subr.bf16.mxu0 %v2637
    %3542 = vmatpush2.bf16.msra.mxu0 %v2636
    %3543 = vmatprep.mubr.bf16.mxu0 %v95
    %3544 = vmatmul.mubr.bf16.gmra.mxu0 %v94
    %v3545 = vpop.f32.mrf.mxu0
    %v3546 = vadd.f32 %v3503, %v3545
    %v3547 = vpop.f32.mrf.mxu0
    %v3548 = vadd.f32 %v3505, %v3547
    %v3549 = vpop.f32.mrf.mxu0
    %v3550 = vadd.f32 %v3507, %v3549
    %v3551 = vpop.f32.mrf.mxu0
    %v3552 = vadd.f32 %v3509, %v3551
    %3553 = vdwg.mxu0
    %3554 = vmatprep.subr.bf16.mxu0 %v2247
    %3555 = vmatpush1.bf16.msra.mxu0 %v2246
    %3556 = vmatprep.subr.bf16.mxu0 %v2239
    %3557 = vmatpush1.bf16.msra.mxu0 %v2238
    %3558 = vmatprep.subr.bf16.mxu0 %v2231
    %3559 = vmatpush1.bf16.msra.mxu0 %v2230
    %3560 = vmatprep.subr.bf16.mxu0 %v2223
    %3561 = vmatpush1.bf16.msra.mxu0 %v2222
    %3562 = vmatprep.subr.bf16.mxu0 %v2215
    %3563 = vmatpush1.bf16.msra.mxu0 %v2214
    %3564 = vmatprep.subr.bf16.mxu0 %v2207
    %3565 = vmatpush1.bf16.msra.mxu0 %v2206
    %3566 = vmatprep.subr.bf16.mxu0 %v2199
    %3567 = vmatpush1.bf16.msra.mxu0 %v2198
    %3568 = vmatprep.subr.bf16.mxu0 %v2191
    %3569 = vmatpush1.bf16.msra.mxu0 %v2190
    %3570 = vmatprep.subr.bf16.mxu0 %v2311
    %3571 = vmatpush2.bf16.msra.mxu0 %v2310
    %3572 = vmatprep.subr.bf16.mxu0 %v2303
    %3573 = vmatpush2.bf16.msra.mxu0 %v2302
    %3574 = vmatprep.subr.bf16.mxu0 %v2295
    %3575 = vmatpush2.bf16.msra.mxu0 %v2294
    %3576 = vmatprep.subr.bf16.mxu0 %v2287
    %3577 = vmatpush2.bf16.msra.mxu0 %v2286
    %3578 = vmatprep.subr.bf16.mxu0 %v2279
    %3579 = vmatpush2.bf16.msra.mxu0 %v2278
    %3580 = vmatprep.subr.bf16.mxu0 %v2271
    %3581 = vmatpush2.bf16.msra.mxu0 %v2270
    %3582 = vmatprep.subr.bf16.mxu0 %v2263
    %3583 = vmatpush2.bf16.msra.mxu0 %v2262
    %3584 = vmatprep.subr.bf16.mxu0 %v2255
    %3585 = vmatpush2.bf16.msra.mxu0 %v2254
    %3586 = vmatprep.mubr.bf16.mxu0 %v89
    %3587 = vmatmul.mubr.bf16.gmra.mxu0 %v88
    %v3588 = vpop.f32.mrf.mxu0
    %v3589 = vadd.f32 %v629, %v3588
    %v3590 = vpop.f32.mrf.mxu0
    %v3591 = vadd.f32 %v633, %v3590
    %v3592 = vpop.f32.mrf.mxu0
    %v3593 = vadd.f32 %v629, %v3592
    %v3594 = vpop.f32.mrf.mxu0
    %v3595 = vadd.f32 %v633, %v3594
    %3596 = vdwg.mxu0
    %3597 = vmatprep.subr.bf16.mxu0 %v2375
    %3598 = vmatpush1.bf16.msra.mxu0 %v2374
    %3599 = vmatprep.subr.bf16.mxu0 %v2367
    %3600 = vmatpush1.bf16.msra.mxu0 %v2366
    %3601 = vmatprep.subr.bf16.mxu0 %v2359
    %3602 = vmatpush1.bf16.msra.mxu0 %v2358
    %3603 = vmatprep.subr.bf16.mxu0 %v2351
    %3604 = vmatpush1.bf16.msra.mxu0 %v2350
    %3605 = vmatprep.subr.bf16.mxu0 %v2343
    %3606 = vmatpush1.bf16.msra.mxu0 %v2342
    %3607 = vmatprep.subr.bf16.mxu0 %v2335
    %3608 = vmatpush1.bf16.msra.mxu0 %v2334
    %3609 = vmatprep.subr.bf16.mxu0 %v2327
    %3610 = vmatpush1.bf16.msra.mxu0 %v2326
    %3611 = vmatprep.subr.bf16.mxu0 %v2319
    %3612 = vmatpush1.bf16.msra.mxu0 %v2318
    %3613 = vmatprep.subr.bf16.mxu0 %v2439
    %3614 = vmatpush2.bf16.msra.mxu0 %v2438
    %3615 = vmatprep.subr.bf16.mxu0 %v2431
    %3616 = vmatpush2.bf16.msra.mxu0 %v2430
    %3617 = vmatprep.subr.bf16.mxu0 %v2423
    %3618 = vmatpush2.bf16.msra.mxu0 %v2422
    %3619 = vmatprep.subr.bf16.mxu0 %v2415
    %3620 = vmatpush2.bf16.msra.mxu0 %v2414
    %3621 = vmatprep.subr.bf16.mxu0 %v2407
    %3622 = vmatpush2.bf16.msra.mxu0 %v2406
    %3623 = vmatprep.subr.bf16.mxu0 %v2399
    %3624 = vmatpush2.bf16.msra.mxu0 %v2398
    %3625 = vmatprep.subr.bf16.mxu0 %v2391
    %3626 = vmatpush2.bf16.msra.mxu0 %v2390
    %3627 = vmatprep.subr.bf16.mxu0 %v2383
    %3628 = vmatpush2.bf16.msra.mxu0 %v2382
    %3629 = vmatprep.mubr.bf16.mxu0 %v91
    %3630 = vmatmul.mubr.bf16.gmra.mxu0 %v90
    %v3631 = vpop.f32.mrf.mxu0
    %v3632 = vadd.f32 %v3589, %v3631
    %v3633 = vpop.f32.mrf.mxu0
    %v3634 = vadd.f32 %v3591, %v3633
    %v3635 = vpop.f32.mrf.mxu0
    %v3636 = vadd.f32 %v3593, %v3635
    %v3637 = vpop.f32.mrf.mxu0
    %v3638 = vadd.f32 %v3595, %v3637
    %3639 = vdwg.mxu0
    %3640 = vmatprep.subr.bf16.mxu0 %v2503
    %3641 = vmatpush1.bf16.msra.mxu0 %v2502
    %3642 = vmatprep.subr.bf16.mxu0 %v2495
    %3643 = vmatpush1.bf16.msra.mxu0 %v2494
    %3644 = vmatprep.subr.bf16.mxu0 %v2487
    %3645 = vmatpush1.bf16.msra.mxu0 %v2486
    %3646 = vmatprep.subr.bf16.mxu0 %v2479
    %3647 = vmatpush1.bf16.msra.mxu0 %v2478
    %3648 = vmatprep.subr.bf16.mxu0 %v2471
    %3649 = vmatpush1.bf16.msra.mxu0 %v2470
    %3650 = vmatprep.subr.bf16.mxu0 %v2463
    %3651 = vmatpush1.bf16.msra.mxu0 %v2462
    %3652 = vmatprep.subr.bf16.mxu0 %v2455
    %3653 = vmatpush1.bf16.msra.mxu0 %v2454
    %3654 = vmatprep.subr.bf16.mxu0 %v2447
    %3655 = vmatpush1.bf16.msra.mxu0 %v2446
    %3656 = vmatprep.subr.bf16.mxu0 %v2567
    %3657 = vmatpush2.bf16.msra.mxu0 %v2566
    %3658 = vmatprep.subr.bf16.mxu0 %v2559
    %3659 = vmatpush2.bf16.msra.mxu0 %v2558
    %3660 = vmatprep.subr.bf16.mxu0 %v2551
    %3661 = vmatpush2.bf16.msra.mxu0 %v2550
    %3662 = vmatprep.subr.bf16.mxu0 %v2543
    %3663 = vmatpush2.bf16.msra.mxu0 %v2542
    %3664 = vmatprep.subr.bf16.mxu0 %v2535
    %3665 = vmatpush2.bf16.msra.mxu0 %v2534
    %3666 = vmatprep.subr.bf16.mxu0 %v2527
    %3667 = vmatpush2.bf16.msra.mxu0 %v2526
    %3668 = vmatprep.subr.bf16.mxu0 %v2519
    %3669 = vmatpush2.bf16.msra.mxu0 %v2518
    %3670 = vmatprep.subr.bf16.mxu0 %v2511
    %3671 = vmatpush2.bf16.msra.mxu0 %v2510
    %3672 = vmatprep.mubr.bf16.mxu0 %v93
    %3673 = vmatmul.mubr.bf16.gmra.mxu0 %v92
    %v3674 = vpop.f32.mrf.mxu0
    %v3675 = vadd.f32 %v3632, %v3674
    %v3676 = vpop.f32.mrf.mxu0
    %v3677 = vadd.f32 %v3634, %v3676
    %v3678 = vpop.f32.mrf.mxu0
    %v3679 = vadd.f32 %v3636, %v3678
    %v3680 = vpop.f32.mrf.mxu0
    %v3681 = vadd.f32 %v3638, %v3680
    %3682 = vdwg.mxu0
    %3683 = vmatprep.subr.bf16.mxu0 %v2631
    %3684 = vmatpush1.bf16.msra.mxu0 %v2630
    %3685 = vmatprep.subr.bf16.mxu0 %v2623
    %3686 = vmatpush1.bf16.msra.mxu0 %v2622
    %3687 = vmatprep.subr.bf16.mxu0 %v2615
    %3688 = vmatpush1.bf16.msra.mxu0 %v2614
    %3689 = vmatprep.subr.bf16.mxu0 %v2607
    %3690 = vmatpush1.bf16.msra.mxu0 %v2606
    %3691 = vmatprep.subr.bf16.mxu0 %v2599
    %3692 = vmatpush1.bf16.msra.mxu0 %v2598
    %3693 = vmatprep.subr.bf16.mxu0 %v2591
    %3694 = vmatpush1.bf16.msra.mxu0 %v2590
    %3695 = vmatprep.subr.bf16.mxu0 %v2583
    %3696 = vmatpush1.bf16.msra.mxu0 %v2582
    %3697 = vmatprep.subr.bf16.mxu0 %v2575
    %3698 = vmatpush1.bf16.msra.mxu0 %v2574
    %3699 = vmatprep.subr.bf16.mxu0 %v2695
    %3700 = vmatpush2.bf16.msra.mxu0 %v2694
    %3701 = vmatprep.subr.bf16.mxu0 %v2687
    %3702 = vmatpush2.bf16.msra.mxu0 %v2686
    %3703 = vmatprep.subr.bf16.mxu0 %v2679
    %3704 = vmatpush2.bf16.msra.mxu0 %v2678
    %3705 = vmatprep.subr.bf16.mxu0 %v2671
    %3706 = vmatpush2.bf16.msra.mxu0 %v2670
    %3707 = vmatprep.subr.bf16.mxu0 %v2663
    %3708 = vmatpush2.bf16.msra.mxu0 %v2662
    %3709 = vmatprep.subr.bf16.mxu0 %v2655
    %3710 = vmatpush2.bf16.msra.mxu0 %v2654
    %3711 = vmatprep.subr.bf16.mxu0 %v2647
    %3712 = vmatpush2.bf16.msra.mxu0 %v2646
    %3713 = vmatprep.subr.bf16.mxu0 %v2639
    %3714 = vmatpush2.bf16.msra.mxu0 %v2638
    %3715 = vmatprep.mubr.bf16.mxu0 %v95
    %3716 = vmatmul.mubr.bf16.gmra.mxu0 %v94
    %v3717 = vpop.f32.mrf.mxu0
    %v3718 = vadd.f32 %v3675, %v3717
    %v3719 = vpop.f32.mrf.mxu0
    %v3720 = vadd.f32 %v3677, %v3719
    %v3721 = vpop.f32.mrf.mxu0
    %v3722 = vadd.f32 %v3679, %v3721
    %v3723 = vpop.f32.mrf.mxu0
    %v3724 = vadd.f32 %v3681, %v3723
    %3725 = vdwg.mxu0
    %3726 = vmatprep.subr.bf16.mxu0 %v2249
    %3727 = vmatpush1.bf16.msra.mxu0 %v2248
    %3728 = vmatprep.subr.bf16.mxu0 %v2241
    %3729 = vmatpush1.bf16.msra.mxu0 %v2240
    %3730 = vmatprep.subr.bf16.mxu0 %v2233
    %3731 = vmatpush1.bf16.msra.mxu0 %v2232
    %3732 = vmatprep.subr.bf16.mxu0 %v2225
    %3733 = vmatpush1.bf16.msra.mxu0 %v2224
    %3734 = vmatprep.subr.bf16.mxu0 %v2217
    %3735 = vmatpush1.bf16.msra.mxu0 %v2216
    %3736 = vmatprep.subr.bf16.mxu0 %v2209
    %3737 = vmatpush1.bf16.msra.mxu0 %v2208
    %3738 = vmatprep.subr.bf16.mxu0 %v2201
    %3739 = vmatpush1.bf16.msra.mxu0 %v2200
    %3740 = vmatprep.subr.bf16.mxu0 %v2193
    %3741 = vmatpush1.bf16.msra.mxu0 %v2192
    %3742 = vmatprep.subr.bf16.mxu0 %v2313
    %3743 = vmatpush2.bf16.msra.mxu0 %v2312
    %3744 = vmatprep.subr.bf16.mxu0 %v2305
    %3745 = vmatpush2.bf16.msra.mxu0 %v2304
    %3746 = vmatprep.subr.bf16.mxu0 %v2297
    %3747 = vmatpush2.bf16.msra.mxu0 %v2296
    %3748 = vmatprep.subr.bf16.mxu0 %v2289
    %3749 = vmatpush2.bf16.msra.mxu0 %v2288
    %3750 = vmatprep.subr.bf16.mxu0 %v2281
    %3751 = vmatpush2.bf16.msra.mxu0 %v2280
    %3752 = vmatprep.subr.bf16.mxu0 %v2273
    %3753 = vmatpush2.bf16.msra.mxu0 %v2272
    %3754 = vmatprep.subr.bf16.mxu0 %v2265
    %3755 = vmatpush2.bf16.msra.mxu0 %v2264
    %3756 = vmatprep.subr.bf16.mxu0 %v2257
    %3757 = vmatpush2.bf16.msra.mxu0 %v2256
    %3758 = vmatprep.mubr.bf16.mxu0 %v89
    %3759 = vmatmul.mubr.bf16.gmra.mxu0 %v88
    %v3760 = vpop.f32.mrf.mxu0
    %v3761 = vadd.f32 %v637, %v3760
    %v3762 = vpop.f32.mrf.mxu0
    %v3763 = vadd.f32 %v641, %v3762
    %v3764 = vpop.f32.mrf.mxu0
    %v3765 = vadd.f32 %v637, %v3764
    %v3766 = vpop.f32.mrf.mxu0
    %v3767 = vadd.f32 %v641, %v3766
    %3768 = vdwg.mxu0
    %3769 = vmatprep.subr.bf16.mxu0 %v2377
    %3770 = vmatpush1.bf16.msra.mxu0 %v2376
    %3771 = vmatprep.subr.bf16.mxu0 %v2369
    %3772 = vmatpush1.bf16.msra.mxu0 %v2368
    %3773 = vmatprep.subr.bf16.mxu0 %v2361
    %3774 = vmatpush1.bf16.msra.mxu0 %v2360
    %3775 = vmatprep.subr.bf16.mxu0 %v2353
    %3776 = vmatpush1.bf16.msra.mxu0 %v2352
    %3777 = vmatprep.subr.bf16.mxu0 %v2345
    %3778 = vmatpush1.bf16.msra.mxu0 %v2344
    %3779 = vmatprep.subr.bf16.mxu0 %v2337
    %3780 = vmatpush1.bf16.msra.mxu0 %v2336
    %3781 = vmatprep.subr.bf16.mxu0 %v2329
    %3782 = vmatpush1.bf16.msra.mxu0 %v2328
    %3783 = vmatprep.subr.bf16.mxu0 %v2321
    %3784 = vmatpush1.bf16.msra.mxu0 %v2320
    %3785 = vmatprep.subr.bf16.mxu0 %v2441
    %3786 = vmatpush2.bf16.msra.mxu0 %v2440
    %3787 = vmatprep.subr.bf16.mxu0 %v2433
    %3788 = vmatpush2.bf16.msra.mxu0 %v2432
    %3789 = vmatprep.subr.bf16.mxu0 %v2425
    %3790 = vmatpush2.bf16.msra.mxu0 %v2424
    %3791 = vmatprep.subr.bf16.mxu0 %v2417
    %3792 = vmatpush2.bf16.msra.mxu0 %v2416
    %3793 = vmatprep.subr.bf16.mxu0 %v2409
    %3794 = vmatpush2.bf16.msra.mxu0 %v2408
    %3795 = vmatprep.subr.bf16.mxu0 %v2401
    %3796 = vmatpush2.bf16.msra.mxu0 %v2400
    %3797 = vmatprep.subr.bf16.mxu0 %v2393
    %3798 = vmatpush2.bf16.msra.mxu0 %v2392
    %3799 = vmatprep.subr.bf16.mxu0 %v2385
    %3800 = vmatpush2.bf16.msra.mxu0 %v2384
    %3801 = vmatprep.mubr.bf16.mxu0 %v91
    %3802 = vmatmul.mubr.bf16.gmra.mxu0 %v90
    %v3803 = vpop.f32.mrf.mxu0
    %v3804 = vadd.f32 %v3761, %v3803
    %v3805 = vpop.f32.mrf.mxu0
    %v3806 = vadd.f32 %v3763, %v3805
    %v3807 = vpop.f32.mrf.mxu0
    %v3808 = vadd.f32 %v3765, %v3807
    %v3809 = vpop.f32.mrf.mxu0
    %v3810 = vadd.f32 %v3767, %v3809
    %3811 = vdwg.mxu0
    %3812 = vmatprep.subr.bf16.mxu0 %v2505
    %3813 = vmatpush1.bf16.msra.mxu0 %v2504
    %3814 = vmatprep.subr.bf16.mxu0 %v2497
    %3815 = vmatpush1.bf16.msra.mxu0 %v2496
    %3816 = vmatprep.subr.bf16.mxu0 %v2489
    %3817 = vmatpush1.bf16.msra.mxu0 %v2488
    %3818 = vmatprep.subr.bf16.mxu0 %v2481
    %3819 = vmatpush1.bf16.msra.mxu0 %v2480
    %3820 = vmatprep.subr.bf16.mxu0 %v2473
    %3821 = vmatpush1.bf16.msra.mxu0 %v2472
    %3822 = vmatprep.subr.bf16.mxu0 %v2465
    %3823 = vmatpush1.bf16.msra.mxu0 %v2464
    %3824 = vmatprep.subr.bf16.mxu0 %v2457
    %3825 = vmatpush1.bf16.msra.mxu0 %v2456
    %3826 = vmatprep.subr.bf16.mxu0 %v2449
    %3827 = vmatpush1.bf16.msra.mxu0 %v2448
    %3828 = vmatprep.subr.bf16.mxu0 %v2569
    %3829 = vmatpush2.bf16.msra.mxu0 %v2568
    %3830 = vmatprep.subr.bf16.mxu0 %v2561
    %3831 = vmatpush2.bf16.msra.mxu0 %v2560
    %3832 = vmatprep.subr.bf16.mxu0 %v2553
    %3833 = vmatpush2.bf16.msra.mxu0 %v2552
    %3834 = vmatprep.subr.bf16.mxu0 %v2545
    %3835 = vmatpush2.bf16.msra.mxu0 %v2544
    %3836 = vmatprep.subr.bf16.mxu0 %v2537
    %3837 = vmatpush2.bf16.msra.mxu0 %v2536
    %3838 = vmatprep.subr.bf16.mxu0 %v2529
    %3839 = vmatpush2.bf16.msra.mxu0 %v2528
    %3840 = vmatprep.subr.bf16.mxu0 %v2521
    %3841 = vmatpush2.bf16.msra.mxu0 %v2520
    %3842 = vmatprep.subr.bf16.mxu0 %v2513
    %3843 = vmatpush2.bf16.msra.mxu0 %v2512
    %3844 = vmatprep.mubr.bf16.mxu0 %v93
    %3845 = vmatmul.mubr.bf16.gmra.mxu0 %v92
    %v3846 = vpop.f32.mrf.mxu0
    %v3847 = vadd.f32 %v3804, %v3846
    %v3848 = vpop.f32.mrf.mxu0
    %v3849 = vadd.f32 %v3806, %v3848
    %v3850 = vpop.f32.mrf.mxu0
    %v3851 = vadd.f32 %v3808, %v3850
    %v3852 = vpop.f32.mrf.mxu0
    %v3853 = vadd.f32 %v3810, %v3852
    %3854 = vdwg.mxu0
    %3855 = vmatprep.subr.bf16.mxu0 %v2633
    %3856 = vmatpush1.bf16.msra.mxu0 %v2632
    %3857 = vmatprep.subr.bf16.mxu0 %v2625
    %3858 = vmatpush1.bf16.msra.mxu0 %v2624
    %3859 = vmatprep.subr.bf16.mxu0 %v2617
    %3860 = vmatpush1.bf16.msra.mxu0 %v2616
    %3861 = vmatprep.subr.bf16.mxu0 %v2609
    %3862 = vmatpush1.bf16.msra.mxu0 %v2608
    %3863 = vmatprep.subr.bf16.mxu0 %v2601
    %3864 = vmatpush1.bf16.msra.mxu0 %v2600
    %3865 = vmatprep.subr.bf16.mxu0 %v2593
    %3866 = vmatpush1.bf16.msra.mxu0 %v2592
    %3867 = vmatprep.subr.bf16.mxu0 %v2585
    %3868 = vmatpush1.bf16.msra.mxu0 %v2584
    %3869 = vmatprep.subr.bf16.mxu0 %v2577
    %3870 = vmatpush1.bf16.msra.mxu0 %v2576
    %3871 = vmatprep.subr.bf16.mxu0 %v2697
    %3872 = vmatpush2.bf16.msra.mxu0 %v2696
    %3873 = vmatprep.subr.bf16.mxu0 %v2689
    %3874 = vmatpush2.bf16.msra.mxu0 %v2688
    %3875 = vmatprep.subr.bf16.mxu0 %v2681
    %3876 = vmatpush2.bf16.msra.mxu0 %v2680
    %3877 = vmatprep.subr.bf16.mxu0 %v2673
    %3878 = vmatpush2.bf16.msra.mxu0 %v2672
    %3879 = vmatprep.subr.bf16.mxu0 %v2665
    %3880 = vmatpush2.bf16.msra.mxu0 %v2664
    %3881 = vmatprep.subr.bf16.mxu0 %v2657
    %3882 = vmatpush2.bf16.msra.mxu0 %v2656
    %3883 = vmatprep.subr.bf16.mxu0 %v2649
    %3884 = vmatpush2.bf16.msra.mxu0 %v2648
    %3885 = vmatprep.subr.bf16.mxu0 %v2641
    %3886 = vmatpush2.bf16.msra.mxu0 %v2640
    %3887 = vmatprep.mubr.bf16.mxu0 %v95
    %3888 = vmatmul.mubr.bf16.gmra.mxu0 %v94
    %v3889 = vpop.f32.mrf.mxu0
    %v3890 = vadd.f32 %v3847, %v3889
    %v3891 = vpop.f32.mrf.mxu0
    %v3892 = vadd.f32 %v3849, %v3891
    %v3893 = vpop.f32.mrf.mxu0
    %v3894 = vadd.f32 %v3851, %v3893
    %v3895 = vpop.f32.mrf.mxu0
    %v3896 = vadd.f32 %v3853, %v3895
    %3897 = vdwg.mxu0
    %v3898 = vsub.f32 0.0, %v3374
    %v3899 = vsub.f32 0.0, %v3376
    %v3900 = vsub.f32 0.0, %v3546
    %v3901 = vsub.f32 0.0, %v3548
    %v3902 = vsub.f32 0.0, %v3718
    %v3903 = vsub.f32 0.0, %v3720
    %v3904 = vsub.f32 0.0, %v3890
    %v3905 = vsub.f32 0.0, %v3892
    %v3906 = vsub.f32 0.0, %v3378
    %v3907 = vsub.f32 0.0, %v3380
    %v3908 = vsub.f32 0.0, %v3550
    %v3909 = vsub.f32 0.0, %v3552
    %v3910 = vsub.f32 0.0, %v3722
    %v3911 = vsub.f32 0.0, %v3724
    %v3912 = vsub.f32 0.0, %v3894
    %v3913 = vsub.f32 0.0, %v3896
    %v3914 = vmul.f32 %v3898, 1.442695
    %v3915 = vpow.pop %v3914
    %v3916 = vmul.f32 %v3899, 1.442695
    %v3917 = vpow.pop %v3916
    %v3918 = vmul.f32 %v3900, 1.442695
    %v3919 = vpow.pop %v3918
    %v3920 = vmul.f32 %v3901, 1.442695
    %v3921 = vpow.pop %v3920
    %v3922 = vmul.f32 %v3902, 1.442695
    %v3923 = vpow.pop %v3922
    %v3924 = vmul.f32 %v3903, 1.442695
    %v3925 = vpow.pop %v3924
    %v3926 = vmul.f32 %v3904, 1.442695
    %v3927 = vpow.pop %v3926
    %v3928 = vmul.f32 %v3905, 1.442695
    %v3929 = vpow.pop %v3928
    %v3930 = vmul.f32 %v3906, 1.442695
    %v3931 = vpow.pop %v3930
    %v3932 = vmul.f32 %v3907, 1.442695
    %v3933 = vpow.pop %v3932
    %v3934 = vmul.f32 %v3908, 1.442695
    %v3935 = vpow.pop %v3934
    %v3936 = vmul.f32 %v3909, 1.442695
    %v3937 = vpow.pop %v3936
    %v3938 = vmul.f32 %v3910, 1.442695
    %v3939 = vpow.pop %v3938
    %v3940 = vmul.f32 %v3911, 1.442695
    %v3941 = vpow.pop %v3940
    %v3942 = vmul.f32 %v3912, 1.442695
    %v3943 = vpow.pop %v3942
    %v3944 = vmul.f32 %v3913, 1.442695
    %v3945 = vpow.pop %v3944
    %v3946 = vadd.f32 %v3915, 1.0
    %v3947 = vadd.f32 %v3917, 1.0
    %v3948 = vadd.f32 %v3919, 1.0
    %v3949 = vadd.f32 %v3921, 1.0
    %v3950 = vadd.f32 %v3923, 1.0
    %v3951 = vadd.f32 %v3925, 1.0
    %v3952 = vadd.f32 %v3927, 1.0
    %v3953 = vadd.f32 %v3929, 1.0
    %v3954 = vadd.f32 %v3931, 1.0
    %v3955 = vadd.f32 %v3933, 1.0
    %v3956 = vadd.f32 %v3935, 1.0
    %v3957 = vadd.f32 %v3937, 1.0
    %v3958 = vadd.f32 %v3939, 1.0
    %v3959 = vadd.f32 %v3941, 1.0
    %v3960 = vadd.f32 %v3943, 1.0
    %v3961 = vadd.f32 %v3945, 1.0
    %v3962 = vrcp.pop %v3946
    %v3963 = vrcp.pop %v3947
    %v3964 = vrcp.pop %v3948
    %v3965 = vrcp.pop %v3949
    %v3966 = vrcp.pop %v3950
    %v3967 = vrcp.pop %v3951
    %v3968 = vrcp.pop %v3952
    %v3969 = vrcp.pop %v3953
    %v3970 = vrcp.pop %v3954
    %v3971 = vrcp.pop %v3955
    %v3972 = vrcp.pop %v3956
    %v3973 = vrcp.pop %v3957
    %v3974 = vrcp.pop %v3958
    %v3975 = vrcp.pop %v3959
    %v3976 = vrcp.pop %v3960
    %v3977 = vrcp.pop %v3961
    %v3978 = vmul.f32 %v3374, %v3962
    %v3979 = vmul.f32 %v3376, %v3963
    %v3980 = vmul.f32 %v3546, %v3964
    %v3981 = vmul.f32 %v3548, %v3965
    %v3982 = vmul.f32 %v3718, %v3966
    %v3983 = vmul.f32 %v3720, %v3967
    %v3984 = vmul.f32 %v3890, %v3968
    %v3985 = vmul.f32 %v3892, %v3969
    %v3986 = vmul.f32 %v3378, %v3970
    %v3987 = vmul.f32 %v3380, %v3971
    %v3988 = vmul.f32 %v3550, %v3972
    %v3989 = vmul.f32 %v3552, %v3973
    %v3990 = vmul.f32 %v3722, %v3974
    %v3991 = vmul.f32 %v3724, %v3975
    %v3992 = vmul.f32 %v3894, %v3976
    %v3993 = vmul.f32 %v3896, %v3977
    %v3994 = vpack.c.bf16 %v3986, %v3978
    %v3995 = vpack.c.bf16 %v3987, %v3979
    %v3996 = vpack.c.bf16 %v3988, %v3980
    %v3997 = vpack.c.bf16 %v3989, %v3981
    %v3998 = vpack.c.bf16 %v3990, %v3982
    %v3999 = vpack.c.bf16 %v3991, %v3983
    %v4000 = vpack.c.bf16 %v3992, %v3984
    %v4001 = vpack.c.bf16 %v3993, %v3985
    %v4002 = vld [vmem:[#allocation8] sm:$0xf]
    %v4003 = vld [vmem:[#allocation8 + $0x4] sm:$0xf]
    %v4004 = vld [vmem:[#allocation8 + $0x8] sm:$0xf]
    %v4005 = vld [vmem:[#allocation8 + $0xc] sm:$0xf]
    %v4006 = vld [vmem:[#allocation8 + $0x10] sm:$0xf]
    %v4007 = vld [vmem:[#allocation8 + $0x14] sm:$0xf]
    %v4008 = vld [vmem:[#allocation8 + $0x18] sm:$0xf]
    %v4009 = vld [vmem:[#allocation8 + $0x1c] sm:$0xf]
    %v4010 = vld [vmem:[#allocation8 + $0x20] sm:$0xf]
    %v4011 = vld [vmem:[#allocation8 + $0x24] sm:$0xf]
    %v4012 = vld [vmem:[#allocation8 + $0x28] sm:$0xf]
    %v4013 = vld [vmem:[#allocation8 + $0x2c] sm:$0xf]
    %v4014 = vld [vmem:[#allocation8 + $0x30] sm:$0xf]
    %v4015 = vld [vmem:[#allocation8 + $0x34] sm:$0xf]
    %v4016 = vld [vmem:[#allocation8 + $0x38] sm:$0xf]
    %v4017 = vld [vmem:[#allocation8 + $0x3c] sm:$0xf]
    %v4018 = vld [vmem:[#allocation8 + $0x40] sm:$0xf]
    %v4019 = vld [vmem:[#allocation8 + $0x44] sm:$0xf]
    %v4020 = vld [vmem:[#allocation8 + $0x48] sm:$0xf]
    %v4021 = vld [vmem:[#allocation8 + $0x4c] sm:$0xf]
    %v4022 = vld [vmem:[#allocation8 + $0x50] sm:$0xf]
    %v4023 = vld [vmem:[#allocation8 + $0x54] sm:$0xf]
    %v4024 = vld [vmem:[#allocation8 + $0x58] sm:$0xf]
    %v4025 = vld [vmem:[#allocation8 + $0x5c] sm:$0xf]
    %v4026 = vld [vmem:[#allocation8 + $0x60] sm:$0xf]
    %v4027 = vld [vmem:[#allocation8 + $0x64] sm:$0xf]
    %v4028 = vld [vmem:[#allocation8 + $0x68] sm:$0xf]
    %v4029 = vld [vmem:[#allocation8 + $0x6c] sm:$0xf]
    %v4030 = vld [vmem:[#allocation8 + $0x70] sm:$0xf]
    %v4031 = vld [vmem:[#allocation8 + $0x74] sm:$0xf]
    %v4032 = vld [vmem:[#allocation8 + $0x78] sm:$0xf]
    %v4033 = vld [vmem:[#allocation8 + $0x7c] sm:$0xf]
    %v4034 = vld [vmem:[#allocation8 + $0x80] sm:$0xf]
    %v4035 = vld [vmem:[#allocation8 + $0x84] sm:$0xf]
    %v4036 = vld [vmem:[#allocation8 + $0x88] sm:$0xf]
    %v4037 = vld [vmem:[#allocation8 + $0x8c] sm:$0xf]
    %v4038 = vld [vmem:[#allocation8 + $0x90] sm:$0xf]
    %v4039 = vld [vmem:[#allocation8 + $0x94] sm:$0xf]
    %v4040 = vld [vmem:[#allocation8 + $0x98] sm:$0xf]
    %v4041 = vld [vmem:[#allocation8 + $0x9c] sm:$0xf]
    %v4042 = vld [vmem:[#allocation8 + $0xa0] sm:$0xf]
    %v4043 = vld [vmem:[#allocation8 + $0xa4] sm:$0xf]
    %v4044 = vld [vmem:[#allocation8 + $0xa8] sm:$0xf]
    %v4045 = vld [vmem:[#allocation8 + $0xac] sm:$0xf]
    %v4046 = vld [vmem:[#allocation8 + $0xb0] sm:$0xf]
    %v4047 = vld [vmem:[#allocation8 + $0xb4] sm:$0xf]
    %v4048 = vld [vmem:[#allocation8 + $0xb8] sm:$0xf]
    %v4049 = vld [vmem:[#allocation8 + $0xbc] sm:$0xf]
    %v4050 = vld [vmem:[#allocation8 + $0xc0] sm:$0xf]
    %v4051 = vld [vmem:[#allocation8 + $0xc4] sm:$0xf]
    %v4052 = vld [vmem:[#allocation8 + $0xc8] sm:$0xf]
    %v4053 = vld [vmem:[#allocation8 + $0xcc] sm:$0xf]
    %v4054 = vld [vmem:[#allocation8 + $0xd0] sm:$0xf]
    %v4055 = vld [vmem:[#allocation8 + $0xd4] sm:$0xf]
    %v4056 = vld [vmem:[#allocation8 + $0xd8] sm:$0xf]
    %v4057 = vld [vmem:[#allocation8 + $0xdc] sm:$0xf]
    %v4058 = vld [vmem:[#allocation8 + $0xe0] sm:$0xf]
    %v4059 = vld [vmem:[#allocation8 + $0xe4] sm:$0xf]
    %v4060 = vld [vmem:[#allocation8 + $0xe8] sm:$0xf]
    %v4061 = vld [vmem:[#allocation8 + $0xec] sm:$0xf]
    %v4062 = vld [vmem:[#allocation8 + $0xf0] sm:$0xf]
    %v4063 = vld [vmem:[#allocation8 + $0xf4] sm:$0xf]
    %v4064 = vld [vmem:[#allocation8 + $0xf8] sm:$0xf]
    %v4065 = vld [vmem:[#allocation8 + $0xfc] sm:$0xf]
    %v4066 = vld [vmem:[#allocation8 + $0x100] sm:$0xf]
    %v4067 = vld [vmem:[#allocation8 + $0x104] sm:$0xf]
    %v4068 = vld [vmem:[#allocation8 + $0x108] sm:$0xf]
    %v4069 = vld [vmem:[#allocation8 + $0x10c] sm:$0xf]
    %v4070 = vld [vmem:[#allocation8 + $0x110] sm:$0xf]
    %v4071 = vld [vmem:[#allocation8 + $0x114] sm:$0xf]
    %v4072 = vld [vmem:[#allocation8 + $0x118] sm:$0xf]
    %v4073 = vld [vmem:[#allocation8 + $0x11c] sm:$0xf]
    %v4074 = vld [vmem:[#allocation8 + $0x120] sm:$0xf]
    %v4075 = vld [vmem:[#allocation8 + $0x124] sm:$0xf]
    %v4076 = vld [vmem:[#allocation8 + $0x128] sm:$0xf]
    %v4077 = vld [vmem:[#allocation8 + $0x12c] sm:$0xf]
    %v4078 = vld [vmem:[#allocation8 + $0x130] sm:$0xf]
    %v4079 = vld [vmem:[#allocation8 + $0x134] sm:$0xf]
    %v4080 = vld [vmem:[#allocation8 + $0x138] sm:$0xf]
    %v4081 = vld [vmem:[#allocation8 + $0x13c] sm:$0xf]
    %v4082 = vld [vmem:[#allocation8 + $0x140] sm:$0xf]
    %v4083 = vld [vmem:[#allocation8 + $0x144] sm:$0xf]
    %v4084 = vld [vmem:[#allocation8 + $0x148] sm:$0xf]
    %v4085 = vld [vmem:[#allocation8 + $0x14c] sm:$0xf]
    %v4086 = vld [vmem:[#allocation8 + $0x150] sm:$0xf]
    %v4087 = vld [vmem:[#allocation8 + $0x154] sm:$0xf]
    %v4088 = vld [vmem:[#allocation8 + $0x158] sm:$0xf]
    %v4089 = vld [vmem:[#allocation8 + $0x15c] sm:$0xf]
    %v4090 = vld [vmem:[#allocation8 + $0x160] sm:$0xf]
    %v4091 = vld [vmem:[#allocation8 + $0x164] sm:$0xf]
    %v4092 = vld [vmem:[#allocation8 + $0x168] sm:$0xf]
    %v4093 = vld [vmem:[#allocation8 + $0x16c] sm:$0xf]
    %v4094 = vld [vmem:[#allocation8 + $0x170] sm:$0xf]
    %v4095 = vld [vmem:[#allocation8 + $0x174] sm:$0xf]
    %v4096 = vld [vmem:[#allocation8 + $0x178] sm:$0xf]
    %v4097 = vld [vmem:[#allocation8 + $0x17c] sm:$0xf]
    %v4098 = vld [vmem:[#allocation8 + $0x180] sm:$0xf]
    %v4099 = vld [vmem:[#allocation8 + $0x184] sm:$0xf]
    %v4100 = vld [vmem:[#allocation8 + $0x188] sm:$0xf]
    %v4101 = vld [vmem:[#allocation8 + $0x18c] sm:$0xf]
    %v4102 = vld [vmem:[#allocation8 + $0x190] sm:$0xf]
    %v4103 = vld [vmem:[#allocation8 + $0x194] sm:$0xf]
    %v4104 = vld [vmem:[#allocation8 + $0x198] sm:$0xf]
    %v4105 = vld [vmem:[#allocation8 + $0x19c] sm:$0xf]
    %v4106 = vld [vmem:[#allocation8 + $0x1a0] sm:$0xf]
    %v4107 = vld [vmem:[#allocation8 + $0x1a4] sm:$0xf]
    %v4108 = vld [vmem:[#allocation8 + $0x1a8] sm:$0xf]
    %v4109 = vld [vmem:[#allocation8 + $0x1ac] sm:$0xf]
    %v4110 = vld [vmem:[#allocation8 + $0x1b0] sm:$0xf]
    %v4111 = vld [vmem:[#allocation8 + $0x1b4] sm:$0xf]
    %v4112 = vld [vmem:[#allocation8 + $0x1b8] sm:$0xf]
    %v4113 = vld [vmem:[#allocation8 + $0x1bc] sm:$0xf]
    %v4114 = vld [vmem:[#allocation8 + $0x1c0] sm:$0xf]
    %v4115 = vld [vmem:[#allocation8 + $0x1c4] sm:$0xf]
    %v4116 = vld [vmem:[#allocation8 + $0x1c8] sm:$0xf]
    %v4117 = vld [vmem:[#allocation8 + $0x1cc] sm:$0xf]
    %v4118 = vld [vmem:[#allocation8 + $0x1d0] sm:$0xf]
    %v4119 = vld [vmem:[#allocation8 + $0x1d4] sm:$0xf]
    %v4120 = vld [vmem:[#allocation8 + $0x1d8] sm:$0xf]
    %v4121 = vld [vmem:[#allocation8 + $0x1dc] sm:$0xf]
    %v4122 = vld [vmem:[#allocation8 + $0x1e0] sm:$0xf]
    %v4123 = vld [vmem:[#allocation8 + $0x1e4] sm:$0xf]
    %v4124 = vld [vmem:[#allocation8 + $0x1e8] sm:$0xf]
    %v4125 = vld [vmem:[#allocation8 + $0x1ec] sm:$0xf]
    %v4126 = vld [vmem:[#allocation8 + $0x1f0] sm:$0xf]
    %v4127 = vld [vmem:[#allocation8 + $0x1f4] sm:$0xf]
    %v4128 = vld [vmem:[#allocation8 + $0x1f8] sm:$0xf]
    %v4129 = vld [vmem:[#allocation8 + $0x1fc] sm:$0xf]
    %v4258 = vunpack.c.l.b16 %v4002
    %v4259 = vunpack.c.l.b16 %v4003
    %v4260 = vunpack.c.l.b16 %v4004
    %v4261 = vunpack.c.l.b16 %v4005
    %v4262 = vunpack.c.l.b16 %v4006
    %v4263 = vunpack.c.l.b16 %v4007
    %v4264 = vunpack.c.l.b16 %v4008
    %v4265 = vunpack.c.l.b16 %v4009
    %v4266 = vunpack.c.l.b16 %v4010
    %v4267 = vunpack.c.l.b16 %v4011
    %v4268 = vunpack.c.l.b16 %v4012
    %v4269 = vunpack.c.l.b16 %v4013
    %v4270 = vunpack.c.l.b16 %v4014
    %v4271 = vunpack.c.l.b16 %v4015
    %v4272 = vunpack.c.l.b16 %v4016
    %v4273 = vunpack.c.l.b16 %v4017
    %v4274 = vunpack.c.l.b16 %v4018
    %v4275 = vunpack.c.l.b16 %v4019
    %v4276 = vunpack.c.l.b16 %v4020
    %v4277 = vunpack.c.l.b16 %v4021
    %v4278 = vunpack.c.l.b16 %v4022
    %v4279 = vunpack.c.l.b16 %v4023
    %v4280 = vunpack.c.l.b16 %v4024
    %v4281 = vunpack.c.l.b16 %v4025
    %v4282 = vunpack.c.l.b16 %v4026
    %v4283 = vunpack.c.l.b16 %v4027
    %v4284 = vunpack.c.l.b16 %v4028
    %v4285 = vunpack.c.l.b16 %v4029
    %v4286 = vunpack.c.l.b16 %v4030
    %v4287 = vunpack.c.l.b16 %v4031
    %v4288 = vunpack.c.l.b16 %v4032
    %v4289 = vunpack.c.l.b16 %v4033
    %v4290 = vunpack.c.l.b16 %v4034
    %v4291 = vunpack.c.l.b16 %v4035
    %v4292 = vunpack.c.l.b16 %v4036
    %v4293 = vunpack.c.l.b16 %v4037
    %v4294 = vunpack.c.l.b16 %v4038
    %v4295 = vunpack.c.l.b16 %v4039
    %v4296 = vunpack.c.l.b16 %v4040
    %v4297 = vunpack.c.l.b16 %v4041
    %v4298 = vunpack.c.l.b16 %v4042
    %v4299 = vunpack.c.l.b16 %v4043
    %v4300 = vunpack.c.l.b16 %v4044
    %v4301 = vunpack.c.l.b16 %v4045
    %v4302 = vunpack.c.l.b16 %v4046
    %v4303 = vunpack.c.l.b16 %v4047
    %v4304 = vunpack.c.l.b16 %v4048
    %v4305 = vunpack.c.l.b16 %v4049
    %v4306 = vunpack.c.l.b16 %v4050
    %v4307 = vunpack.c.l.b16 %v4051
    %v4308 = vunpack.c.l.b16 %v4052
    %v4309 = vunpack.c.l.b16 %v4053
    %v4310 = vunpack.c.l.b16 %v4054
    %v4311 = vunpack.c.l.b16 %v4055
    %v4312 = vunpack.c.l.b16 %v4056
    %v4313 = vunpack.c.l.b16 %v4057
    %v4314 = vunpack.c.l.b16 %v4058
    %v4315 = vunpack.c.l.b16 %v4059
    %v4316 = vunpack.c.l.b16 %v4060
    %v4317 = vunpack.c.l.b16 %v4061
    %v4318 = vunpack.c.l.b16 %v4062
    %v4319 = vunpack.c.l.b16 %v4063
    %v4320 = vunpack.c.l.b16 %v4064
    %v4321 = vunpack.c.l.b16 %v4065
    %v4322 = vunpack.c.l.b16 %v4066
    %v4323 = vunpack.c.l.b16 %v4067
    %v4324 = vunpack.c.l.b16 %v4068
    %v4325 = vunpack.c.l.b16 %v4069
    %v4326 = vunpack.c.l.b16 %v4070
    %v4327 = vunpack.c.l.b16 %v4071
    %v4328 = vunpack.c.l.b16 %v4072
    %v4329 = vunpack.c.l.b16 %v4073
    %v4330 = vunpack.c.l.b16 %v4074
    %v4331 = vunpack.c.l.b16 %v4075
    %v4332 = vunpack.c.l.b16 %v4076
    %v4333 = vunpack.c.l.b16 %v4077
    %v4334 = vunpack.c.l.b16 %v4078
    %v4335 = vunpack.c.l.b16 %v4079
    %v4336 = vunpack.c.l.b16 %v4080
    %v4337 = vunpack.c.l.b16 %v4081
    %v4338 = vunpack.c.l.b16 %v4082
    %v4339 = vunpack.c.l.b16 %v4083
    %v4340 = vunpack.c.l.b16 %v4084
    %v4341 = vunpack.c.l.b16 %v4085
    %v4342 = vunpack.c.l.b16 %v4086
    %v4343 = vunpack.c.l.b16 %v4087
    %v4344 = vunpack.c.l.b16 %v4088
    %v4345 = vunpack.c.l.b16 %v4089
    %v4346 = vunpack.c.l.b16 %v4090
    %v4347 = vunpack.c.l.b16 %v4091
    %v4348 = vunpack.c.l.b16 %v4092
    %v4349 = vunpack.c.l.b16 %v4093
    %v4350 = vunpack.c.l.b16 %v4094
    %v4351 = vunpack.c.l.b16 %v4095
    %v4352 = vunpack.c.l.b16 %v4096
    %v4353 = vunpack.c.l.b16 %v4097
    %v4354 = vunpack.c.l.b16 %v4098
    %v4355 = vunpack.c.l.b16 %v4099
    %v4356 = vunpack.c.l.b16 %v4100
    %v4357 = vunpack.c.l.b16 %v4101
    %v4358 = vunpack.c.l.b16 %v4102
    %v4359 = vunpack.c.l.b16 %v4103
    %v4360 = vunpack.c.l.b16 %v4104
    %v4361 = vunpack.c.l.b16 %v4105
    %v4362 = vunpack.c.l.b16 %v4106
    %v4363 = vunpack.c.l.b16 %v4107
    %v4364 = vunpack.c.l.b16 %v4108
    %v4365 = vunpack.c.l.b16 %v4109
    %v4366 = vunpack.c.l.b16 %v4110
    %v4367 = vunpack.c.l.b16 %v4111
    %v4368 = vunpack.c.l.b16 %v4112
    %v4369 = vunpack.c.l.b16 %v4113
    %v4370 = vunpack.c.l.b16 %v4114
    %v4371 = vunpack.c.l.b16 %v4115
    %v4372 = vunpack.c.l.b16 %v4116
    %v4373 = vunpack.c.l.b16 %v4117
    %v4374 = vunpack.c.l.b16 %v4118
    %v4375 = vunpack.c.l.b16 %v4119
    %v4376 = vunpack.c.l.b16 %v4120
    %v4377 = vunpack.c.l.b16 %v4121
    %v4378 = vunpack.c.l.b16 %v4122
    %v4379 = vunpack.c.l.b16 %v4123
    %v4380 = vunpack.c.l.b16 %v4124
    %v4381 = vunpack.c.l.b16 %v4125
    %v4382 = vunpack.c.l.b16 %v4126
    %v4383 = vunpack.c.l.b16 %v4127
    %v4384 = vunpack.c.l.b16 %v4128
    %v4385 = vunpack.c.l.b16 %v4129
    %v4386 = vpack.c.b16 %v4259, %v4258
    %v4387 = vpack.c.b16 %v4261, %v4260
    %v4388 = vpack.c.b16 %v4263, %v4262
    %v4389 = vpack.c.b16 %v4265, %v4264
    %v4390 = vpack.c.b16 %v4267, %v4266
    %v4391 = vpack.c.b16 %v4269, %v4268
    %v4392 = vpack.c.b16 %v4271, %v4270
    %v4393 = vpack.c.b16 %v4273, %v4272
    %v4394 = vpack.c.b16 %v4275, %v4274
    %v4395 = vpack.c.b16 %v4277, %v4276
    %v4396 = vpack.c.b16 %v4279, %v4278
    %v4397 = vpack.c.b16 %v4281, %v4280
    %v4398 = vpack.c.b16 %v4283, %v4282
    %v4399 = vpack.c.b16 %v4285, %v4284
    %v4400 = vpack.c.b16 %v4287, %v4286
    %v4401 = vpack.c.b16 %v4289, %v4288
    %v4402 = vpack.c.b16 %v4291, %v4290
    %v4403 = vpack.c.b16 %v4293, %v4292
    %v4404 = vpack.c.b16 %v4295, %v4294
    %v4405 = vpack.c.b16 %v4297, %v4296
    %v4406 = vpack.c.b16 %v4299, %v4298
    %v4407 = vpack.c.b16 %v4301, %v4300
    %v4408 = vpack.c.b16 %v4303, %v4302
    %v4409 = vpack.c.b16 %v4305, %v4304
    %v4410 = vpack.c.b16 %v4307, %v4306
    %v4411 = vpack.c.b16 %v4309, %v4308
    %v4412 = vpack.c.b16 %v4311, %v4310
    %v4413 = vpack.c.b16 %v4313, %v4312
    %v4414 = vpack.c.b16 %v4315, %v4314
    %v4415 = vpack.c.b16 %v4317, %v4316
    %v4416 = vpack.c.b16 %v4319, %v4318
    %v4417 = vpack.c.b16 %v4321, %v4320
    %v4418 = vpack.c.b16 %v4323, %v4322
    %v4419 = vpack.c.b16 %v4325, %v4324
    %v4420 = vpack.c.b16 %v4327, %v4326
    %v4421 = vpack.c.b16 %v4329, %v4328
    %v4422 = vpack.c.b16 %v4331, %v4330
    %v4423 = vpack.c.b16 %v4333, %v4332
    %v4424 = vpack.c.b16 %v4335, %v4334
    %v4425 = vpack.c.b16 %v4337, %v4336
    %v4426 = vpack.c.b16 %v4339, %v4338
    %v4427 = vpack.c.b16 %v4341, %v4340
    %v4428 = vpack.c.b16 %v4343, %v4342
    %v4429 = vpack.c.b16 %v4345, %v4344
    %v4430 = vpack.c.b16 %v4347, %v4346
    %v4431 = vpack.c.b16 %v4349, %v4348
    %v4432 = vpack.c.b16 %v4351, %v4350
    %v4433 = vpack.c.b16 %v4353, %v4352
    %v4434 = vpack.c.b16 %v4355, %v4354
    %v4435 = vpack.c.b16 %v4357, %v4356
    %v4436 = vpack.c.b16 %v4359, %v4358
    %v4437 = vpack.c.b16 %v4361, %v4360
    %v4438 = vpack.c.b16 %v4363, %v4362
    %v4439 = vpack.c.b16 %v4365, %v4364
    %v4440 = vpack.c.b16 %v4367, %v4366
    %v4441 = vpack.c.b16 %v4369, %v4368
    %v4442 = vpack.c.b16 %v4371, %v4370
    %v4443 = vpack.c.b16 %v4373, %v4372
    %v4444 = vpack.c.b16 %v4375, %v4374
    %v4445 = vpack.c.b16 %v4377, %v4376
    %v4446 = vpack.c.b16 %v4379, %v4378
    %v4447 = vpack.c.b16 %v4381, %v4380
    %v4448 = vpack.c.b16 %v4383, %v4382
    %v4449 = vpack.c.b16 %v4385, %v4384
    %4514 = vmatprep.subr.bf16.mxu0 0
    %4515 = vmatpush1.bf16.msra.mxu0 %v4393
    %4516 = vmatprep.subr.bf16.mxu0 0
    %4517 = vmatpush1.bf16.msra.mxu0 %v4392
    %4518 = vmatprep.subr.bf16.mxu0 0
    %4519 = vmatpush1.bf16.msra.mxu0 %v4391
    %4520 = vmatprep.subr.bf16.mxu0 0
    %4521 = vmatpush1.bf16.msra.mxu0 %v4390
    %4522 = vmatprep.subr.bf16.mxu0 0
    %4523 = vmatpush1.bf16.msra.mxu0 %v4389
    %4524 = vmatprep.subr.bf16.mxu0 0
    %4525 = vmatpush1.bf16.msra.mxu0 %v4388
    %4526 = vmatprep.subr.bf16.mxu0 0
    %4527 = vmatpush1.bf16.msra.mxu0 %v4387
    %4528 = vmatprep.subr.bf16.mxu0 0
    %4529 = vmatpush1.bf16.msra.mxu0 %v4386
    %4530 = vmatprep.subr.bf16.mxu0 0
    %4531 = vmatpush2.bf16.msra.mxu0 %v4401
    %4532 = vmatprep.subr.bf16.mxu0 0
    %4533 = vmatpush2.bf16.msra.mxu0 %v4400
    %4534 = vmatprep.subr.bf16.mxu0 0
    %4535 = vmatpush2.bf16.msra.mxu0 %v4399
    %4536 = vmatprep.subr.bf16.mxu0 0
    %4537 = vmatpush2.bf16.msra.mxu0 %v4398
    %4538 = vmatprep.subr.bf16.mxu0 0
    %4539 = vmatpush2.bf16.msra.mxu0 %v4397
    %4540 = vmatprep.subr.bf16.mxu0 0
    %4541 = vmatpush2.bf16.msra.mxu0 %v4396
    %4542 = vmatprep.subr.bf16.mxu0 0
    %4543 = vmatpush2.bf16.msra.mxu0 %v4395
    %4544 = vmatprep.subr.bf16.mxu0 0
    %4545 = vmatpush2.bf16.msra.mxu0 %v4394
    %4546 = vmatprep.mubr.bf16.mxu0 %v3995
    %4547 = vmatmul.mubr.bf16.gmra.mxu0 %v3994
    %v4548 = vpop.f32.mrf.mxu0
    %v4549 = vadd.f32 0.0, %v4548
    %v4550 = vpop.f32.mrf.mxu0
    %v4551 = vpop.f32.mrf.mxu0
    %v4552 = vadd.f32 0.0, %v4551
    %v4553 = vpop.f32.mrf.mxu0
    %4554 = vdwg.mxu0
    %4555 = vmatprep.subr.bf16.mxu0 0
    %4556 = vmatpush1.bf16.msra.mxu0 %v4409
    %4557 = vmatprep.subr.bf16.mxu0 0
    %4558 = vmatpush1.bf16.msra.mxu0 %v4408
    %4559 = vmatprep.subr.bf16.mxu0 0
    %4560 = vmatpush1.bf16.msra.mxu0 %v4407
    %4561 = vmatprep.subr.bf16.mxu0 0
    %4562 = vmatpush1.bf16.msra.mxu0 %v4406
    %4563 = vmatprep.subr.bf16.mxu0 0
    %4564 = vmatpush1.bf16.msra.mxu0 %v4405
    %4565 = vmatprep.subr.bf16.mxu0 0
    %4566 = vmatpush1.bf16.msra.mxu0 %v4404
    %4567 = vmatprep.subr.bf16.mxu0 0
    %4568 = vmatpush1.bf16.msra.mxu0 %v4403
    %4569 = vmatprep.subr.bf16.mxu0 0
    %4570 = vmatpush1.bf16.msra.mxu0 %v4402
    %4571 = vmatprep.subr.bf16.mxu0 0
    %4572 = vmatpush2.bf16.msra.mxu0 %v4417
    %4573 = vmatprep.subr.bf16.mxu0 0
    %4574 = vmatpush2.bf16.msra.mxu0 %v4416
    %4575 = vmatprep.subr.bf16.mxu0 0
    %4576 = vmatpush2.bf16.msra.mxu0 %v4415
    %4577 = vmatprep.subr.bf16.mxu0 0
    %4578 = vmatpush2.bf16.msra.mxu0 %v4414
    %4579 = vmatprep.subr.bf16.mxu0 0
    %4580 = vmatpush2.bf16.msra.mxu0 %v4413
    %4581 = vmatprep.subr.bf16.mxu0 0
    %4582 = vmatpush2.bf16.msra.mxu0 %v4412
    %4583 = vmatprep.subr.bf16.mxu0 0
    %4584 = vmatpush2.bf16.msra.mxu0 %v4411
    %4585 = vmatprep.subr.bf16.mxu0 0
    %4586 = vmatpush2.bf16.msra.mxu0 %v4410
    %4587 = vmatprep.mubr.bf16.mxu0 %v3997
    %4588 = vmatmul.mubr.bf16.gmra.mxu0 %v3996
    %v4589 = vpop.f32.mrf.mxu0
    %v4590 = vadd.f32 %v4549, %v4589
    %v4591 = vpop.f32.mrf.mxu0
    %v4592 = vpop.f32.mrf.mxu0
    %v4593 = vadd.f32 %v4552, %v4592
    %v4594 = vpop.f32.mrf.mxu0
    %4595 = vdwg.mxu0
    %4596 = vmatprep.subr.bf16.mxu0 0
    %4597 = vmatpush1.bf16.msra.mxu0 %v4425
    %4598 = vmatprep.subr.bf16.mxu0 0
    %4599 = vmatpush1.bf16.msra.mxu0 %v4424
    %4600 = vmatprep.subr.bf16.mxu0 0
    %4601 = vmatpush1.bf16.msra.mxu0 %v4423
    %4602 = vmatprep.subr.bf16.mxu0 0
    %4603 = vmatpush1.bf16.msra.mxu0 %v4422
    %4604 = vmatprep.subr.bf16.mxu0 0
    %4605 = vmatpush1.bf16.msra.mxu0 %v4421
    %4606 = vmatprep.subr.bf16.mxu0 0
    %4607 = vmatpush1.bf16.msra.mxu0 %v4420
    %4608 = vmatprep.subr.bf16.mxu0 0
    %4609 = vmatpush1.bf16.msra.mxu0 %v4419
    %4610 = vmatprep.subr.bf16.mxu0 0
    %4611 = vmatpush1.bf16.msra.mxu0 %v4418
    %4612 = vmatprep.subr.bf16.mxu0 0
    %4613 = vmatpush2.bf16.msra.mxu0 %v4433
    %4614 = vmatprep.subr.bf16.mxu0 0
    %4615 = vmatpush2.bf16.msra.mxu0 %v4432
    %4616 = vmatprep.subr.bf16.mxu0 0
    %4617 = vmatpush2.bf16.msra.mxu0 %v4431
    %4618 = vmatprep.subr.bf16.mxu0 0
    %4619 = vmatpush2.bf16.msra.mxu0 %v4430
    %4620 = vmatprep.subr.bf16.mxu0 0
    %4621 = vmatpush2.bf16.msra.mxu0 %v4429
    %4622 = vmatprep.subr.bf16.mxu0 0
    %4623 = vmatpush2.bf16.msra.mxu0 %v4428
    %4624 = vmatprep.subr.bf16.mxu0 0
    %4625 = vmatpush2.bf16.msra.mxu0 %v4427
    %4626 = vmatprep.subr.bf16.mxu0 0
    %4627 = vmatpush2.bf16.msra.mxu0 %v4426
    %4628 = vmatprep.mubr.bf16.mxu0 %v3999
    %4629 = vmatmul.mubr.bf16.gmra.mxu0 %v3998
    %v4630 = vpop.f32.mrf.mxu0
    %v4631 = vadd.f32 %v4590, %v4630
    %v4632 = vpop.f32.mrf.mxu0
    %v4633 = vpop.f32.mrf.mxu0
    %v4634 = vadd.f32 %v4593, %v4633
    %v4635 = vpop.f32.mrf.mxu0
    %4636 = vdwg.mxu0
    %4637 = vmatprep.subr.bf16.mxu0 0
    %4638 = vmatpush1.bf16.msra.mxu0 %v4441
    %4639 = vmatprep.subr.bf16.mxu0 0
    %4640 = vmatpush1.bf16.msra.mxu0 %v4440
    %4641 = vmatprep.subr.bf16.mxu0 0
    %4642 = vmatpush1.bf16.msra.mxu0 %v4439
    %4643 = vmatprep.subr.bf16.mxu0 0
    %4644 = vmatpush1.bf16.msra.mxu0 %v4438
    %4645 = vmatprep.subr.bf16.mxu0 0
    %4646 = vmatpush1.bf16.msra.mxu0 %v4437
    %4647 = vmatprep.subr.bf16.mxu0 0
    %4648 = vmatpush1.bf16.msra.mxu0 %v4436
    %4649 = vmatprep.subr.bf16.mxu0 0
    %4650 = vmatpush1.bf16.msra.mxu0 %v4435
    %4651 = vmatprep.subr.bf16.mxu0 0
    %4652 = vmatpush1.bf16.msra.mxu0 %v4434
    %4653 = vmatprep.subr.bf16.mxu0 0
    %4654 = vmatpush2.bf16.msra.mxu0 %v4449
    %4655 = vmatprep.subr.bf16.mxu0 0
    %4656 = vmatpush2.bf16.msra.mxu0 %v4448
    %4657 = vmatprep.subr.bf16.mxu0 0
    %4658 = vmatpush2.bf16.msra.mxu0 %v4447
    %4659 = vmatprep.subr.bf16.mxu0 0
    %4660 = vmatpush2.bf16.msra.mxu0 %v4446
    %4661 = vmatprep.subr.bf16.mxu0 0
    %4662 = vmatpush2.bf16.msra.mxu0 %v4445
    %4663 = vmatprep.subr.bf16.mxu0 0
    %4664 = vmatpush2.bf16.msra.mxu0 %v4444
    %4665 = vmatprep.subr.bf16.mxu0 0
    %4666 = vmatpush2.bf16.msra.mxu0 %v4443
    %4667 = vmatprep.subr.bf16.mxu0 0
    %4668 = vmatpush2.bf16.msra.mxu0 %v4442
    %4669 = vmatprep.mubr.bf16.mxu0 %v4001
    %4670 = vmatmul.mubr.bf16.gmra.mxu0 %v4000
    %v4671 = vpop.f32.mrf.mxu0
    %v4672 = vadd.f32 %v4631, %v4671
    %v4673 = vpop.f32.mrf.mxu0
    %v4674 = vpop.f32.mrf.mxu0
    %v4675 = vadd.f32 %v4634, %v4674
    %v4676 = vpop.f32.mrf.mxu0
    %4677 = vdwg.mxu0
    %4678 = vst [vmem:[#allocation10] sm:$0xff] %v4672
    %4679 = vst [vmem:[#allocation10 + $0x8] sm:$0xff] %v4675
    // Predicated region
    $region34: #{tpu_custom_call.1} parent=1 // pred_check
      _
    $region35: #{tpu_custom_call.1} parent=1 // pred_check_branch
      %4681 = sbr.rel (0) target = $region37
    $region36: #{tpu_custom_call.1} parent=1 // pred_region
      %s4683 = ssub.s32 256, 256
      %4684 = vsyncadd [#allocation4], %s4683
      %s4685 = sshll.u32 [#allocation10], 4
      %s4686 = int_to_ptr.vmem [resolvable:$true] %s4685
      %4691 = dma.vmem_to_hbm [thread:$0]  %s4686, 256, %s4, [#allocation4], 128, 128, 8
    $region37: #{tpu_custom_call.1} parent=1 // pred_fallthru
      _
    // Predicated region
    $region38: #{tpu_custom_call.1} parent=1 // pred_check
      _
    $region39: #{tpu_custom_call.1} parent=1 // pred_check_branch
      %4693 = sbr.rel (0) target = $region41
    $region40: #{tpu_custom_call.1} parent=1 // pred_region
      %4694 = dma.done [#allocation4], 256
    $region41: #{tpu_custom_call.1} parent=1 // pred_fallthru
      _
    %4695 = vsyncpa [#allocation3], 1
    %4696 = vsyncpa [#allocation6], 1
    %4697 = vsyncpa [#allocation9], 1
    %4698 = vsyncpa [#allocation4], 1

</llo_original>
